<compile_context>
chip_gen: v6e
topology: v6e:2x2x1
jax: 0.10.0
libtpu: 0.0.40
codegen_flags: <defaults>
</compile_context>

<pallas_src>
import functools

import jax
import jax.numpy as jnp
from jax import lax
from jax.experimental import pallas as pl
from jax.experimental.pallas import tpu as pltpu

LOG2 = 0.6931471805599453
BN_EPS = 1e-5


def _softplus(x):
    # numerically stable softplus, elementwise (VPU/EUP friendly)
    return jnp.maximum(x, 0.0) + jnp.log(1.0 + jnp.exp(-jnp.abs(x)))


def _full_spec(shape):
    # single-tile BlockSpec: block == full array (grid=(1,))
    return pl.BlockSpec(shape, lambda i: (0,) * len(shape))


def _ff_block(xv, refs):
    """FF: 3x(Linear+ReLU) block + Linear shortcut. bf16 MXU operands, f32 accumulation."""
    w1, b1, w2, b2, w3, b3, ws, bs = refs
    xb = xv.astype(jnp.bfloat16)
    h = jnp.maximum(jnp.dot(xb, w1[...], preferred_element_type=jnp.float32) + b1[...], 0.0)
    h = jnp.maximum(jnp.dot(h.astype(jnp.bfloat16), w2[...],
                            preferred_element_type=jnp.float32) + b2[...], 0.0)
    h = jnp.maximum(jnp.dot(h.astype(jnp.bfloat16), w3[...],
                            preferred_element_type=jnp.float32) + b3[...], 0.0)
    sc = jnp.dot(xb, ws[...], preferred_element_type=jnp.float32) + bs[...]
    return h + sc


def _fused_forward_kernel(adj_ref, x_ref, pool_ref, *refs,
                          num_layers, hidden, num_nodes, num_graphs):
    # refs layout:
    #   4 * num_layers GIN refs   (w1, b1, w2, b2) per layer     (w bf16, b f32 (1,H))
    #   8 local_d refs            (w1,b1,w2,b2,w3,b3,ws,bs)
    #   8 global_d refs           (w1,b1,w2,b2,w3,b3,ws,bs)
    #   loss_ref                  output (1, 1) f32
    #   m_scratch                 VMEM (N, hidden*num_layers) f32
    n_gin = 4 * num_layers
    gin_refs = refs[:n_gin]
    ld_refs = refs[n_gin:n_gin + 8]
    gd_refs = refs[n_gin + 8:n_gin + 16]
    loss_ref = refs[n_gin + 16]
    m_scratch = refs[n_gin + 17]

    adj = adj_ref[...]                     # (N, N) bf16, self-loops folded in (A + I, eps=0)
    h = x_ref[...]                         # (N, F) bf16 activations

    # ---- Encoder: GINConv -> ReLU -> BatchNorm1d, writing each layer into M columns ----
    for i in range(num_layers):
        w1, b1, w2, b2 = gin_refs[4 * i: 4 * i + 4]
        agg = jnp.dot(adj, h, preferred_element_type=jnp.float32)          # (A+I) @ h
        z = jnp.dot(agg.astype(jnp.bfloat16), w1[...],
                    preferred_element_type=jnp.float32) + b1[...]
        z = jnp.maximum(z, 0.0)
        z = jnp.dot(z.astype(jnp.bfloat16), w2[...],
                    preferred_element_type=jnp.float32) + b2[...]
        z = jnp.maximum(z, 0.0)                                            # F.relu(conv(x))
        # BatchNorm1d (training-mode batch stats, gamma=1 / beta=0 default init)
        mean = jnp.mean(z, axis=0, keepdims=True)
        var = jnp.mean((z - mean) ** 2, axis=0, keepdims=True)
        z = (z - mean) * lax.rsqrt(var + BN_EPS)
        m_scratch[:, i * hidden:(i + 1) * hidden] = z                      # 128-aligned slice
        h = z.astype(jnp.bfloat16)

    M = m_scratch[...]                     # (N, emb) f32 local node reps
    pool = pool_ref[...]                   # (G, N)  bf16 one-hot pooling matrix

    # global_add_pool per layer, concatenated == pool @ M
    y = jnp.dot(pool, M.astype(jnp.bfloat16), preferred_element_type=jnp.float32)  # (G, emb)

    g_enc = _ff_block(y, gd_refs)          # (G, emb) f32
    l_enc = _ff_block(M, ld_refs)          # (N, emb) f32

    # ---- JSD local/global loss (prior=False) ----
    # res[j, i] = <g_enc[j], l_enc[i]>  == (l_enc @ g_enc.T).T ; sums below are orientation-free.
    res = lax.dot_general(g_enc, l_enc, (((1,), (1,)), ((), ())),
                          preferred_element_type=jnp.float32)              # (G, N)
    pos = pool.astype(jnp.float32)                                         # exact {0,1}
    neg = 1.0 - pos
    s = _softplus(-res)                    # single softplus reused for both expectations
    e_pos = jnp.sum(pos * (LOG2 - s), keepdims=True) / num_nodes
    e_neg = jnp.sum(neg * (s + res - LOG2), keepdims=True) / (num_nodes * (num_graphs - 1.0))
    loss_ref[...] = e_neg - e_pos


# ----------------------------- wrapper -------------------------------------

def gcn_infomax_forward(params, x, adj, batch, num_graphs):
    n = x.shape[0]
    num_layers = len(params["gin"])
    hidden = params["gin"][0][0].shape[1]
    emb = hidden * num_layers
    if num_graphs < 2:
        raise ValueError("JSD negative expectation divides by (num_graphs - 1); need >= 2 graphs.")

    # Fold the GIN self-term (eps=0) into the adjacency once; cast MXU operands to bf16.
    adj_hat = (adj + jnp.eye(n, dtype=adj.dtype)).astype(jnp.bfloat16)
    # Pooling matrix built directly as (G, N): no transpose kernel, doubles as the JSD pos-mask.
    pool = (batch[None, :] == jnp.arange(num_graphs, dtype=batch.dtype)[:, None]).astype(jnp.bfloat16)

    flat = [adj_hat, x.astype(jnp.bfloat16), pool]
    for (w1, b1, w2, b2) in params["gin"]:
        flat += [w1.astype(jnp.bfloat16), b1.reshape(1, -1),
                 w2.astype(jnp.bfloat16), b2.reshape(1, -1)]
    for name in ("local_d", "global_d"):
        p = params[name]
        for j in range(0, 8, 2):
            flat += [p[j].astype(jnp.bfloat16), p[j + 1].reshape(1, -1)]

    kernel = functools.partial(
        _fused_forward_kernel,
        num_layers=num_layers, hidden=hidden,
        num_nodes=float(n), num_graphs=float(num_graphs))

    loss = pl.pallas_call(
        kernel,
        out_shape=jax.ShapeDtypeStruct((1, 1), jnp.float32),
        grid=(1,),
        in_specs=[_full_spec(a.shape) for a in flat],
        out_specs=_full_spec((1, 1)),
        scratch_shapes=[pltpu.VMEM((n, emb), jnp.float32)],
        compiler_params=pltpu.CompilerParams(
            dimension_semantics=("arbitrary",),
            vmem_limit_bytes=64 * 1024 * 1024),
    )(*flat)
    return loss[0, 0]


# ----------------------------- params --------------------------------------

def xavier_uniform(key, fan_in, fan_out):
    bound = (6.0 / (fan_in + fan_out)) ** 0.5
    return jax.random.uniform(key, (fan_in, fan_out), jnp.float32, -bound, bound)


def init_params(key, num_features, hidden_dim, num_gc_layers):
    emb_dim = hidden_dim * num_gc_layers
    params = {"gin": [], "local_d": [], "global_d": []}
    for i in range(num_gc_layers):
        fin = num_features if i == 0 else hidden_dim
        key, k1, k2 = jax.random.split(key, 3)
        params["gin"].append((
            xavier_uniform(k1, fin, hidden_dim), jnp.zeros((hidden_dim,), jnp.float32),
            xavier_uniform(k2, hidden_dim, hidden_dim), jnp.zeros((hidden_dim,), jnp.float32),
        ))
    for name in ("local_d", "global_d"):
        ws = []
        for _ in range(4):  # 3 block linears + 1 shortcut linear
            key, k = jax.random.split(key)
            ws.append(xavier_uniform(k, emb_dim, emb_dim))
            ws.append(jnp.zeros((emb_dim,), jnp.float32))
        params[name] = ws
    return params


# ----------------------------- main -----------------------------------------

if __name__ == "__main__":
    key = jax.random.PRNGKey(0)

    num_nodes = 16
    num_features = 16
    hidden_dim = 128       # lane-dense: multiple of 128 -> full vreg lanes / unmasked stores
    num_gc_layers = 2      # emb_dim = 256
    num_graphs = 2

    # two graphs of 8 nodes each, ring topology, undirected (both edge directions)
    batch = jnp.array([0] * 8 + [1] * 8, dtype=jnp.int32)
    src_list, dst_list = [], []
    for g in range(num_graphs):
        base = g * 8
        for i in range(8):
            a, b = base + i, base + (i + 1) % 8
            src_list += [a, b]
            dst_list += [b, a]
    src = jnp.array(src_list, dtype=jnp.int32)
    dst = jnp.array(dst_list, dtype=jnp.int32)

    # dense adjacency A[dst, src] so the GIN neighbour-sum == A @ X
    adj = jnp.zeros((num_nodes, num_nodes), jnp.float32).at[dst, src].add(1.0)

    key, kx, kp = jax.random.split(key, 3)
    x = jax.random.normal(kx, (num_nodes, num_features), dtype=jnp.float32)
    params = init_params(kp, num_features, hidden_dim, num_gc_layers)

    loss = gcn_infomax_forward(params, x, adj, batch, num_graphs)
    loss = jax.block_until_ready(loss)
    assert loss.shape == () and jnp.isfinite(loss)
    print("KERNEL_OK")
</pallas_src>

<mosaic_0001>
module attributes {stable_mosaic.version = 11 : i64} {
  func.func @_fused_forward_kernel(%arg0: i32, %arg1: memref<16x16xbf16, #tpu.memory_space<vmem>>, %arg2: memref<16x16xbf16, #tpu.memory_space<vmem>>, %arg3: memref<2x16xbf16, #tpu.memory_space<vmem>>, %arg4: memref<16x128xbf16, #tpu.memory_space<vmem>>, %arg5: memref<1x128xf32, #tpu.memory_space<vmem>>, %arg6: memref<128x128xbf16, #tpu.memory_space<vmem>>, %arg7: memref<1x128xf32, #tpu.memory_space<vmem>>, %arg8: memref<128x128xbf16, #tpu.memory_space<vmem>>, %arg9: memref<1x128xf32, #tpu.memory_space<vmem>>, %arg10: memref<128x128xbf16, #tpu.memory_space<vmem>>, %arg11: memref<1x128xf32, #tpu.memory_space<vmem>>, %arg12: memref<256x256xbf16, #tpu.memory_space<vmem>>, %arg13: memref<1x256xf32, #tpu.memory_space<vmem>>, %arg14: memref<256x256xbf16, #tpu.memory_space<vmem>>, %arg15: memref<1x256xf32, #tpu.memory_space<vmem>>, %arg16: memref<256x256xbf16, #tpu.memory_space<vmem>>, %arg17: memref<1x256xf32, #tpu.memory_space<vmem>>, %arg18: memref<256x256xbf16, #tpu.memory_space<vmem>>, %arg19: memref<1x256xf32, #tpu.memory_space<vmem>>, %arg20: memref<256x256xbf16, #tpu.memory_space<vmem>>, %arg21: memref<1x256xf32, #tpu.memory_space<vmem>>, %arg22: memref<256x256xbf16, #tpu.memory_space<vmem>>, %arg23: memref<1x256xf32, #tpu.memory_space<vmem>>, %arg24: memref<256x256xbf16, #tpu.memory_space<vmem>>, %arg25: memref<1x256xf32, #tpu.memory_space<vmem>>, %arg26: memref<256x256xbf16, #tpu.memory_space<vmem>>, %arg27: memref<1x256xf32, #tpu.memory_space<vmem>>, %arg28: memref<1x1xf32, #tpu.memory_space<vmem>>, %arg29: memref<16x256xf32, #tpu.memory_space<vmem>>) attributes {dimension_semantics = [#tpu.dimension_semantics<arbitrary>], iteration_bounds = array<i64: 1>, scalar_prefetch = 0 : i64, scratch_operands = 1 : i64, tpu.core_type = #tpu.core_type<tc>, window_params = [{pipeline_mode = #tpu.pipeline_mode<synchronous>, transform_indices = @transform_0, window_bounds = array<i64: 16, 16>}, {pipeline_mode = #tpu.pipeline_mode<synchronous>, transform_indices = @transform_1, window_bounds = array<i64: 16, 16>}, {pipeline_mode = #tpu.pipeline_mode<synchronous>, transform_indices = @transform_2, window_bounds = array<i64: 2, 16>}, {pipeline_mode = #tpu.pipeline_mode<synchronous>, transform_indices = @transform_3, window_bounds = array<i64: 16, 128>}, {pipeline_mode = #tpu.pipeline_mode<synchronous>, transform_indices = @transform_4, window_bounds = array<i64: 1, 128>}, {pipeline_mode = #tpu.pipeline_mode<synchronous>, transform_indices = @transform_5, window_bounds = array<i64: 128, 128>}, {pipeline_mode = #tpu.pipeline_mode<synchronous>, transform_indices = @transform_6, window_bounds = array<i64: 1, 128>}, {pipeline_mode = #tpu.pipeline_mode<synchronous>, transform_indices = @transform_7, window_bounds = array<i64: 128, 128>}, {pipeline_mode = #tpu.pipeline_mode<synchronous>, transform_indices = @transform_8, window_bounds = array<i64: 1, 128>}, {pipeline_mode = #tpu.pipeline_mode<synchronous>, transform_indices = @transform_9, window_bounds = array<i64: 128, 128>}, {pipeline_mode = #tpu.pipeline_mode<synchronous>, transform_indices = @transform_10, window_bounds = array<i64: 1, 128>}, {pipeline_mode = #tpu.pipeline_mode<synchronous>, transform_indices = @transform_11, window_bounds = array<i64: 256, 256>}, {pipeline_mode = #tpu.pipeline_mode<synchronous>, transform_indices = @transform_12, window_bounds = array<i64: 1, 256>}, {pipeline_mode = #tpu.pipeline_mode<synchronous>, transform_indices = @transform_13, window_bounds = array<i64: 256, 256>}, {pipeline_mode = #tpu.pipeline_mode<synchronous>, transform_indices = @transform_14, window_bounds = array<i64: 1, 256>}, {pipeline_mode = #tpu.pipeline_mode<synchronous>, transform_indices = @transform_15, window_bounds = array<i64: 256, 256>}, {pipeline_mode = #tpu.pipeline_mode<synchronous>, transform_indices = @transform_16, window_bounds = array<i64: 1, 256>}, {pipeline_mode = #tpu.pipeline_mode<synchronous>, transform_indices = @transform_17, window_bounds = array<i64: 256, 256>}, {pipeline_mode = #tpu.pipeline_mode<synchronous>, transform_indices = @transform_18, window_bounds = array<i64: 1, 256>}, {pipeline_mode = #tpu.pipeline_mode<synchronous>, transform_indices = @transform_19, window_bounds = array<i64: 256, 256>}, {pipeline_mode = #tpu.pipeline_mode<synchronous>, transform_indices = @transform_20, window_bounds = array<i64: 1, 256>}, {pipeline_mode = #tpu.pipeline_mode<synchronous>, transform_indices = @transform_21, window_bounds = array<i64: 256, 256>}, {pipeline_mode = #tpu.pipeline_mode<synchronous>, transform_indices = @transform_22, window_bounds = array<i64: 1, 256>}, {pipeline_mode = #tpu.pipeline_mode<synchronous>, transform_indices = @transform_23, window_bounds = array<i64: 256, 256>}, {pipeline_mode = #tpu.pipeline_mode<synchronous>, transform_indices = @transform_24, window_bounds = array<i64: 1, 256>}, {pipeline_mode = #tpu.pipeline_mode<synchronous>, transform_indices = @transform_25, window_bounds = array<i64: 256, 256>}, {pipeline_mode = #tpu.pipeline_mode<synchronous>, transform_indices = @transform_26, window_bounds = array<i64: 1, 256>}, {pipeline_mode = #tpu.pipeline_mode<synchronous>, transform_indices = @transform_27, window_bounds = array<i64: 1, 1>}]} {
    %c0 = arith.constant 0 : index
    %c0_0 = arith.constant 0 : index
    %0 = vector.load %arg1[%c0, %c0_0] : memref<16x16xbf16, #tpu.memory_space<vmem>>, vector<16x16xbf16>
    %c0_1 = arith.constant 0 : index
    %c0_2 = arith.constant 0 : index
    %1 = vector.load %arg2[%c0_1, %c0_2] : memref<16x16xbf16, #tpu.memory_space<vmem>>, vector<16x16xbf16>
    %cst = arith.constant dense<0.000000e+00> : vector<16x16xf32>
    %2 = tpu.matmul %0, %1, %cst {dimension_numbers = #tpu.dot_dimension_numbers<[1], [0], [0], [1], [0, 0, 1, 1], [], []>} : vector<16x16xbf16>, vector<16x16xbf16>, vector<16x16xf32> -> vector<16x16xf32>
    %3 = arith.truncf %2 : vector<16x16xf32> to vector<16x16xbf16>
    %c0_3 = arith.constant 0 : index
    %c0_4 = arith.constant 0 : index
    %4 = vector.load %arg4[%c0_3, %c0_4] : memref<16x128xbf16, #tpu.memory_space<vmem>>, vector<16x128xbf16>
    %cst_5 = arith.constant dense<0.000000e+00> : vector<16x128xf32>
    %5 = tpu.matmul %3, %4, %cst_5 {dimension_numbers = #tpu.dot_dimension_numbers<[1], [0], [0], [1], [0, 0, 1, 1], [], []>} : vector<16x16xbf16>, vector<16x128xbf16>, vector<16x128xf32> -> vector<16x128xf32>
    %c0_6 = arith.constant 0 : index
    %c0_7 = arith.constant 0 : index
    %6 = vector.load %arg5[%c0_6, %c0_7] : memref<1x128xf32, #tpu.memory_space<vmem>>, vector<1x128xf32>
    %7 = vector.broadcast %6 : vector<1x128xf32> to vector<16x128xf32>
    %8 = arith.addf %5, %7 : vector<16x128xf32>
    %cst_8 = arith.constant 0.000000e+00 : f32
    %9 = vector.broadcast %cst_8 : f32 to vector<16x128xf32>
    %10 = arith.maximumf %8, %9 : vector<16x128xf32>
    %11 = arith.truncf %10 : vector<16x128xf32> to vector<16x128xbf16>
    %c0_9 = arith.constant 0 : index
    %c0_10 = arith.constant 0 : index
    %12 = vector.load %arg6[%c0_9, %c0_10] : memref<128x128xbf16, #tpu.memory_space<vmem>>, vector<128x128xbf16>
    %cst_11 = arith.constant dense<0.000000e+00> : vector<16x128xf32>
    %13 = tpu.matmul %11, %12, %cst_11 {dimension_numbers = #tpu.dot_dimension_numbers<[1], [0], [0], [1], [0, 0, 1, 1], [], []>} : vector<16x128xbf16>, vector<128x128xbf16>, vector<16x128xf32> -> vector<16x128xf32>
    %c0_12 = arith.constant 0 : index
    %c0_13 = arith.constant 0 : index
    %14 = vector.load %arg7[%c0_12, %c0_13] : memref<1x128xf32, #tpu.memory_space<vmem>>, vector<1x128xf32>
    %15 = vector.broadcast %14 : vector<1x128xf32> to vector<16x128xf32>
    %16 = arith.addf %13, %15 : vector<16x128xf32>
    %cst_14 = arith.constant 0.000000e+00 : f32
    %17 = vector.broadcast %cst_14 : f32 to vector<16x128xf32>
    %18 = arith.maximumf %16, %17 : vector<16x128xf32>
    %cst_15 = arith.constant dense<0.000000e+00> : vector<128xf32>
    %19 = vector.multi_reduction <add>, %18, %cst_15 [0] : vector<16x128xf32> to vector<128xf32>
    %20 = vector.shape_cast %19 : vector<128xf32> to vector<1x128xf32>
    %cst_16 = arith.constant 1.600000e+01 : f32
    %21 = vector.broadcast %cst_16 : f32 to vector<1x128xf32>
    %22 = arith.divf %20, %21 : vector<1x128xf32>
    %23 = vector.broadcast %22 : vector<1x128xf32> to vector<16x128xf32>
    %24 = arith.subf %18, %23 : vector<16x128xf32>
    %25 = arith.mulf %24, %24 : vector<16x128xf32>
    %cst_17 = arith.constant dense<0.000000e+00> : vector<128xf32>
    %26 = vector.multi_reduction <add>, %25, %cst_17 [0] : vector<16x128xf32> to vector<128xf32>
    %27 = vector.shape_cast %26 : vector<128xf32> to vector<1x128xf32>
    %cst_18 = arith.constant 1.600000e+01 : f32
    %28 = vector.broadcast %cst_18 : f32 to vector<1x128xf32>
    %29 = arith.divf %27, %28 : vector<1x128xf32>
    %30 = vector.broadcast %22 : vector<1x128xf32> to vector<16x128xf32>
    %31 = arith.subf %18, %30 : vector<16x128xf32>
    %cst_19 = arith.constant 9.99999974E-6 : f32
    %32 = vector.broadcast %cst_19 : f32 to vector<1x128xf32>
    %33 = arith.addf %29, %32 : vector<1x128xf32>
    %34 = math.rsqrt %33 : vector<1x128xf32>
    %35 = vector.broadcast %34 : vector<1x128xf32> to vector<16x128xf32>
    %36 = arith.mulf %31, %35 : vector<16x128xf32>
    %c0_20 = arith.constant 0 : index
    %c0_21 = arith.constant 0 : index
    %37 = vector.load %arg29[%c0_20, %c0_21] : memref<16x256xf32, #tpu.memory_space<vmem>>, vector<16x128xf32>
    tpu.vector_store %arg29[%c0_20, %c0_21], %36 {strides = array<i32>} : memref<16x256xf32, #tpu.memory_space<vmem>>, vector<16x128xf32>,
    %38 = arith.truncf %36 : vector<16x128xf32> to vector<16x128xbf16>
    %cst_22 = arith.constant dense<0.000000e+00> : vector<16x128xf32>
    %39 = tpu.matmul %0, %38, %cst_22 {dimension_numbers = #tpu.dot_dimension_numbers<[1], [0], [0], [1], [0, 0, 1, 1], [], []>} : vector<16x16xbf16>, vector<16x128xbf16>, vector<16x128xf32> -> vector<16x128xf32>
    %40 = arith.truncf %39 : vector<16x128xf32> to vector<16x128xbf16>
    %c0_23 = arith.constant 0 : index
    %c0_24 = arith.constant 0 : index
    %41 = vector.load %arg8[%c0_23, %c0_24] : memref<128x128xbf16, #tpu.memory_space<vmem>>, vector<128x128xbf16>
    %cst_25 = arith.constant dense<0.000000e+00> : vector<16x128xf32>
    %42 = tpu.matmul %40, %41, %cst_25 {dimension_numbers = #tpu.dot_dimension_numbers<[1], [0], [0], [1], [0, 0, 1, 1], [], []>} : vector<16x128xbf16>, vector<128x128xbf16>, vector<16x128xf32> -> vector<16x128xf32>
    %c0_26 = arith.constant 0 : index
    %c0_27 = arith.constant 0 : index
    %43 = vector.load %arg9[%c0_26, %c0_27] : memref<1x128xf32, #tpu.memory_space<vmem>>, vector<1x128xf32>
    %44 = vector.broadcast %43 : vector<1x128xf32> to vector<16x128xf32>
    %45 = arith.addf %42, %44 : vector<16x128xf32>
    %cst_28 = arith.constant 0.000000e+00 : f32
    %46 = vector.broadcast %cst_28 : f32 to vector<16x128xf32>
    %47 = arith.maximumf %45, %46 : vector<16x128xf32>
    %48 = arith.truncf %47 : vector<16x128xf32> to vector<16x128xbf16>
    %c0_29 = arith.constant 0 : index
    %c0_30 = arith.constant 0 : index
    %49 = vector.load %arg10[%c0_29, %c0_30] : memref<128x128xbf16, #tpu.memory_space<vmem>>, vector<128x128xbf16>
    %cst_31 = arith.constant dense<0.000000e+00> : vector<16x128xf32>
    %50 = tpu.matmul %48, %49, %cst_31 {dimension_numbers = #tpu.dot_dimension_numbers<[1], [0], [0], [1], [0, 0, 1, 1], [], []>} : vector<16x128xbf16>, vector<128x128xbf16>, vector<16x128xf32> -> vector<16x128xf32>
    %c0_32 = arith.constant 0 : index
    %c0_33 = arith.constant 0 : index
    %51 = vector.load %arg11[%c0_32, %c0_33] : memref<1x128xf32, #tpu.memory_space<vmem>>, vector<1x128xf32>
    %52 = vector.broadcast %51 : vector<1x128xf32> to vector<16x128xf32>
    %53 = arith.addf %50, %52 : vector<16x128xf32>
    %cst_34 = arith.constant 0.000000e+00 : f32
    %54 = vector.broadcast %cst_34 : f32 to vector<16x128xf32>
    %55 = arith.maximumf %53, %54 : vector<16x128xf32>
    %cst_35 = arith.constant dense<0.000000e+00> : vector<128xf32>
    %56 = vector.multi_reduction <add>, %55, %cst_35 [0] : vector<16x128xf32> to vector<128xf32>
    %57 = vector.shape_cast %56 : vector<128xf32> to vector<1x128xf32>
    %cst_36 = arith.constant 1.600000e+01 : f32
    %58 = vector.broadcast %cst_36 : f32 to vector<1x128xf32>
    %59 = arith.divf %57, %58 : vector<1x128xf32>
    %60 = vector.broadcast %59 : vector<1x128xf32> to vector<16x128xf32>
    %61 = arith.subf %55, %60 : vector<16x128xf32>
    %62 = arith.mulf %61, %61 : vector<16x128xf32>
    %cst_37 = arith.constant dense<0.000000e+00> : vector<128xf32>
    %63 = vector.multi_reduction <add>, %62, %cst_37 [0] : vector<16x128xf32> to vector<128xf32>
    %64 = vector.shape_cast %63 : vector<128xf32> to vector<1x128xf32>
    %cst_38 = arith.constant 1.600000e+01 : f32
    %65 = vector.broadcast %cst_38 : f32 to vector<1x128xf32>
    %66 = arith.divf %64, %65 : vector<1x128xf32>
    %67 = vector.broadcast %59 : vector<1x128xf32> to vector<16x128xf32>
    %68 = arith.subf %55, %67 : vector<16x128xf32>
    %cst_39 = arith.constant 9.99999974E-6 : f32
    %69 = vector.broadcast %cst_39 : f32 to vector<1x128xf32>
    %70 = arith.addf %66, %69 : vector<1x128xf32>
    %71 = math.rsqrt %70 : vector<1x128xf32>
    %72 = vector.broadcast %71 : vector<1x128xf32> to vector<16x128xf32>
    %73 = arith.mulf %68, %72 : vector<16x128xf32>
    %c0_40 = arith.constant 0 : index
    %c128 = arith.constant 128 : index
    %74 = vector.load %arg29[%c0_40, %c128] : memref<16x256xf32, #tpu.memory_space<vmem>>, vector<16x128xf32>
    tpu.vector_store %arg29[%c0_40, %c128], %73 {strides = array<i32>} : memref<16x256xf32, #tpu.memory_space<vmem>>, vector<16x128xf32>,
    %c0_41 = arith.constant 0 : index
    %c0_42 = arith.constant 0 : index
    %75 = vector.load %arg29[%c0_41, %c0_42] : memref<16x256xf32, #tpu.memory_space<vmem>>, vector<16x256xf32>
    %c0_43 = arith.constant 0 : index
    %c0_44 = arith.constant 0 : index
    %76 = vector.load %arg3[%c0_43, %c0_44] : memref<2x16xbf16, #tpu.memory_space<vmem>>, vector<2x16xbf16>
    %77 = arith.truncf %75 : vector<16x256xf32> to vector<16x256xbf16>
    %cst_45 = arith.constant dense<0.000000e+00> : vector<2x256xf32>
    %78 = tpu.matmul %76, %77, %cst_45 {dimension_numbers = #tpu.dot_dimension_numbers<[1], [0], [0], [1], [0, 0, 1, 1], [], []>} : vector<2x16xbf16>, vector<16x256xbf16>, vector<2x256xf32> -> vector<2x256xf32>
    %79 = arith.truncf %78 : vector<2x256xf32> to vector<2x256xbf16>
    %c0_46 = arith.constant 0 : index
    %c0_47 = arith.constant 0 : index
    %80 = vector.load %arg20[%c0_46, %c0_47] : memref<256x256xbf16, #tpu.memory_space<vmem>>, vector<256x256xbf16>
    %cst_48 = arith.constant dense<0.000000e+00> : vector<2x256xf32>
    %81 = tpu.matmul %79, %80, %cst_48 {dimension_numbers = #tpu.dot_dimension_numbers<[1], [0], [0], [1], [0, 0, 1, 1], [], []>} : vector<2x256xbf16>, vector<256x256xbf16>, vector<2x256xf32> -> vector<2x256xf32>
    %c0_49 = arith.constant 0 : index
    %c0_50 = arith.constant 0 : index
    %82 = vector.load %arg21[%c0_49, %c0_50] : memref<1x256xf32, #tpu.memory_space<vmem>>, vector<1x256xf32>
    %83 = vector.broadcast %82 : vector<1x256xf32> to vector<2x256xf32>
    %84 = arith.addf %81, %83 : vector<2x256xf32>
    %cst_51 = arith.constant 0.000000e+00 : f32
    %85 = vector.broadcast %cst_51 : f32 to vector<2x256xf32>
    %86 = arith.maximumf %84, %85 : vector<2x256xf32>
    %87 = arith.truncf %86 : vector<2x256xf32> to vector<2x256xbf16>
    %c0_52 = arith.constant 0 : index
    %c0_53 = arith.constant 0 : index
    %88 = vector.load %arg22[%c0_52, %c0_53] : memref<256x256xbf16, #tpu.memory_space<vmem>>, vector<256x256xbf16>
    %cst_54 = arith.constant dense<0.000000e+00> : vector<2x256xf32>
    %89 = tpu.matmul %87, %88, %cst_54 {dimension_numbers = #tpu.dot_dimension_numbers<[1], [0], [0], [1], [0, 0, 1, 1], [], []>} : vector<2x256xbf16>, vector<256x256xbf16>, vector<2x256xf32> -> vector<2x256xf32>
    %c0_55 = arith.constant 0 : index
    %c0_56 = arith.constant 0 : index
    %90 = vector.load %arg23[%c0_55, %c0_56] : memref<1x256xf32, #tpu.memory_space<vmem>>, vector<1x256xf32>
    %91 = vector.broadcast %90 : vector<1x256xf32> to vector<2x256xf32>
    %92 = arith.addf %89, %91 : vector<2x256xf32>
    %cst_57 = arith.constant 0.000000e+00 : f32
    %93 = vector.broadcast %cst_57 : f32 to vector<2x256xf32>
    %94 = arith.maximumf %92, %93 : vector<2x256xf32>
    %95 = arith.truncf %94 : vector<2x256xf32> to vector<2x256xbf16>
    %c0_58 = arith.constant 0 : index
    %c0_59 = arith.constant 0 : index
    %96 = vector.load %arg24[%c0_58, %c0_59] : memref<256x256xbf16, #tpu.memory_space<vmem>>, vector<256x256xbf16>
    %cst_60 = arith.constant dense<0.000000e+00> : vector<2x256xf32>
    %97 = tpu.matmul %95, %96, %cst_60 {dimension_numbers = #tpu.dot_dimension_numbers<[1], [0], [0], [1], [0, 0, 1, 1], [], []>} : vector<2x256xbf16>, vector<256x256xbf16>, vector<2x256xf32> -> vector<2x256xf32>
    %c0_61 = arith.constant 0 : index
    %c0_62 = arith.constant 0 : index
    %98 = vector.load %arg25[%c0_61, %c0_62] : memref<1x256xf32, #tpu.memory_space<vmem>>, vector<1x256xf32>
    %99 = vector.broadcast %98 : vector<1x256xf32> to vector<2x256xf32>
    %100 = arith.addf %97, %99 : vector<2x256xf32>
    %cst_63 = arith.constant 0.000000e+00 : f32
    %101 = vector.broadcast %cst_63 : f32 to vector<2x256xf32>
    %102 = arith.maximumf %100, %101 : vector<2x256xf32>
    %c0_64 = arith.constant 0 : index
    %c0_65 = arith.constant 0 : index
    %103 = vector.load %arg26[%c0_64, %c0_65] : memref<256x256xbf16, #tpu.memory_space<vmem>>, vector<256x256xbf16>
    %cst_66 = arith.constant dense<0.000000e+00> : vector<2x256xf32>
    %104 = tpu.matmul %79, %103, %cst_66 {dimension_numbers = #tpu.dot_dimension_numbers<[1], [0], [0], [1], [0, 0, 1, 1], [], []>} : vector<2x256xbf16>, vector<256x256xbf16>, vector<2x256xf32> -> vector<2x256xf32>
    %c0_67 = arith.constant 0 : index
    %c0_68 = arith.constant 0 : index
    %105 = vector.load %arg27[%c0_67, %c0_68] : memref<1x256xf32, #tpu.memory_space<vmem>>, vector<1x256xf32>
    %106 = vector.broadcast %105 : vector<1x256xf32> to vector<2x256xf32>
    %107 = arith.addf %104, %106 : vector<2x256xf32>
    %108 = arith.addf %102, %107 : vector<2x256xf32>
    %109 = arith.truncf %75 : vector<16x256xf32> to vector<16x256xbf16>
    %c0_69 = arith.constant 0 : index
    %c0_70 = arith.constant 0 : index
    %110 = vector.load %arg12[%c0_69, %c0_70] : memref<256x256xbf16, #tpu.memory_space<vmem>>, vector<256x256xbf16>
    %cst_71 = arith.constant dense<0.000000e+00> : vector<16x256xf32>
    %111 = tpu.matmul %109, %110, %cst_71 {dimension_numbers = #tpu.dot_dimension_numbers<[1], [0], [0], [1], [0, 0, 1, 1], [], []>} : vector<16x256xbf16>, vector<256x256xbf16>, vector<16x256xf32> -> vector<16x256xf32>
    %c0_72 = arith.constant 0 : index
    %c0_73 = arith.constant 0 : index
    %112 = vector.load %arg13[%c0_72, %c0_73] : memref<1x256xf32, #tpu.memory_space<vmem>>, vector<1x256xf32>
    %113 = vector.broadcast %112 : vector<1x256xf32> to vector<16x256xf32>
    %114 = arith.addf %111, %113 : vector<16x256xf32>
    %cst_74 = arith.constant 0.000000e+00 : f32
    %115 = vector.broadcast %cst_74 : f32 to vector<16x256xf32>
    %116 = arith.maximumf %114, %115 : vector<16x256xf32>
    %117 = arith.truncf %116 : vector<16x256xf32> to vector<16x256xbf16>
    %c0_75 = arith.constant 0 : index
    %c0_76 = arith.constant 0 : index
    %118 = vector.load %arg14[%c0_75, %c0_76] : memref<256x256xbf16, #tpu.memory_space<vmem>>, vector<256x256xbf16>
    %cst_77 = arith.constant dense<0.000000e+00> : vector<16x256xf32>
    %119 = tpu.matmul %117, %118, %cst_77 {dimension_numbers = #tpu.dot_dimension_numbers<[1], [0], [0], [1], [0, 0, 1, 1], [], []>} : vector<16x256xbf16>, vector<256x256xbf16>, vector<16x256xf32> -> vector<16x256xf32>
    %c0_78 = arith.constant 0 : index
    %c0_79 = arith.constant 0 : index
    %120 = vector.load %arg15[%c0_78, %c0_79] : memref<1x256xf32, #tpu.memory_space<vmem>>, vector<1x256xf32>
    %121 = vector.broadcast %120 : vector<1x256xf32> to vector<16x256xf32>
    %122 = arith.addf %119, %121 : vector<16x256xf32>
    %cst_80 = arith.constant 0.000000e+00 : f32
    %123 = vector.broadcast %cst_80 : f32 to vector<16x256xf32>
    %124 = arith.maximumf %122, %123 : vector<16x256xf32>
    %125 = arith.truncf %124 : vector<16x256xf32> to vector<16x256xbf16>
    %c0_81 = arith.constant 0 : index
    %c0_82 = arith.constant 0 : index
    %126 = vector.load %arg16[%c0_81, %c0_82] : memref<256x256xbf16, #tpu.memory_space<vmem>>, vector<256x256xbf16>
    %cst_83 = arith.constant dense<0.000000e+00> : vector<16x256xf32>
    %127 = tpu.matmul %125, %126, %cst_83 {dimension_numbers = #tpu.dot_dimension_numbers<[1], [0], [0], [1], [0, 0, 1, 1], [], []>} : vector<16x256xbf16>, vector<256x256xbf16>, vector<16x256xf32> -> vector<16x256xf32>
    %c0_84 = arith.constant 0 : index
    %c0_85 = arith.constant 0 : index
    %128 = vector.load %arg17[%c0_84, %c0_85] : memref<1x256xf32, #tpu.memory_space<vmem>>, vector<1x256xf32>
    %129 = vector.broadcast %128 : vector<1x256xf32> to vector<16x256xf32>
    %130 = arith.addf %127, %129 : vector<16x256xf32>
    %cst_86 = arith.constant 0.000000e+00 : f32
    %131 = vector.broadcast %cst_86 : f32 to vector<16x256xf32>
    %132 = arith.maximumf %130, %131 : vector<16x256xf32>
    %c0_87 = arith.constant 0 : index
    %c0_88 = arith.constant 0 : index
    %133 = vector.load %arg18[%c0_87, %c0_88] : memref<256x256xbf16, #tpu.memory_space<vmem>>, vector<256x256xbf16>
    %cst_89 = arith.constant dense<0.000000e+00> : vector<16x256xf32>
    %134 = tpu.matmul %109, %133, %cst_89 {dimension_numbers = #tpu.dot_dimension_numbers<[1], [0], [0], [1], [0, 0, 1, 1], [], []>} : vector<16x256xbf16>, vector<256x256xbf16>, vector<16x256xf32> -> vector<16x256xf32>
    %c0_90 = arith.constant 0 : index
    %c0_91 = arith.constant 0 : index
    %135 = vector.load %arg19[%c0_90, %c0_91] : memref<1x256xf32, #tpu.memory_space<vmem>>, vector<1x256xf32>
    %136 = vector.broadcast %135 : vector<1x256xf32> to vector<16x256xf32>
    %137 = arith.addf %134, %136 : vector<16x256xf32>
    %138 = arith.addf %132, %137 : vector<16x256xf32>
    %cst_92 = arith.constant dense<0.000000e+00> : vector<2x16xf32>
    %139 = tpu.matmul %108, %138, %cst_92 {dimension_numbers = #tpu.dot_dimension_numbers<[1], [1], [0], [0], [0, 0, 1, 0], [], []>} : vector<2x256xf32>, vector<16x256xf32>, vector<2x16xf32> -> vector<2x16xf32>
    %140 = arith.extf %76 : vector<2x16xbf16> to vector<2x16xf32>
    %cst_93 = arith.constant 1.000000e+00 : f32
    %141 = vector.broadcast %cst_93 : f32 to vector<2x16xf32>
    %142 = arith.subf %141, %140 : vector<2x16xf32>
    %cst_94 = arith.constant 0.000000e+00 : f32
    %143 = vector.broadcast %cst_94 : f32 to vector<2x16xf32>
    %144 = arith.subf %143, %139 : vector<2x16xf32>
    %cst_95 = arith.constant 0.000000e+00 : f32
    %145 = vector.broadcast %cst_95 : f32 to vector<2x16xf32>
    %146 = arith.maximumf %144, %145 : vector<2x16xf32>
    %147 = math.absf %144 : vector<2x16xf32>
    %cst_96 = arith.constant 0.000000e+00 : f32
    %148 = vector.broadcast %cst_96 : f32 to vector<2x16xf32>
    %149 = arith.subf %148, %147 : vector<2x16xf32>
    %150 = math.exp %149 : vector<2x16xf32>
    %cst_97 = arith.constant 1.000000e+00 : f32
    %151 = vector.broadcast %cst_97 : f32 to vector<2x16xf32>
    %152 = arith.addf %151, %150 : vector<2x16xf32>
    %153 = math.log %152 : vector<2x16xf32>
    %154 = arith.addf %146, %153 : vector<2x16xf32>
    %cst_98 = arith.constant 0.693147182 : f32
    %155 = vector.broadcast %cst_98 : f32 to vector<2x16xf32>
    %156 = arith.subf %155, %154 : vector<2x16xf32>
    %157 = arith.mulf %140, %156 : vector<2x16xf32>
    %158 = vector.shape_cast %157 : vector<2x16xf32> to vector<1x2x16xf32>
    %cst_99 = arith.constant dense<0.000000e+00> : vector<1xf32>
    %159 = vector.multi_reduction <add>, %158, %cst_99 [1, 2] : vector<1x2x16xf32> to vector<1xf32>
    %160 = vector.shape_cast %159 : vector<1xf32> to vector<1x1x1xf32>
    %161 = vector.extract %160[0, 0, 0] : f32 from vector<1x1x1xf32>
    %162 = vector.broadcast %161 : f32 to vector<1x1xf32>
    %cst_100 = arith.constant 1.600000e+01 : f32
    %163 = vector.broadcast %cst_100 : f32 to vector<1x1xf32>
    %164 = arith.divf %162, %163 : vector<1x1xf32>
    %165 = arith.addf %154, %139 : vector<2x16xf32>
    %cst_101 = arith.constant 0.693147182 : f32
    %166 = vector.broadcast %cst_101 : f32 to vector<2x16xf32>
    %167 = arith.subf %165, %166 : vector<2x16xf32>
    %168 = arith.mulf %142, %167 : vector<2x16xf32>
    %169 = vector.shape_cast %168 : vector<2x16xf32> to vector<1x2x16xf32>
    %cst_102 = arith.constant dense<0.000000e+00> : vector<1xf32>
    %170 = vector.multi_reduction <add>, %169, %cst_102 [1, 2] : vector<1x2x16xf32> to vector<1xf32>
    %171 = vector.shape_cast %170 : vector<1xf32> to vector<1x1x1xf32>
    %172 = vector.extract %171[0, 0, 0] : f32 from vector<1x1x1xf32>
    %173 = vector.broadcast %172 : f32 to vector<1x1xf32>
    %cst_103 = arith.constant 1.600000e+01 : f32
    %174 = vector.broadcast %cst_103 : f32 to vector<1x1xf32>
    %175 = arith.divf %173, %174 : vector<1x1xf32>
    %176 = arith.subf %175, %164 : vector<1x1xf32>
    %c0_104 = arith.constant 0 : index
    %c0_105 = arith.constant 0 : index
    %177 = vector.load %arg28[%c0_104, %c0_105] : memref<1x1xf32, #tpu.memory_space<vmem>>, vector<1x1xf32>
    tpu.vector_store %arg28[%c0_104, %c0_105], %176 {strides = array<i32>} : memref<1x1xf32, #tpu.memory_space<vmem>>, vector<1x1xf32>,
    return
  }
  func.func @transform_0(%arg0: i32) -> (i32, i32) {
    %c0_i32 = arith.constant 0 : i32
    %c0_i32_0 = arith.constant 0 : i32
    %c0_i32_1 = arith.constant 0 : i32
    return %c0_i32, %c0_i32_0 : i32, i32
  }
  func.func @transform_1(%arg0: i32) -> (i32, i32) {
    %c0_i32 = arith.constant 0 : i32
    %c0_i32_0 = arith.constant 0 : i32
    %c0_i32_1 = arith.constant 0 : i32
    return %c0_i32, %c0_i32_0 : i32, i32
  }
  func.func @transform_2(%arg0: i32) -> (i32, i32) {
    %c0_i32 = arith.constant 0 : i32
    %c0_i32_0 = arith.constant 0 : i32
    %c0_i32_1 = arith.constant 0 : i32
    return %c0_i32, %c0_i32_0 : i32, i32
  }
  func.func @transform_3(%arg0: i32) -> (i32, i32) {
    %c0_i32 = arith.constant 0 : i32
    %c0_i32_0 = arith.constant 0 : i32
    %c0_i32_1 = arith.constant 0 : i32
    return %c0_i32, %c0_i32_0 : i32, i32
  }
  func.func @transform_4(%arg0: i32) -> (i32, i32) {
    %c0_i32 = arith.constant 0 : i32
    %c0_i32_0 = arith.constant 0 : i32
    %c0_i32_1 = arith.constant 0 : i32
    return %c0_i32, %c0_i32_0 : i32, i32
  }
  func.func @transform_5(%arg0: i32) -> (i32, i32) {
    %c0_i32 = arith.constant 0 : i32
    %c0_i32_0 = arith.constant 0 : i32
    %c0_i32_1 = arith.constant 0 : i32
    return %c0_i32, %c0_i32_0 : i32, i32
  }
  func.func @transform_6(%arg0: i32) -> (i32, i32) {
    %c0_i32 = arith.constant 0 : i32
    %c0_i32_0 = arith.constant 0 : i32
    %c0_i32_1 = arith.constant 0 : i32
    return %c0_i32, %c0_i32_0 : i32, i32
  }
  func.func @transform_7(%arg0: i32) -> (i32, i32) {
    %c0_i32 = arith.constant 0 : i32
    %c0_i32_0 = arith.constant 0 : i32
    %c0_i32_1 = arith.constant 0 : i32
    return %c0_i32, %c0_i32_0 : i32, i32
  }
  func.func @transform_8(%arg0: i32) -> (i32, i32) {
    %c0_i32 = arith.constant 0 : i32
    %c0_i32_0 = arith.constant 0 : i32
    %c0_i32_1 = arith.constant 0 : i32
    return %c0_i32, %c0_i32_0 : i32, i32
  }
  func.func @transform_9(%arg0: i32) -> (i32, i32) {
    %c0_i32 = arith.constant 0 : i32
    %c0_i32_0 = arith.constant 0 : i32
    %c0_i32_1 = arith.constant 0 : i32
    return %c0_i32, %c0_i32_0 : i32, i32
  }
  func.func @transform_10(%arg0: i32) -> (i32, i32) {
    %c0_i32 = arith.constant 0 : i32
    %c0_i32_0 = arith.constant 0 : i32
    %c0_i32_1 = arith.constant 0 : i32
    return %c0_i32, %c0_i32_0 : i32, i32
  }
  func.func @transform_11(%arg0: i32) -> (i32, i32) {
    %c0_i32 = arith.constant 0 : i32
    %c0_i32_0 = arith.constant 0 : i32
    %c0_i32_1 = arith.constant 0 : i32
    return %c0_i32, %c0_i32_0 : i32, i32
  }
  func.func @transform_12(%arg0: i32) -> (i32, i32) {
    %c0_i32 = arith.constant 0 : i32
    %c0_i32_0 = arith.constant 0 : i32
    %c0_i32_1 = arith.constant 0 : i32
    return %c0_i32, %c0_i32_0 : i32, i32
  }
  func.func @transform_13(%arg0: i32) -> (i32, i32) {
    %c0_i32 = arith.constant 0 : i32
    %c0_i32_0 = arith.constant 0 : i32
    %c0_i32_1 = arith.constant 0 : i32
    return %c0_i32, %c0_i32_0 : i32, i32
  }
  func.func @transform_14(%arg0: i32) -> (i32, i32) {
    %c0_i32 = arith.constant 0 : i32
    %c0_i32_0 = arith.constant 0 : i32
    %c0_i32_1 = arith.constant 0 : i32
    return %c0_i32, %c0_i32_0 : i32, i32
  }
  func.func @transform_15(%arg0: i32) -> (i32, i32) {
    %c0_i32 = arith.constant 0 : i32
    %c0_i32_0 = arith.constant 0 : i32
    %c0_i32_1 = arith.constant 0 : i32
    return %c0_i32, %c0_i32_0 : i32, i32
  }
  func.func @transform_16(%arg0: i32) -> (i32, i32) {
    %c0_i32 = arith.constant 0 : i32
    %c0_i32_0 = arith.constant 0 : i32
    %c0_i32_1 = arith.constant 0 : i32
    return %c0_i32, %c0_i32_0 : i32, i32
  }
  func.func @transform_17(%arg0: i32) -> (i32, i32) {
    %c0_i32 = arith.constant 0 : i32
    %c0_i32_0 = arith.constant 0 : i32
    %c0_i32_1 = arith.constant 0 : i32
    return %c0_i32, %c0_i32_0 : i32, i32
  }
  func.func @transform_18(%arg0: i32) -> (i32, i32) {
    %c0_i32 = arith.constant 0 : i32
    %c0_i32_0 = arith.constant 0 : i32
    %c0_i32_1 = arith.constant 0 : i32
    return %c0_i32, %c0_i32_0 : i32, i32
  }
  func.func @transform_19(%arg0: i32) -> (i32, i32) {
    %c0_i32 = arith.constant 0 : i32
    %c0_i32_0 = arith.constant 0 : i32
    %c0_i32_1 = arith.constant 0 : i32
    return %c0_i32, %c0_i32_0 : i32, i32
  }
  func.func @transform_20(%arg0: i32) -> (i32, i32) {
    %c0_i32 = arith.constant 0 : i32
    %c0_i32_0 = arith.constant 0 : i32
    %c0_i32_1 = arith.constant 0 : i32
    return %c0_i32, %c0_i32_0 : i32, i32
  }
  func.func @transform_21(%arg0: i32) -> (i32, i32) {
    %c0_i32 = arith.constant 0 : i32
    %c0_i32_0 = arith.constant 0 : i32
    %c0_i32_1 = arith.constant 0 : i32
    return %c0_i32, %c0_i32_0 : i32, i32
  }
  func.func @transform_22(%arg0: i32) -> (i32, i32) {
    %c0_i32 = arith.constant 0 : i32
    %c0_i32_0 = arith.constant 0 : i32
    %c0_i32_1 = arith.constant 0 : i32
    return %c0_i32, %c0_i32_0 : i32, i32
  }
  func.func @transform_23(%arg0: i32) -> (i32, i32) {
    %c0_i32 = arith.constant 0 : i32
    %c0_i32_0 = arith.constant 0 : i32
    %c0_i32_1 = arith.constant 0 : i32
    return %c0_i32, %c0_i32_0 : i32, i32
  }
  func.func @transform_24(%arg0: i32) -> (i32, i32) {
    %c0_i32 = arith.constant 0 : i32
    %c0_i32_0 = arith.constant 0 : i32
    %c0_i32_1 = arith.constant 0 : i32
    return %c0_i32, %c0_i32_0 : i32, i32
  }
  func.func @transform_25(%arg0: i32) -> (i32, i32) {
    %c0_i32 = arith.constant 0 : i32
    %c0_i32_0 = arith.constant 0 : i32
    %c0_i32_1 = arith.constant 0 : i32
    return %c0_i32, %c0_i32_0 : i32, i32
  }
  func.func @transform_26(%arg0: i32) -> (i32, i32) {
    %c0_i32 = arith.constant 0 : i32
    %c0_i32_0 = arith.constant 0 : i32
    %c0_i32_1 = arith.constant 0 : i32
    return %c0_i32, %c0_i32_0 : i32, i32
  }
  func.func @transform_27(%arg0: i32) -> (i32, i32) {
    %c0_i32 = arith.constant 0 : i32
    %c0_i32_0 = arith.constant 0 : i32
    %c0_i32_1 = arith.constant 0 : i32
    return %c0_i32, %c0_i32_0 : i32, i32
  }
}

</mosaic_0001>

<llo_original>
// kernel: tpu_custom_call.1
$region0: #{tpu_custom_call.1}
  #allocation0 [shape = 'u32[]', space=smem, size = 0x4, offset = 0x4, fixed_abs, tag = 'smem constant byte address 0x4 - core index']
  #allocation1 [shape = 'u32[144,128]{1,0:T(1,128)}', space=vmem, size = 0x12000, scoped, tag = 'internal scratch']
  #allocation2 [shape = 'f32[16,256]{1,0:T(8,128)}', space=vmem, size = 0x4000, scoped, tag = 'scratch operand']
  %s0 = inlined_call_operand.hbm [shape: bf16[16,16], index: 0, kind: input, shape index: {}]
  %s1 = inlined_call_operand.hbm [shape: bf16[16,16], index: 1, kind: input, shape index: {}]
  %s2 = inlined_call_operand.hbm [shape: bf16[2,16], index: 2, kind: input, shape index: {}]
  %s3 = inlined_call_operand.hbm [shape: bf16[16,128], index: 3, kind: input, shape index: {}]
  %s4 = inlined_call_operand.hbm [shape: f32[1,128], index: 4, kind: input, shape index: {}]
  %s5 = inlined_call_operand.hbm [shape: bf16[128,128], index: 5, kind: input, shape index: {}]
  %s6 = inlined_call_operand.hbm [shape: f32[1,128], index: 6, kind: input, shape index: {}]
  %s7 = inlined_call_operand.hbm [shape: bf16[128,128], index: 7, kind: input, shape index: {}]
  %s8 = inlined_call_operand.hbm [shape: f32[1,128], index: 8, kind: input, shape index: {}]
  %s9 = inlined_call_operand.hbm [shape: bf16[128,128], index: 9, kind: input, shape index: {}]
  %s10 = inlined_call_operand.vmem [shape: f32[1,128], index: 10, kind: input, shape index: {}]
  %s11 = inlined_call_operand.hbm [shape: bf16[256,256], index: 11, kind: input, shape index: {}]
  %s12 = inlined_call_operand.vmem [shape: f32[1,256], index: 12, kind: input, shape index: {}]
  %s13 = inlined_call_operand.hbm [shape: bf16[256,256], index: 13, kind: input, shape index: {}]
  %s14 = inlined_call_operand.vmem [shape: f32[1,256], index: 14, kind: input, shape index: {}]
  %s15 = inlined_call_operand.hbm [shape: bf16[256,256], index: 15, kind: input, shape index: {}]
  %s16 = inlined_call_operand.vmem [shape: f32[1,256], index: 16, kind: input, shape index: {}]
  %s17 = inlined_call_operand.hbm [shape: bf16[256,256], index: 17, kind: input, shape index: {}]
  %s18 = inlined_call_operand.vmem [shape: f32[1,256], index: 18, kind: input, shape index: {}]
  %s19 = inlined_call_operand.hbm [shape: bf16[256,256], index: 19, kind: input, shape index: {}]
  %s20 = inlined_call_operand.vmem [shape: f32[1,256], index: 20, kind: input, shape index: {}]
  %s21 = inlined_call_operand.hbm [shape: bf16[256,256], index: 21, kind: input, shape index: {}]
  %s22 = inlined_call_operand.vmem [shape: f32[1,256], index: 22, kind: input, shape index: {}]
  %s23 = inlined_call_operand.hbm [shape: bf16[256,256], index: 23, kind: input, shape index: {}]
  %s24 = inlined_call_operand.vmem [shape: f32[1,256], index: 24, kind: input, shape index: {}]
  %s25 = inlined_call_operand.hbm [shape: bf16[256,256], index: 25, kind: input, shape index: {}]
  %s26 = inlined_call_operand.vmem [shape: f32[1,256], index: 26, kind: input, shape index: {}]
  %s27 = inlined_call_operand.hbm [shape: f32[1,1], index: 27, kind: output, shape index: {}]
  %s28 = sld [smem:[#allocation0]]
  $region190: #{tpu_custom_call.1} parent=0
    _
  %s30 = ssub.s32 1, %s28
  %s31 = scalar_select 0, %s30, %s28
  $region1: #{tpu_custom_call.1} parent=0
    #allocation3 [shape = 'u8[4096]{0}', space=vmem, size = 0x1000, scoped, tag = 'input window, operand 0, single buffered']
    #allocation4 [shape = 's32[1]{0}', space=sflag, size = 0x4, scoped, tag = 'scoped memory for tpu_custom_call.1']
    #allocation5 [shape = 's32[1]{0}', space=sflag, size = 0x4, scoped, tag = 'scoped memory for tpu_custom_call.1']
    #allocation6 [shape = 'u8[4096]{0}', space=vmem, size = 0x1000, scoped, tag = 'input window, operand 1, single buffered']
    #allocation7 [shape = 's32[1]{0}', space=sflag, size = 0x4, scoped, tag = 'scoped memory for tpu_custom_call.1']
    #allocation8 [shape = 'u8[512]{0}', space=vmem, size = 0x400, scoped, tag = 'input window, operand 2, single buffered']
    #allocation9 [shape = 'u8[4096]{0}', space=vmem, size = 0x1000, scoped, tag = 'input window, operand 3, single buffered']
    #allocation10 [shape = 's32[1]{0}', space=sflag, size = 0x4, scoped, tag = 'scoped memory for tpu_custom_call.1']
    #allocation11 [shape = 'u8[512]{0}', space=vmem, size = 0x400, scoped, tag = 'input window, operand 4, single buffered']
    #allocation12 [shape = 'u8[32768]{0}', space=vmem, size = 0x8000, scoped, tag = 'input window, operand 5, single buffered']
    #allocation13 [shape = 's32[1]{0}', space=sflag, size = 0x4, scoped, tag = 'scoped memory for tpu_custom_call.1']
    #allocation14 [shape = 'u8[512]{0}', space=vmem, size = 0x400, scoped, tag = 'input window, operand 6, single buffered']
    #allocation15 [shape = 'u8[32768]{0}', space=vmem, size = 0x8000, scoped, tag = 'input window, operand 7, single buffered']
    #allocation16 [shape = 's32[1]{0}', space=sflag, size = 0x4, scoped, tag = 'scoped memory for tpu_custom_call.1']
    #allocation17 [shape = 'u8[512]{0}', space=vmem, size = 0x400, scoped, tag = 'input window, operand 8, single buffered']
    #allocation18 [shape = 'u8[32768]{0}', space=vmem, size = 0x8000, scoped, tag = 'input window, operand 9, single buffered']
    #allocation19 [shape = 's32[1]{0}', space=sflag, size = 0x4, scoped, tag = 'scoped memory for tpu_custom_call.1']
    #allocation20 [shape = 'u8[131072]{0}', space=vmem, size = 0x20000, scoped, tag = 'input window, operand 11, single buffered']
    #allocation21 [shape = 'u8[131072]{0}', space=vmem, size = 0x20000, scoped, tag = 'input window, operand 13, single buffered']
    #allocation22 [shape = 's32[1]{0}', space=sflag, size = 0x4, scoped, tag = 'scoped memory for tpu_custom_call.1']
    #allocation23 [shape = 'u8[131072]{0}', space=vmem, size = 0x20000, scoped, tag = 'input window, operand 15, single buffered']
    #allocation24 [shape = 'u8[131072]{0}', space=vmem, size = 0x20000, scoped, tag = 'input window, operand 17, single buffered']
    #allocation25 [shape = 's32[1]{0}', space=sflag, size = 0x4, scoped, tag = 'scoped memory for tpu_custom_call.1']
    #allocation26 [shape = 'u8[131072]{0}', space=vmem, size = 0x20000, scoped, tag = 'input window, operand 19, single buffered']
    #allocation27 [shape = 'u8[131072]{0}', space=vmem, size = 0x20000, scoped, tag = 'input window, operand 21, single buffered']
    #allocation28 [shape = 's32[1]{0}', space=sflag, size = 0x4, scoped, tag = 'scoped memory for tpu_custom_call.1']
    #allocation29 [shape = 'u8[131072]{0}', space=vmem, size = 0x20000, scoped, tag = 'input window, operand 23, single buffered']
    #allocation30 [shape = 'u8[131072]{0}', space=vmem, size = 0x20000, scoped, tag = 'input window, operand 25, single buffered']
    #allocation31 [shape = 's32[1]{0}', space=sflag, size = 0x4, scoped, tag = 'scoped memory for tpu_custom_call.1']
    #allocation32 [shape = 'u8[512]{0}', space=vmem, size = 0x400, scoped, tag = 'output window, operand 0, single buffered']
    %32 = vsyncpa [#allocation4], 0
    %33 = vsyncpa [#allocation7], 0
    %34 = vsyncpa [#allocation10], 0
    %35 = vsyncpa [#allocation13], 0
    %36 = vsyncpa [#allocation16], 0
    %37 = vsyncpa [#allocation19], 0
    %38 = vsyncpa [#allocation22], 0
    %39 = vsyncpa [#allocation25], 0
    %40 = vsyncpa [#allocation28], 0
    %41 = vsyncpa [#allocation31], 0
    %42 = vsyncpa [#allocation5], 0
    // Predicated region
    $region2: #{tpu_custom_call.1} parent=1 // pred_check
      _
    $region3: #{tpu_custom_call.1} parent=1 // pred_check_branch
      %44 = sbr.rel (0) target = $region5
    $region4: #{tpu_custom_call.1} parent=1 // pred_region
      %s46 = ssub.s32 128, 128
      %47 = vsyncadd [#allocation4], %s46
      %s48 = sshll.u32 [#allocation3], 4
      %s49 = int_to_ptr.vmem [resolvable:$true] %s48
      %54 = dma.hbm_to_vmem [thread:$0]  %s0, 128, %s49, [#allocation4], 64, 64, 4
    $region5: #{tpu_custom_call.1} parent=1 // pred_fallthru
      _
    // Predicated region
    $region6: #{tpu_custom_call.1} parent=1 // pred_check
      _
    $region7: #{tpu_custom_call.1} parent=1 // pred_check_branch
      %56 = sbr.rel (0) target = $region9
    $region8: #{tpu_custom_call.1} parent=1 // pred_region
      %s58 = ssub.s32 128, 128
      %59 = vsyncadd [#allocation7], %s58
      %s60 = sshll.u32 [#allocation6], 4
      %s61 = int_to_ptr.vmem [resolvable:$true] %s60
      %66 = dma.hbm_to_vmem [thread:$0]  %s1, 128, %s61, [#allocation7], 64, 64, 4
    $region9: #{tpu_custom_call.1} parent=1 // pred_fallthru
      _
    // Predicated region
    $region10: #{tpu_custom_call.1} parent=1 // pred_check
      _
    $region11: #{tpu_custom_call.1} parent=1 // pred_check_branch
      %68 = sbr.rel (0) target = $region13
    $region12: #{tpu_custom_call.1} parent=1 // pred_region
      %s70 = ssub.s32 16, 16
      %71 = vsyncadd [#allocation7], %s70
      %s73 = sshll.u32 [#allocation8], 4
      %s74 = int_to_ptr.vmem [resolvable:$true] %s73
      %76 = dma.hbm_to_vmem [thread:$0]  %s2, 16, %s74, [#allocation7]
    $region13: #{tpu_custom_call.1} parent=1 // pred_fallthru
      _
    // Predicated region
    $region14: #{tpu_custom_call.1} parent=1 // pred_check
      _
    $region15: #{tpu_custom_call.1} parent=1 // pred_check_branch
      %78 = sbr.rel (0) target = $region17
    $region16: #{tpu_custom_call.1} parent=1 // pred_region
      %s80 = ssub.s32 128, 128
      %81 = vsyncadd [#allocation10], %s80
      %s82 = sshll.u32 [#allocation9], 4
      %s83 = int_to_ptr.vmem [resolvable:$true] %s82
      %88 = dma.hbm_to_vmem [thread:$0]  %s3, 128, %s83, [#allocation10], 64, 64, 4
    $region17: #{tpu_custom_call.1} parent=1 // pred_fallthru
      _
    // Predicated region
    $region18: #{tpu_custom_call.1} parent=1 // pred_check
      _
    $region19: #{tpu_custom_call.1} parent=1 // pred_check_branch
      %90 = sbr.rel (0) target = $region21
    $region20: #{tpu_custom_call.1} parent=1 // pred_region
      %s92 = ssub.s32 16, 16
      %93 = vsyncadd [#allocation10], %s92
      %s95 = sshll.u32 [#allocation11], 4
      %s96 = int_to_ptr.vmem [resolvable:$true] %s95
      %98 = dma.hbm_to_vmem [thread:$0]  %s4, 16, %s96, [#allocation10]
    $region21: #{tpu_custom_call.1} parent=1 // pred_fallthru
      _
    // Predicated region
    $region22: #{tpu_custom_call.1} parent=1 // pred_check
      _
    $region23: #{tpu_custom_call.1} parent=1 // pred_check_branch
      %100 = sbr.rel (0) target = $region25
    $region24: #{tpu_custom_call.1} parent=1 // pred_region
      %s102 = ssub.s32 1024, 1024
      %103 = vsyncadd [#allocation13], %s102
      %s104 = sshll.u32 [#allocation12], 4
      %s105 = int_to_ptr.vmem [resolvable:$true] %s104
      %110 = dma.hbm_to_vmem [thread:$0]  %s5, 1024, %s105, [#allocation13], 64, 64, 4
    $region25: #{tpu_custom_call.1} parent=1 // pred_fallthru
      _
    // Predicated region
    $region26: #{tpu_custom_call.1} parent=1 // pred_check
      _
    $region27: #{tpu_custom_call.1} parent=1 // pred_check_branch
      %112 = sbr.rel (0) target = $region29
    $region28: #{tpu_custom_call.1} parent=1 // pred_region
      %s114 = ssub.s32 16, 16
      %115 = vsyncadd [#allocation13], %s114
      %s117 = sshll.u32 [#allocation14], 4
      %s118 = int_to_ptr.vmem [resolvable:$true] %s117
      %120 = dma.hbm_to_vmem [thread:$0]  %s6, 16, %s118, [#allocation13]
    $region29: #{tpu_custom_call.1} parent=1 // pred_fallthru
      _
    // Predicated region
    $region30: #{tpu_custom_call.1} parent=1 // pred_check
      _
    $region31: #{tpu_custom_call.1} parent=1 // pred_check_branch
      %122 = sbr.rel (0) target = $region33
    $region32: #{tpu_custom_call.1} parent=1 // pred_region
      %s124 = ssub.s32 1024, 1024
      %125 = vsyncadd [#allocation16], %s124
      %s126 = sshll.u32 [#allocation15], 4
      %s127 = int_to_ptr.vmem [resolvable:$true] %s126
      %132 = dma.hbm_to_vmem [thread:$0]  %s7, 1024, %s127, [#allocation16], 64, 64, 4
    $region33: #{tpu_custom_call.1} parent=1 // pred_fallthru
      _
    // Predicated region
    $region34: #{tpu_custom_call.1} parent=1 // pred_check
      _
    $region35: #{tpu_custom_call.1} parent=1 // pred_check_branch
      %134 = sbr.rel (0) target = $region37
    $region36: #{tpu_custom_call.1} parent=1 // pred_region
      %s136 = ssub.s32 16, 16
      %137 = vsyncadd [#allocation16], %s136
      %s139 = sshll.u32 [#allocation17], 4
      %s140 = int_to_ptr.vmem [resolvable:$true] %s139
      %142 = dma.hbm_to_vmem [thread:$0]  %s8, 16, %s140, [#allocation16]
    $region37: #{tpu_custom_call.1} parent=1 // pred_fallthru
      _
    // Predicated region
    $region38: #{tpu_custom_call.1} parent=1 // pred_check
      _
    $region39: #{tpu_custom_call.1} parent=1 // pred_check_branch
      %144 = sbr.rel (0) target = $region41
    $region40: #{tpu_custom_call.1} parent=1 // pred_region
      %s146 = ssub.s32 1024, 1024
      %147 = vsyncadd [#allocation19], %s146
      %s148 = sshll.u32 [#allocation18], 4
      %s149 = int_to_ptr.vmem [resolvable:$true] %s148
      %154 = dma.hbm_to_vmem [thread:$0]  %s9, 1024, %s149, [#allocation19], 64, 64, 4
    $region41: #{tpu_custom_call.1} parent=1 // pred_fallthru
      _
    // Predicated region
    $region42: #{tpu_custom_call.1} parent=1 // pred_check
      _
    $region43: #{tpu_custom_call.1} parent=1 // pred_check_branch
      %156 = sbr.rel (0) target = $region45
    $region44: #{tpu_custom_call.1} parent=1 // pred_region
      _
    $region45: #{tpu_custom_call.1} parent=1 // pred_fallthru
      _
    // Predicated region
    $region46: #{tpu_custom_call.1} parent=1 // pred_check
      _
    $region47: #{tpu_custom_call.1} parent=1 // pred_check_branch
      %158 = sbr.rel (0) target = $region49
    $region48: #{tpu_custom_call.1} parent=1 // pred_region
      %s160 = ssub.s32 4096, 4096
      %161 = vsyncadd [#allocation19], %s160
      %s162 = sshll.u32 [#allocation20], 4
      %s163 = int_to_ptr.vmem [resolvable:$true] %s162
      %168 = dma.hbm_to_vmem [thread:$0]  %s11, 4096, %s163, [#allocation19], 128, 128, 8
    $region49: #{tpu_custom_call.1} parent=1 // pred_fallthru
      _
    // Predicated region
    $region50: #{tpu_custom_call.1} parent=1 // pred_check
      _
    $region51: #{tpu_custom_call.1} parent=1 // pred_check_branch
      %170 = sbr.rel (0) target = $region53
    $region52: #{tpu_custom_call.1} parent=1 // pred_region
      _
    $region53: #{tpu_custom_call.1} parent=1 // pred_fallthru
      _
    // Predicated region
    $region54: #{tpu_custom_call.1} parent=1 // pred_check
      _
    $region55: #{tpu_custom_call.1} parent=1 // pred_check_branch
      %172 = sbr.rel (0) target = $region57
    $region56: #{tpu_custom_call.1} parent=1 // pred_region
      %s174 = ssub.s32 4096, 4096
      %175 = vsyncadd [#allocation22], %s174
      %s176 = sshll.u32 [#allocation21], 4
      %s177 = int_to_ptr.vmem [resolvable:$true] %s176
      %182 = dma.hbm_to_vmem [thread:$0]  %s13, 4096, %s177, [#allocation22], 128, 128, 8
    $region57: #{tpu_custom_call.1} parent=1 // pred_fallthru
      _
    // Predicated region
    $region58: #{tpu_custom_call.1} parent=1 // pred_check
      _
    $region59: #{tpu_custom_call.1} parent=1 // pred_check_branch
      %184 = sbr.rel (0) target = $region61
    $region60: #{tpu_custom_call.1} parent=1 // pred_region
      _
    $region61: #{tpu_custom_call.1} parent=1 // pred_fallthru
      _
    // Predicated region
    $region62: #{tpu_custom_call.1} parent=1 // pred_check
      _
    $region63: #{tpu_custom_call.1} parent=1 // pred_check_branch
      %186 = sbr.rel (0) target = $region65
    $region64: #{tpu_custom_call.1} parent=1 // pred_region
      %s188 = ssub.s32 4096, 4096
      %189 = vsyncadd [#allocation22], %s188
      %s190 = sshll.u32 [#allocation23], 4
      %s191 = int_to_ptr.vmem [resolvable:$true] %s190
      %196 = dma.hbm_to_vmem [thread:$0]  %s15, 4096, %s191, [#allocation22], 128, 128, 8
    $region65: #{tpu_custom_call.1} parent=1 // pred_fallthru
      _
    // Predicated region
    $region66: #{tpu_custom_call.1} parent=1 // pred_check
      _
    $region67: #{tpu_custom_call.1} parent=1 // pred_check_branch
      %198 = sbr.rel (0) target = $region69
    $region68: #{tpu_custom_call.1} parent=1 // pred_region
      _
    $region69: #{tpu_custom_call.1} parent=1 // pred_fallthru
      _
    // Predicated region
    $region70: #{tpu_custom_call.1} parent=1 // pred_check
      _
    $region71: #{tpu_custom_call.1} parent=1 // pred_check_branch
      %200 = sbr.rel (0) target = $region73
    $region72: #{tpu_custom_call.1} parent=1 // pred_region
      %s202 = ssub.s32 4096, 4096
      %203 = vsyncadd [#allocation25], %s202
      %s204 = sshll.u32 [#allocation24], 4
      %s205 = int_to_ptr.vmem [resolvable:$true] %s204
      %210 = dma.hbm_to_vmem [thread:$0]  %s17, 4096, %s205, [#allocation25], 128, 128, 8
    $region73: #{tpu_custom_call.1} parent=1 // pred_fallthru
      _
    // Predicated region
    $region74: #{tpu_custom_call.1} parent=1 // pred_check
      _
    $region75: #{tpu_custom_call.1} parent=1 // pred_check_branch
      %212 = sbr.rel (0) target = $region77
    $region76: #{tpu_custom_call.1} parent=1 // pred_region
      _
    $region77: #{tpu_custom_call.1} parent=1 // pred_fallthru
      _
    // Predicated region
    $region78: #{tpu_custom_call.1} parent=1 // pred_check
      _
    $region79: #{tpu_custom_call.1} parent=1 // pred_check_branch
      %214 = sbr.rel (0) target = $region81
    $region80: #{tpu_custom_call.1} parent=1 // pred_region
      %s216 = ssub.s32 4096, 4096
      %217 = vsyncadd [#allocation25], %s216
      %s218 = sshll.u32 [#allocation26], 4
      %s219 = int_to_ptr.vmem [resolvable:$true] %s218
      %224 = dma.hbm_to_vmem [thread:$0]  %s19, 4096, %s219, [#allocation25], 128, 128, 8
    $region81: #{tpu_custom_call.1} parent=1 // pred_fallthru
      _
    // Predicated region
    $region82: #{tpu_custom_call.1} parent=1 // pred_check
      _
    $region83: #{tpu_custom_call.1} parent=1 // pred_check_branch
      %226 = sbr.rel (0) target = $region85
    $region84: #{tpu_custom_call.1} parent=1 // pred_region
      _
    $region85: #{tpu_custom_call.1} parent=1 // pred_fallthru
      _
    // Predicated region
    $region86: #{tpu_custom_call.1} parent=1 // pred_check
      _
    $region87: #{tpu_custom_call.1} parent=1 // pred_check_branch
      %228 = sbr.rel (0) target = $region89
    $region88: #{tpu_custom_call.1} parent=1 // pred_region
      %s230 = ssub.s32 4096, 4096
      %231 = vsyncadd [#allocation28], %s230
      %s232 = sshll.u32 [#allocation27], 4
      %s233 = int_to_ptr.vmem [resolvable:$true] %s232
      %238 = dma.hbm_to_vmem [thread:$0]  %s21, 4096, %s233, [#allocation28], 128, 128, 8
    $region89: #{tpu_custom_call.1} parent=1 // pred_fallthru
      _
    // Predicated region
    $region90: #{tpu_custom_call.1} parent=1 // pred_check
      _
    $region91: #{tpu_custom_call.1} parent=1 // pred_check_branch
      %240 = sbr.rel (0) target = $region93
    $region92: #{tpu_custom_call.1} parent=1 // pred_region
      _
    $region93: #{tpu_custom_call.1} parent=1 // pred_fallthru
      _
    // Predicated region
    $region94: #{tpu_custom_call.1} parent=1 // pred_check
      _
    $region95: #{tpu_custom_call.1} parent=1 // pred_check_branch
      %242 = sbr.rel (0) target = $region97
    $region96: #{tpu_custom_call.1} parent=1 // pred_region
      %s244 = ssub.s32 4096, 4096
      %245 = vsyncadd [#allocation28], %s244
      %s246 = sshll.u32 [#allocation29], 4
      %s247 = int_to_ptr.vmem [resolvable:$true] %s246
      %252 = dma.hbm_to_vmem [thread:$0]  %s23, 4096, %s247, [#allocation28], 128, 128, 8
    $region97: #{tpu_custom_call.1} parent=1 // pred_fallthru
      _
    // Predicated region
    $region98: #{tpu_custom_call.1} parent=1 // pred_check
      _
    $region99: #{tpu_custom_call.1} parent=1 // pred_check_branch
      %254 = sbr.rel (0) target = $region101
    $region100: #{tpu_custom_call.1} parent=1 // pred_region
      _
    $region101: #{tpu_custom_call.1} parent=1 // pred_fallthru
      _
    // Predicated region
    $region102: #{tpu_custom_call.1} parent=1 // pred_check
      _
    $region103: #{tpu_custom_call.1} parent=1 // pred_check_branch
      %256 = sbr.rel (0) target = $region105
    $region104: #{tpu_custom_call.1} parent=1 // pred_region
      %s258 = ssub.s32 4096, 4096
      %259 = vsyncadd [#allocation31], %s258
      %s260 = sshll.u32 [#allocation30], 4
      %s261 = int_to_ptr.vmem [resolvable:$true] %s260
      %266 = dma.hbm_to_vmem [thread:$0]  %s25, 4096, %s261, [#allocation31], 128, 128, 8
    $region105: #{tpu_custom_call.1} parent=1 // pred_fallthru
      _
    // Predicated region
    $region106: #{tpu_custom_call.1} parent=1 // pred_check
      _
    $region107: #{tpu_custom_call.1} parent=1 // pred_check_branch
      %268 = sbr.rel (0) target = $region109
    $region108: #{tpu_custom_call.1} parent=1 // pred_region
      _
    $region109: #{tpu_custom_call.1} parent=1 // pred_fallthru
      _
    // Predicated region
    $region110: #{tpu_custom_call.1} parent=1 // pred_check
      _
    $region111: #{tpu_custom_call.1} parent=1 // pred_check_branch
      %270 = sbr.rel (0) target = $region113
    $region112: #{tpu_custom_call.1} parent=1 // pred_region
      %271 = dma.done [#allocation4], 128
    $region113: #{tpu_custom_call.1} parent=1 // pred_fallthru
      _
    // Predicated region
    $region114: #{tpu_custom_call.1} parent=1 // pred_check
      _
    $region115: #{tpu_custom_call.1} parent=1 // pred_check_branch
      %273 = sbr.rel (0) target = $region117
    $region116: #{tpu_custom_call.1} parent=1 // pred_region
      %274 = dma.done [#allocation7], 128
    $region117: #{tpu_custom_call.1} parent=1 // pred_fallthru
      _
    // Predicated region
    $region118: #{tpu_custom_call.1} parent=1 // pred_check
      _
    $region119: #{tpu_custom_call.1} parent=1 // pred_check_branch
      %276 = sbr.rel (0) target = $region121
    $region120: #{tpu_custom_call.1} parent=1 // pred_region
      %277 = dma.done [#allocation7], 16
    $region121: #{tpu_custom_call.1} parent=1 // pred_fallthru
      _
    // Predicated region
    $region122: #{tpu_custom_call.1} parent=1 // pred_check
      _
    $region123: #{tpu_custom_call.1} parent=1 // pred_check_branch
      %279 = sbr.rel (0) target = $region125
    $region124: #{tpu_custom_call.1} parent=1 // pred_region
      %280 = dma.done [#allocation10], 128
    $region125: #{tpu_custom_call.1} parent=1 // pred_fallthru
      _
    // Predicated region
    $region126: #{tpu_custom_call.1} parent=1 // pred_check
      _
    $region127: #{tpu_custom_call.1} parent=1 // pred_check_branch
      %282 = sbr.rel (0) target = $region129
    $region128: #{tpu_custom_call.1} parent=1 // pred_region
      %283 = dma.done [#allocation10], 16
    $region129: #{tpu_custom_call.1} parent=1 // pred_fallthru
      _
    // Predicated region
    $region130: #{tpu_custom_call.1} parent=1 // pred_check
      _
    $region131: #{tpu_custom_call.1} parent=1 // pred_check_branch
      %285 = sbr.rel (0) target = $region133
    $region132: #{tpu_custom_call.1} parent=1 // pred_region
      %286 = dma.done [#allocation13], 1024
    $region133: #{tpu_custom_call.1} parent=1 // pred_fallthru
      _
    // Predicated region
    $region134: #{tpu_custom_call.1} parent=1 // pred_check
      _
    $region135: #{tpu_custom_call.1} parent=1 // pred_check_branch
      %288 = sbr.rel (0) target = $region137
    $region136: #{tpu_custom_call.1} parent=1 // pred_region
      %289 = dma.done [#allocation13], 16
    $region137: #{tpu_custom_call.1} parent=1 // pred_fallthru
      _
    // Predicated region
    $region138: #{tpu_custom_call.1} parent=1 // pred_check
      _
    $region139: #{tpu_custom_call.1} parent=1 // pred_check_branch
      %291 = sbr.rel (0) target = $region141
    $region140: #{tpu_custom_call.1} parent=1 // pred_region
      %292 = dma.done [#allocation16], 1024
    $region141: #{tpu_custom_call.1} parent=1 // pred_fallthru
      _
    // Predicated region
    $region142: #{tpu_custom_call.1} parent=1 // pred_check
      _
    $region143: #{tpu_custom_call.1} parent=1 // pred_check_branch
      %294 = sbr.rel (0) target = $region145
    $region144: #{tpu_custom_call.1} parent=1 // pred_region
      %295 = dma.done [#allocation16], 16
    $region145: #{tpu_custom_call.1} parent=1 // pred_fallthru
      _
    // Predicated region
    $region146: #{tpu_custom_call.1} parent=1 // pred_check
      _
    $region147: #{tpu_custom_call.1} parent=1 // pred_check_branch
      %297 = sbr.rel (0) target = $region149
    $region148: #{tpu_custom_call.1} parent=1 // pred_region
      %298 = dma.done [#allocation19], 1024
    $region149: #{tpu_custom_call.1} parent=1 // pred_fallthru
      _
    // Predicated region
    $region150: #{tpu_custom_call.1} parent=1 // pred_check
      _
    $region151: #{tpu_custom_call.1} parent=1 // pred_check_branch
      %300 = sbr.rel (0) target = $region153
    $region152: #{tpu_custom_call.1} parent=1 // pred_region
      %301 = dma.done [#allocation19], 4096
    $region153: #{tpu_custom_call.1} parent=1 // pred_fallthru
      _
    // Predicated region
    $region154: #{tpu_custom_call.1} parent=1 // pred_check
      _
    $region155: #{tpu_custom_call.1} parent=1 // pred_check_branch
      %303 = sbr.rel (0) target = $region157
    $region156: #{tpu_custom_call.1} parent=1 // pred_region
      %304 = dma.done [#allocation22], 4096
    $region157: #{tpu_custom_call.1} parent=1 // pred_fallthru
      _
    // Predicated region
    $region158: #{tpu_custom_call.1} parent=1 // pred_check
      _
    $region159: #{tpu_custom_call.1} parent=1 // pred_check_branch
      %306 = sbr.rel (0) target = $region161
    $region160: #{tpu_custom_call.1} parent=1 // pred_region
      %307 = dma.done [#allocation22], 4096
    $region161: #{tpu_custom_call.1} parent=1 // pred_fallthru
      _
    // Predicated region
    $region162: #{tpu_custom_call.1} parent=1 // pred_check
      _
    $region163: #{tpu_custom_call.1} parent=1 // pred_check_branch
      %309 = sbr.rel (0) target = $region165
    $region164: #{tpu_custom_call.1} parent=1 // pred_region
      %310 = dma.done [#allocation25], 4096
    $region165: #{tpu_custom_call.1} parent=1 // pred_fallthru
      _
    // Predicated region
    $region166: #{tpu_custom_call.1} parent=1 // pred_check
      _
    $region167: #{tpu_custom_call.1} parent=1 // pred_check_branch
      %312 = sbr.rel (0) target = $region169
    $region168: #{tpu_custom_call.1} parent=1 // pred_region
      %313 = dma.done [#allocation25], 4096
    $region169: #{tpu_custom_call.1} parent=1 // pred_fallthru
      _
    // Predicated region
    $region170: #{tpu_custom_call.1} parent=1 // pred_check
      _
    $region171: #{tpu_custom_call.1} parent=1 // pred_check_branch
      %315 = sbr.rel (0) target = $region173
    $region172: #{tpu_custom_call.1} parent=1 // pred_region
      %316 = dma.done [#allocation28], 4096
    $region173: #{tpu_custom_call.1} parent=1 // pred_fallthru
      _
    // Predicated region
    $region174: #{tpu_custom_call.1} parent=1 // pred_check
      _
    $region175: #{tpu_custom_call.1} parent=1 // pred_check_branch
      %318 = sbr.rel (0) target = $region177
    $region176: #{tpu_custom_call.1} parent=1 // pred_region
      %319 = dma.done [#allocation28], 4096
    $region177: #{tpu_custom_call.1} parent=1 // pred_fallthru
      _
    // Predicated region
    $region178: #{tpu_custom_call.1} parent=1 // pred_check
      _
    $region179: #{tpu_custom_call.1} parent=1 // pred_check_branch
      %321 = sbr.rel (0) target = $region181
    $region180: #{tpu_custom_call.1} parent=1 // pred_region
      %322 = dma.done [#allocation31], 4096
    $region181: #{tpu_custom_call.1} parent=1 // pred_fallthru
      _
    %v324 = vld [vmem:[#allocation3] sm:$0xf]
    %v325 = vld [vmem:[#allocation3 + $0x4] sm:$0xf]
    %v326 = vld [vmem:[#allocation6] sm:$0xf]
    %v327 = vld [vmem:[#allocation6 + $0x4] sm:$0xf]
    %v330 = vunpack.c.l.b16 %v324
    %v331 = vunpack.c.l.b16 %v325
    %v332 = vpack.c.b16 %v331, %v330
    %v335 = vunpack.c.l.b16 %v326
    %v336 = vunpack.c.l.b16 %v327
    %v337 = vpack.c.b16 %v336, %v335
    %vm339 = vcmask 130048
    %v341 = vsel %vm339, %v332, 0
    %343 = vmatprep.subr.bf16.mxu0 0
    %344 = vmatpush1.bf16.msra.mxu0 0
    %345 = vmatprep.subr.bf16.mxu0 0
    %346 = vmatpush1.bf16.msra.mxu0 0
    %347 = vmatprep.subr.bf16.mxu0 0
    %348 = vmatpush1.bf16.msra.mxu0 0
    %349 = vmatprep.subr.bf16.mxu0 0
    %350 = vmatpush1.bf16.msra.mxu0 0
    %351 = vmatprep.subr.bf16.mxu0 0
    %352 = vmatpush1.bf16.msra.mxu0 0
    %353 = vmatprep.subr.bf16.mxu0 0
    %354 = vmatpush1.bf16.msra.mxu0 0
    %355 = vmatprep.subr.bf16.mxu0 0
    %356 = vmatpush1.bf16.msra.mxu0 0
    %357 = vmatprep.subr.bf16.mxu0 0
    %358 = vmatpush1.bf16.msra.mxu0 %v337
    %359 = vmatprep.subr.bf16.mxu0 0
    %360 = vmatpush2.bf16.msra.mxu0 0
    %361 = vmatprep.subr.bf16.mxu0 0
    %362 = vmatpush2.bf16.msra.mxu0 0
    %363 = vmatprep.subr.bf16.mxu0 0
    %364 = vmatpush2.bf16.msra.mxu0 0
    %365 = vmatprep.subr.bf16.mxu0 0
    %366 = vmatpush2.bf16.msra.mxu0 0
    %367 = vmatprep.subr.bf16.mxu0 0
    %368 = vmatpush2.bf16.msra.mxu0 0
    %369 = vmatprep.subr.bf16.mxu0 0
    %370 = vmatpush2.bf16.msra.mxu0 0
    %371 = vmatprep.subr.bf16.mxu0 0
    %372 = vmatpush2.bf16.msra.mxu0 0
    %373 = vmatprep.subr.bf16.mxu0 0
    %374 = vmatpush2.bf16.msra.mxu0 0
    %375 = vmatprep.mubr.bf16.mxu0 0
    %376 = vmatmul.mubr.bf16.gmra.mxu0 %v341
    %v377 = vpop.f32.mrf.mxu0
    %v378 = vadd.f32 0.0, %v377
    %v379 = vpop.f32.mrf.mxu0
    %v380 = vpop.f32.mrf.mxu0
    %v381 = vadd.f32 0.0, %v380
    %v382 = vpop.f32.mrf.mxu0
    %383 = vdwg.mxu0
    %v384 = vpack.c.bf16 %v381, %v378
    %v385 = vld [vmem:[#allocation9] sm:$0xf]
    %v386 = vld [vmem:[#allocation9 + $0x4] sm:$0xf]
    %v387 = vld [vmem:[#allocation11] sm:$0x1]
    %v389 = vlaneseq
    %v390 = vshrl.u32 %v389, 7
    %v391 = vsub.s32 0, %v390
    %v392 = vrot.slane %v387, %v391
    %v396 = vunpack.c.l.b16 %v385
    %v397 = vunpack.c.l.b16 %v386
    %v398 = vpack.c.b16 %v397, %v396
    %v401 = vsel %vm339, %v384, 0
    %403 = vmatprep.subr.bf16.mxu0 0
    %404 = vmatpush1.bf16.msra.mxu0 0
    %405 = vmatprep.subr.bf16.mxu0 0
    %406 = vmatpush1.bf16.msra.mxu0 0
    %407 = vmatprep.subr.bf16.mxu0 0
    %408 = vmatpush1.bf16.msra.mxu0 0
    %409 = vmatprep.subr.bf16.mxu0 0
    %410 = vmatpush1.bf16.msra.mxu0 0
    %411 = vmatprep.subr.bf16.mxu0 0
    %412 = vmatpush1.bf16.msra.mxu0 0
    %413 = vmatprep.subr.bf16.mxu0 0
    %414 = vmatpush1.bf16.msra.mxu0 0
    %415 = vmatprep.subr.bf16.mxu0 0
    %416 = vmatpush1.bf16.msra.mxu0 0
    %417 = vmatprep.subr.bf16.mxu0 0
    %418 = vmatpush1.bf16.msra.mxu0 %v398
    %419 = vmatprep.subr.bf16.mxu0 0
    %420 = vmatpush2.bf16.msra.mxu0 0
    %421 = vmatprep.subr.bf16.mxu0 0
    %422 = vmatpush2.bf16.msra.mxu0 0
    %423 = vmatprep.subr.bf16.mxu0 0
    %424 = vmatpush2.bf16.msra.mxu0 0
    %425 = vmatprep.subr.bf16.mxu0 0
    %426 = vmatpush2.bf16.msra.mxu0 0
    %427 = vmatprep.subr.bf16.mxu0 0
    %428 = vmatpush2.bf16.msra.mxu0 0
    %429 = vmatprep.subr.bf16.mxu0 0
    %430 = vmatpush2.bf16.msra.mxu0 0
    %431 = vmatprep.subr.bf16.mxu0 0
    %432 = vmatpush2.bf16.msra.mxu0 0
    %433 = vmatprep.subr.bf16.mxu0 0
    %434 = vmatpush2.bf16.msra.mxu0 0
    %435 = vmatprep.mubr.bf16.mxu0 0
    %436 = vmatmul.mubr.bf16.gmra.mxu0 %v401
    %v437 = vpop.f32.mrf.mxu0
    %v438 = vadd.f32 %v392, %v437
    %v439 = vpop.f32.mrf.mxu0
    %v440 = vpop.f32.mrf.mxu0
    %v441 = vadd.f32 %v392, %v440
    %v442 = vpop.f32.mrf.mxu0
    %443 = vdwg.mxu0
    %v444 = vmax.f32 %v438, 0.0
    %v445 = vmax.f32 %v441, 0.0
    %v446 = vpack.c.bf16 %v445, %v444
    %v447 = vld [vmem:[#allocation12] sm:$0xf]
    %v448 = vld [vmem:[#allocation12 + $0x4] sm:$0xf]
    %v449 = vld [vmem:[#allocation12 + $0x8] sm:$0xf]
    %v450 = vld [vmem:[#allocation12 + $0xc] sm:$0xf]
    %v451 = vld [vmem:[#allocation12 + $0x10] sm:$0xf]
    %v452 = vld [vmem:[#allocation12 + $0x14] sm:$0xf]
    %v453 = vld [vmem:[#allocation12 + $0x18] sm:$0xf]
    %v454 = vld [vmem:[#allocation12 + $0x1c] sm:$0xf]
    %v455 = vld [vmem:[#allocation12 + $0x20] sm:$0xf]
    %v456 = vld [vmem:[#allocation12 + $0x24] sm:$0xf]
    %v457 = vld [vmem:[#allocation12 + $0x28] sm:$0xf]
    %v458 = vld [vmem:[#allocation12 + $0x2c] sm:$0xf]
    %v459 = vld [vmem:[#allocation12 + $0x30] sm:$0xf]
    %v460 = vld [vmem:[#allocation12 + $0x34] sm:$0xf]
    %v461 = vld [vmem:[#allocation12 + $0x38] sm:$0xf]
    %v462 = vld [vmem:[#allocation12 + $0x3c] sm:$0xf]
    %v463 = vld [vmem:[#allocation14] sm:$0x1]
    %v465 = vlaneseq
    %v466 = vshrl.u32 %v465, 7
    %v467 = vsub.s32 0, %v466
    %v468 = vrot.slane %v463, %v467
    %v486 = vunpack.c.l.b16 %v447
    %v487 = vunpack.c.l.b16 %v448
    %v488 = vunpack.c.l.b16 %v449
    %v489 = vunpack.c.l.b16 %v450
    %v490 = vunpack.c.l.b16 %v451
    %v491 = vunpack.c.l.b16 %v452
    %v492 = vunpack.c.l.b16 %v453
    %v493 = vunpack.c.l.b16 %v454
    %v494 = vunpack.c.l.b16 %v455
    %v495 = vunpack.c.l.b16 %v456
    %v496 = vunpack.c.l.b16 %v457
    %v497 = vunpack.c.l.b16 %v458
    %v498 = vunpack.c.l.b16 %v459
    %v499 = vunpack.c.l.b16 %v460
    %v500 = vunpack.c.l.b16 %v461
    %v501 = vunpack.c.l.b16 %v462
    %v502 = vpack.c.b16 %v487, %v486
    %v503 = vpack.c.b16 %v489, %v488
    %v504 = vpack.c.b16 %v491, %v490
    %v505 = vpack.c.b16 %v493, %v492
    %v506 = vpack.c.b16 %v495, %v494
    %v507 = vpack.c.b16 %v497, %v496
    %v508 = vpack.c.b16 %v499, %v498
    %v509 = vpack.c.b16 %v501, %v500
    %518 = vmatprep.subr.bf16.mxu0 0
    %519 = vmatpush1.bf16.msra.mxu0 %v509
    %520 = vmatprep.subr.bf16.mxu0 0
    %521 = vmatpush1.bf16.msra.mxu0 %v508
    %522 = vmatprep.subr.bf16.mxu0 0
    %523 = vmatpush1.bf16.msra.mxu0 %v507
    %524 = vmatprep.subr.bf16.mxu0 0
    %525 = vmatpush1.bf16.msra.mxu0 %v506
    %526 = vmatprep.subr.bf16.mxu0 0
    %527 = vmatpush1.bf16.msra.mxu0 %v505
    %528 = vmatprep.subr.bf16.mxu0 0
    %529 = vmatpush1.bf16.msra.mxu0 %v504
    %530 = vmatprep.subr.bf16.mxu0 0
    %531 = vmatpush1.bf16.msra.mxu0 %v503
    %532 = vmatprep.subr.bf16.mxu0 0
    %533 = vmatpush1.bf16.msra.mxu0 %v502
    %534 = vmatprep.subr.bf16.mxu0 0
    %535 = vmatpush2.bf16.msra.mxu0 0
    %536 = vmatprep.subr.bf16.mxu0 0
    %537 = vmatpush2.bf16.msra.mxu0 0
    %538 = vmatprep.subr.bf16.mxu0 0
    %539 = vmatpush2.bf16.msra.mxu0 0
    %540 = vmatprep.subr.bf16.mxu0 0
    %541 = vmatpush2.bf16.msra.mxu0 0
    %542 = vmatprep.subr.bf16.mxu0 0
    %543 = vmatpush2.bf16.msra.mxu0 0
    %544 = vmatprep.subr.bf16.mxu0 0
    %545 = vmatpush2.bf16.msra.mxu0 0
    %546 = vmatprep.subr.bf16.mxu0 0
    %547 = vmatpush2.bf16.msra.mxu0 0
    %548 = vmatprep.subr.bf16.mxu0 0
    %549 = vmatpush2.bf16.msra.mxu0 0
    %550 = vmatprep.mubr.bf16.mxu0 0
    %551 = vmatmul.mubr.bf16.gmra.mxu0 %v446
    %v552 = vpop.f32.mrf.mxu0
    %v553 = vadd.f32 %v468, %v552
    %v554 = vpop.f32.mrf.mxu0
    %v555 = vpop.f32.mrf.mxu0
    %v556 = vadd.f32 %v468, %v555
    %v557 = vpop.f32.mrf.mxu0
    %558 = vdwg.mxu0
    %v559 = vmax.f32 %v553, 0.0
    %v560 = vmax.f32 %v556, 0.0
    %v561 = vadd.f32 %v559, %v560
    %v562 = vrot.slane %v561, 4
    %v563 = vadd.f32 %v561, %v562
    %v564 = vrot.slane %v563, 2
    %v565 = vadd.f32 %v563, %v564
    %v566 = vrot.slane %v565, 1
    %v567 = vadd.f32 %v565, %v566
    %v568 = vrcp.pop 16.0
    %v569 = vmul.f32 %v567, %v568
    %v570 = vsub.f32 %v559, %v569
    %v571 = vsub.f32 %v560, %v569
    %v572 = vmul.f32 %v570, %v570
    %v573 = vmul.f32 %v571, %v571
    %v574 = vadd.f32 %v572, %v573
    %v575 = vrot.slane %v574, 4
    %v576 = vadd.f32 %v574, %v575
    %v577 = vrot.slane %v576, 2
    %v578 = vadd.f32 %v576, %v577
    %v579 = vrot.slane %v578, 1
    %v580 = vadd.f32 %v578, %v579
    %v581 = vmul.f32 %v580, %v568
    %v582 = vadd.f32 %v581, 1e-05
    %v583 = vrsqrt.pop %v582
    %v584 = vmul.f32 %v570, %v583
    %v585 = vmul.f32 %v571, %v583
    %586 = vst [vmem:[#allocation2] sm:$0xff] %v584
    %587 = vst [vmem:[#allocation2 + $0x10] sm:$0xff] %v585
    %v588 = vpack.c.bf16 %v585, %v584
    %589 = vmatprep.subr.bf16.mxu0 0
    %590 = vmatpush1.bf16.msra.mxu0 0
    %591 = vmatprep.subr.bf16.mxu0 0
    %592 = vmatpush1.bf16.msra.mxu0 0
    %593 = vmatprep.subr.bf16.mxu0 0
    %594 = vmatpush1.bf16.msra.mxu0 0
    %595 = vmatprep.subr.bf16.mxu0 0
    %596 = vmatpush1.bf16.msra.mxu0 0
    %597 = vmatprep.subr.bf16.mxu0 0
    %598 = vmatpush1.bf16.msra.mxu0 0
    %599 = vmatprep.subr.bf16.mxu0 0
    %600 = vmatpush1.bf16.msra.mxu0 0
    %601 = vmatprep.subr.bf16.mxu0 0
    %602 = vmatpush1.bf16.msra.mxu0 0
    %603 = vmatprep.subr.bf16.mxu0 0
    %604 = vmatpush1.bf16.msra.mxu0 %v588
    %605 = vmatprep.subr.bf16.mxu0 0
    %606 = vmatpush2.bf16.msra.mxu0 0
    %607 = vmatprep.subr.bf16.mxu0 0
    %608 = vmatpush2.bf16.msra.mxu0 0
    %609 = vmatprep.subr.bf16.mxu0 0
    %610 = vmatpush2.bf16.msra.mxu0 0
    %611 = vmatprep.subr.bf16.mxu0 0
    %612 = vmatpush2.bf16.msra.mxu0 0
    %613 = vmatprep.subr.bf16.mxu0 0
    %614 = vmatpush2.bf16.msra.mxu0 0
    %615 = vmatprep.subr.bf16.mxu0 0
    %616 = vmatpush2.bf16.msra.mxu0 0
    %617 = vmatprep.subr.bf16.mxu0 0
    %618 = vmatpush2.bf16.msra.mxu0 0
    %619 = vmatprep.subr.bf16.mxu0 0
    %620 = vmatpush2.bf16.msra.mxu0 0
    %621 = vmatprep.mubr.bf16.mxu0 0
    %622 = vmatmul.mubr.bf16.gmra.mxu0 %v341
    %v623 = vpop.f32.mrf.mxu0
    %v624 = vadd.f32 0.0, %v623
    %v625 = vpop.f32.mrf.mxu0
    %v626 = vpop.f32.mrf.mxu0
    %v627 = vadd.f32 0.0, %v626
    %v628 = vpop.f32.mrf.mxu0
    %629 = vdwg.mxu0
    %v630 = vpack.c.bf16 %v627, %v624
    %v631 = vld [vmem:[#allocation15] sm:$0xf]
    %v632 = vld [vmem:[#allocation15 + $0x4] sm:$0xf]
    %v633 = vld [vmem:[#allocation15 + $0x8] sm:$0xf]
    %v634 = vld [vmem:[#allocation15 + $0xc] sm:$0xf]
    %v635 = vld [vmem:[#allocation15 + $0x10] sm:$0xf]
    %v636 = vld [vmem:[#allocation15 + $0x14] sm:$0xf]
    %v637 = vld [vmem:[#allocation15 + $0x18] sm:$0xf]
    %v638 = vld [vmem:[#allocation15 + $0x1c] sm:$0xf]
    %v639 = vld [vmem:[#allocation15 + $0x20] sm:$0xf]
    %v640 = vld [vmem:[#allocation15 + $0x24] sm:$0xf]
    %v641 = vld [vmem:[#allocation15 + $0x28] sm:$0xf]
    %v642 = vld [vmem:[#allocation15 + $0x2c] sm:$0xf]
    %v643 = vld [vmem:[#allocation15 + $0x30] sm:$0xf]
    %v644 = vld [vmem:[#allocation15 + $0x34] sm:$0xf]
    %v645 = vld [vmem:[#allocation15 + $0x38] sm:$0xf]
    %v646 = vld [vmem:[#allocation15 + $0x3c] sm:$0xf]
    %v647 = vld [vmem:[#allocation17] sm:$0x1]
    %v649 = vlaneseq
    %v650 = vshrl.u32 %v649, 7
    %v651 = vsub.s32 0, %v650
    %v652 = vrot.slane %v647, %v651
    %v670 = vunpack.c.l.b16 %v631
    %v671 = vunpack.c.l.b16 %v632
    %v672 = vunpack.c.l.b16 %v633
    %v673 = vunpack.c.l.b16 %v634
    %v674 = vunpack.c.l.b16 %v635
    %v675 = vunpack.c.l.b16 %v636
    %v676 = vunpack.c.l.b16 %v637
    %v677 = vunpack.c.l.b16 %v638
    %v678 = vunpack.c.l.b16 %v639
    %v679 = vunpack.c.l.b16 %v640
    %v680 = vunpack.c.l.b16 %v641
    %v681 = vunpack.c.l.b16 %v642
    %v682 = vunpack.c.l.b16 %v643
    %v683 = vunpack.c.l.b16 %v644
    %v684 = vunpack.c.l.b16 %v645
    %v685 = vunpack.c.l.b16 %v646
    %v686 = vpack.c.b16 %v671, %v670
    %v687 = vpack.c.b16 %v673, %v672
    %v688 = vpack.c.b16 %v675, %v674
    %v689 = vpack.c.b16 %v677, %v676
    %v690 = vpack.c.b16 %v679, %v678
    %v691 = vpack.c.b16 %v681, %v680
    %v692 = vpack.c.b16 %v683, %v682
    %v693 = vpack.c.b16 %v685, %v684
    %702 = vmatprep.subr.bf16.mxu0 0
    %703 = vmatpush1.bf16.msra.mxu0 %v693
    %704 = vmatprep.subr.bf16.mxu0 0
    %705 = vmatpush1.bf16.msra.mxu0 %v692
    %706 = vmatprep.subr.bf16.mxu0 0
    %707 = vmatpush1.bf16.msra.mxu0 %v691
    %708 = vmatprep.subr.bf16.mxu0 0
    %709 = vmatpush1.bf16.msra.mxu0 %v690
    %710 = vmatprep.subr.bf16.mxu0 0
    %711 = vmatpush1.bf16.msra.mxu0 %v689
    %712 = vmatprep.subr.bf16.mxu0 0
    %713 = vmatpush1.bf16.msra.mxu0 %v688
    %714 = vmatprep.subr.bf16.mxu0 0
    %715 = vmatpush1.bf16.msra.mxu0 %v687
    %716 = vmatprep.subr.bf16.mxu0 0
    %717 = vmatpush1.bf16.msra.mxu0 %v686
    %718 = vmatprep.subr.bf16.mxu0 0
    %719 = vmatpush2.bf16.msra.mxu0 0
    %720 = vmatprep.subr.bf16.mxu0 0
    %721 = vmatpush2.bf16.msra.mxu0 0
    %722 = vmatprep.subr.bf16.mxu0 0
    %723 = vmatpush2.bf16.msra.mxu0 0
    %724 = vmatprep.subr.bf16.mxu0 0
    %725 = vmatpush2.bf16.msra.mxu0 0
    %726 = vmatprep.subr.bf16.mxu0 0
    %727 = vmatpush2.bf16.msra.mxu0 0
    %728 = vmatprep.subr.bf16.mxu0 0
    %729 = vmatpush2.bf16.msra.mxu0 0
    %730 = vmatprep.subr.bf16.mxu0 0
    %731 = vmatpush2.bf16.msra.mxu0 0
    %732 = vmatprep.subr.bf16.mxu0 0
    %733 = vmatpush2.bf16.msra.mxu0 0
    %734 = vmatprep.mubr.bf16.mxu0 0
    %735 = vmatmul.mubr.bf16.gmra.mxu0 %v630
    %v736 = vpop.f32.mrf.mxu0
    %v737 = vadd.f32 %v652, %v736
    %v738 = vpop.f32.mrf.mxu0
    %v739 = vpop.f32.mrf.mxu0
    %v740 = vadd.f32 %v652, %v739
    %v741 = vpop.f32.mrf.mxu0
    %742 = vdwg.mxu0
    %v743 = vmax.f32 %v737, 0.0
    %v744 = vmax.f32 %v740, 0.0
    %v745 = vpack.c.bf16 %v744, %v743
    %v746 = vld [vmem:[#allocation18] sm:$0xf]
    %v747 = vld [vmem:[#allocation18 + $0x4] sm:$0xf]
    %v748 = vld [vmem:[#allocation18 + $0x8] sm:$0xf]
    %v749 = vld [vmem:[#allocation18 + $0xc] sm:$0xf]
    %v750 = vld [vmem:[#allocation18 + $0x10] sm:$0xf]
    %v751 = vld [vmem:[#allocation18 + $0x14] sm:$0xf]
    %v752 = vld [vmem:[#allocation18 + $0x18] sm:$0xf]
    %v753 = vld [vmem:[#allocation18 + $0x1c] sm:$0xf]
    %v754 = vld [vmem:[#allocation18 + $0x20] sm:$0xf]
    %v755 = vld [vmem:[#allocation18 + $0x24] sm:$0xf]
    %v756 = vld [vmem:[#allocation18 + $0x28] sm:$0xf]
    %v757 = vld [vmem:[#allocation18 + $0x2c] sm:$0xf]
    %v758 = vld [vmem:[#allocation18 + $0x30] sm:$0xf]
    %v759 = vld [vmem:[#allocation18 + $0x34] sm:$0xf]
    %v760 = vld [vmem:[#allocation18 + $0x38] sm:$0xf]
    %v761 = vld [vmem:[#allocation18 + $0x3c] sm:$0xf]
    %v762 = vld [vmem:[%s10] sm:$0x1]
    %v764 = vlaneseq
    %v765 = vshrl.u32 %v764, 7
    %v766 = vsub.s32 0, %v765
    %v767 = vrot.slane %v762, %v766
    %v785 = vunpack.c.l.b16 %v746
    %v786 = vunpack.c.l.b16 %v747
    %v787 = vunpack.c.l.b16 %v748
    %v788 = vunpack.c.l.b16 %v749
    %v789 = vunpack.c.l.b16 %v750
    %v790 = vunpack.c.l.b16 %v751
    %v791 = vunpack.c.l.b16 %v752
    %v792 = vunpack.c.l.b16 %v753
    %v793 = vunpack.c.l.b16 %v754
    %v794 = vunpack.c.l.b16 %v755
    %v795 = vunpack.c.l.b16 %v756
    %v796 = vunpack.c.l.b16 %v757
    %v797 = vunpack.c.l.b16 %v758
    %v798 = vunpack.c.l.b16 %v759
    %v799 = vunpack.c.l.b16 %v760
    %v800 = vunpack.c.l.b16 %v761
    %v801 = vpack.c.b16 %v786, %v785
    %v802 = vpack.c.b16 %v788, %v787
    %v803 = vpack.c.b16 %v790, %v789
    %v804 = vpack.c.b16 %v792, %v791
    %v805 = vpack.c.b16 %v794, %v793
    %v806 = vpack.c.b16 %v796, %v795
    %v807 = vpack.c.b16 %v798, %v797
    %v808 = vpack.c.b16 %v800, %v799
    %817 = vmatprep.subr.bf16.mxu0 0
    %818 = vmatpush1.bf16.msra.mxu0 %v808
    %819 = vmatprep.subr.bf16.mxu0 0
    %820 = vmatpush1.bf16.msra.mxu0 %v807
    %821 = vmatprep.subr.bf16.mxu0 0
    %822 = vmatpush1.bf16.msra.mxu0 %v806
    %823 = vmatprep.subr.bf16.mxu0 0
    %824 = vmatpush1.bf16.msra.mxu0 %v805
    %825 = vmatprep.subr.bf16.mxu0 0
    %826 = vmatpush1.bf16.msra.mxu0 %v804
    %827 = vmatprep.subr.bf16.mxu0 0
    %828 = vmatpush1.bf16.msra.mxu0 %v803
    %829 = vmatprep.subr.bf16.mxu0 0
    %830 = vmatpush1.bf16.msra.mxu0 %v802
    %831 = vmatprep.subr.bf16.mxu0 0
    %832 = vmatpush1.bf16.msra.mxu0 %v801
    %833 = vmatprep.subr.bf16.mxu0 0
    %834 = vmatpush2.bf16.msra.mxu0 0
    %835 = vmatprep.subr.bf16.mxu0 0
    %836 = vmatpush2.bf16.msra.mxu0 0
    %837 = vmatprep.subr.bf16.mxu0 0
    %838 = vmatpush2.bf16.msra.mxu0 0
    %839 = vmatprep.subr.bf16.mxu0 0
    %840 = vmatpush2.bf16.msra.mxu0 0
    %841 = vmatprep.subr.bf16.mxu0 0
    %842 = vmatpush2.bf16.msra.mxu0 0
    %843 = vmatprep.subr.bf16.mxu0 0
    %844 = vmatpush2.bf16.msra.mxu0 0
    %845 = vmatprep.subr.bf16.mxu0 0
    %846 = vmatpush2.bf16.msra.mxu0 0
    %847 = vmatprep.subr.bf16.mxu0 0
    %848 = vmatpush2.bf16.msra.mxu0 0
    %849 = vmatprep.mubr.bf16.mxu0 0
    %850 = vmatmul.mubr.bf16.gmra.mxu0 %v745
    %v851 = vpop.f32.mrf.mxu0
    %v852 = vadd.f32 %v767, %v851
    %v853 = vpop.f32.mrf.mxu0
    %v854 = vpop.f32.mrf.mxu0
    %v855 = vadd.f32 %v767, %v854
    %v856 = vpop.f32.mrf.mxu0
    %857 = vdwg.mxu0
    %v858 = vmax.f32 %v852, 0.0
    %v859 = vmax.f32 %v855, 0.0
    %v860 = vadd.f32 %v858, %v859
    %v861 = vrot.slane %v860, 4
    %v862 = vadd.f32 %v860, %v861
    %v863 = vrot.slane %v862, 2
    %v864 = vadd.f32 %v862, %v863
    %v865 = vrot.slane %v864, 1
    %v866 = vadd.f32 %v864, %v865
    %v867 = vmul.f32 %v866, %v568
    %v868 = vsub.f32 %v858, %v867
    %v869 = vsub.f32 %v859, %v867
    %v870 = vmul.f32 %v868, %v868
    %v871 = vmul.f32 %v869, %v869
    %v872 = vadd.f32 %v870, %v871
    %v873 = vrot.slane %v872, 4
    %v874 = vadd.f32 %v872, %v873
    %v875 = vrot.slane %v874, 2
    %v876 = vadd.f32 %v874, %v875
    %v877 = vrot.slane %v876, 1
    %v878 = vadd.f32 %v876, %v877
    %v879 = vmul.f32 %v878, %v568
    %v880 = vadd.f32 %v879, 1e-05
    %v881 = vrsqrt.pop %v880
    %v882 = vmul.f32 %v868, %v881
    %v883 = vmul.f32 %v869, %v881
    %884 = vst [vmem:[#allocation2 + $0x8] sm:$0xff] %v882
    %885 = vst [vmem:[#allocation2 + $0x18] sm:$0xff] %v883
    %v886 = vld [vmem:[#allocation2] sm:$0xff]
    %v887 = vld [vmem:[#allocation2 + $0x8] sm:$0xff]
    %v888 = vld [vmem:[#allocation2 + $0x10] sm:$0xff]
    %v889 = vld [vmem:[#allocation2 + $0x18] sm:$0xff]
    %v890 = vld [vmem:[#allocation8] sm:$0x1]
    %v891 = vpack.c.bf16 %v888, %v886
    %v892 = vpack.c.bf16 %v889, %v887
    %v894 = vsel %vm339, %v890, 0
    %896 = vmatprep.subr.bf16.mxu0 0
    %897 = vmatpush1.bf16.msra.mxu0 0
    %898 = vmatprep.subr.bf16.mxu0 0
    %899 = vmatpush1.bf16.msra.mxu0 0
    %900 = vmatprep.subr.bf16.mxu0 0
    %901 = vmatpush1.bf16.msra.mxu0 0
    %902 = vmatprep.subr.bf16.mxu0 0
    %903 = vmatpush1.bf16.msra.mxu0 0
    %904 = vmatprep.subr.bf16.mxu0 0
    %905 = vmatpush1.bf16.msra.mxu0 0
    %906 = vmatprep.subr.bf16.mxu0 0
    %907 = vmatpush1.bf16.msra.mxu0 0
    %908 = vmatprep.subr.bf16.mxu0 0
    %909 = vmatpush1.bf16.msra.mxu0 0
    %910 = vmatprep.subr.bf16.mxu0 %v892
    %911 = vmatpush1.bf16.msra.mxu0 %v891
    %912 = vmatprep.subr.bf16.mxu0 0
    %913 = vmatpush2.bf16.msra.mxu0 0
    %914 = vmatprep.subr.bf16.mxu0 0
    %915 = vmatpush2.bf16.msra.mxu0 0
    %916 = vmatprep.subr.bf16.mxu0 0
    %917 = vmatpush2.bf16.msra.mxu0 0
    %918 = vmatprep.subr.bf16.mxu0 0
    %919 = vmatpush2.bf16.msra.mxu0 0
    %920 = vmatprep.subr.bf16.mxu0 0
    %921 = vmatpush2.bf16.msra.mxu0 0
    %922 = vmatprep.subr.bf16.mxu0 0
    %923 = vmatpush2.bf16.msra.mxu0 0
    %924 = vmatprep.subr.bf16.mxu0 0
    %925 = vmatpush2.bf16.msra.mxu0 0
    %926 = vmatprep.subr.bf16.mxu0 0
    %927 = vmatpush2.bf16.msra.mxu0 0
    %928 = vmatprep.mubr.bf16.mxu0 0
    %929 = vmatmul.mubr.bf16.gmra.mxu0 %v894
    %v930 = vpop.f32.mrf.mxu0
    %v931 = vadd.f32 0.0, %v930
    %v932 = vpop.f32.mrf.mxu0
    %v933 = vadd.f32 0.0, %v932
    %v934 = vpop.f32.mrf.mxu0
    %v935 = vpop.f32.mrf.mxu0
    %936 = vdwg.mxu0
    %v937 = vpack.c.bf16 %v931, %v931
    %v938 = vpack.c.bf16 %v933, %v933
    %v939 = vld [vmem:[#allocation26] sm:$0xff]
    %v940 = vld [vmem:[#allocation26 + $0x8] sm:$0xff]
    %v941 = vld [vmem:[#allocation26 + $0x10] sm:$0xff]
    %v942 = vld [vmem:[#allocation26 + $0x18] sm:$0xff]
    %v943 = vld [vmem:[#allocation26 + $0x20] sm:$0xff]
    %v944 = vld [vmem:[#allocation26 + $0x28] sm:$0xff]
    %v945 = vld [vmem:[#allocation26 + $0x30] sm:$0xff]
    %v946 = vld [vmem:[#allocation26 + $0x38] sm:$0xff]
    %v947 = vld [vmem:[#allocation26 + $0x40] sm:$0xff]
    %v948 = vld [vmem:[#allocation26 + $0x48] sm:$0xff]
    %v949 = vld [vmem:[#allocation26 + $0x50] sm:$0xff]
    %v950 = vld [vmem:[#allocation26 + $0x58] sm:$0xff]
    %v951 = vld [vmem:[#allocation26 + $0x60] sm:$0xff]
    %v952 = vld [vmem:[#allocation26 + $0x68] sm:$0xff]
    %v953 = vld [vmem:[#allocation26 + $0x70] sm:$0xff]
    %v954 = vld [vmem:[#allocation26 + $0x78] sm:$0xff]
    %v955 = vld [vmem:[#allocation26 + $0x80] sm:$0xff]
    %v956 = vld [vmem:[#allocation26 + $0x88] sm:$0xff]
    %v957 = vld [vmem:[#allocation26 + $0x90] sm:$0xff]
    %v958 = vld [vmem:[#allocation26 + $0x98] sm:$0xff]
    %v959 = vld [vmem:[#allocation26 + $0xa0] sm:$0xff]
    %v960 = vld [vmem:[#allocation26 + $0xa8] sm:$0xff]
    %v961 = vld [vmem:[#allocation26 + $0xb0] sm:$0xff]
    %v962 = vld [vmem:[#allocation26 + $0xb8] sm:$0xff]
    %v963 = vld [vmem:[#allocation26 + $0xc0] sm:$0xff]
    %v964 = vld [vmem:[#allocation26 + $0xc8] sm:$0xff]
    %v965 = vld [vmem:[#allocation26 + $0xd0] sm:$0xff]
    %v966 = vld [vmem:[#allocation26 + $0xd8] sm:$0xff]
    %v967 = vld [vmem:[#allocation26 + $0xe0] sm:$0xff]
    %v968 = vld [vmem:[#allocation26 + $0xe8] sm:$0xff]
    %v969 = vld [vmem:[#allocation26 + $0xf0] sm:$0xff]
    %v970 = vld [vmem:[#allocation26 + $0xf8] sm:$0xff]
    %v971 = vld [vmem:[%s20] sm:$0x3]
    %v973 = vlaneseq
    %v974 = vshrl.u32 %v973, 7
    %v975 = vsub.s32 0, %v974
    %v976 = vrot.slane %v971, %v975
    %v977 = vlaneseq
    %v978 = vshrl.u32 %v977, 7
    %v979 = vsub.s32 1, %v978
    %v980 = vrot.slane %v971, %v979
    %v1015 = vunpack.c.l.b16 %v939
    %v1016 = vunpack.c.h.b16 %v939
    %v1017 = vunpack.c.l.b16 %v940
    %v1018 = vunpack.c.h.b16 %v940
    %v1019 = vunpack.c.l.b16 %v941
    %v1020 = vunpack.c.h.b16 %v941
    %v1021 = vunpack.c.l.b16 %v942
    %v1022 = vunpack.c.h.b16 %v942
    %v1023 = vunpack.c.l.b16 %v943
    %v1024 = vunpack.c.h.b16 %v943
    %v1025 = vunpack.c.l.b16 %v944
    %v1026 = vunpack.c.h.b16 %v944
    %v1027 = vunpack.c.l.b16 %v945
    %v1028 = vunpack.c.h.b16 %v945
    %v1029 = vunpack.c.l.b16 %v946
    %v1030 = vunpack.c.h.b16 %v946
    %v1031 = vunpack.c.l.b16 %v947
    %v1032 = vunpack.c.h.b16 %v947
    %v1033 = vunpack.c.l.b16 %v948
    %v1034 = vunpack.c.h.b16 %v948
    %v1035 = vunpack.c.l.b16 %v949
    %v1036 = vunpack.c.h.b16 %v949
    %v1037 = vunpack.c.l.b16 %v950
    %v1038 = vunpack.c.h.b16 %v950
    %v1039 = vunpack.c.l.b16 %v951
    %v1040 = vunpack.c.h.b16 %v951
    %v1041 = vunpack.c.l.b16 %v952
    %v1042 = vunpack.c.h.b16 %v952
    %v1043 = vunpack.c.l.b16 %v953
    %v1044 = vunpack.c.h.b16 %v953
    %v1045 = vunpack.c.l.b16 %v954
    %v1046 = vunpack.c.h.b16 %v954
    %v1047 = vunpack.c.l.b16 %v955
    %v1048 = vunpack.c.h.b16 %v955
    %v1049 = vunpack.c.l.b16 %v956
    %v1050 = vunpack.c.h.b16 %v956
    %v1051 = vunpack.c.l.b16 %v957
    %v1052 = vunpack.c.h.b16 %v957
    %v1053 = vunpack.c.l.b16 %v958
    %v1054 = vunpack.c.h.b16 %v958
    %v1055 = vunpack.c.l.b16 %v959
    %v1056 = vunpack.c.h.b16 %v959
    %v1057 = vunpack.c.l.b16 %v960
    %v1058 = vunpack.c.h.b16 %v960
    %v1059 = vunpack.c.l.b16 %v961
    %v1060 = vunpack.c.h.b16 %v961
    %v1061 = vunpack.c.l.b16 %v962
    %v1062 = vunpack.c.h.b16 %v962
    %v1063 = vunpack.c.l.b16 %v963
    %v1064 = vunpack.c.h.b16 %v963
    %v1065 = vunpack.c.l.b16 %v964
    %v1066 = vunpack.c.h.b16 %v964
    %v1067 = vunpack.c.l.b16 %v965
    %v1068 = vunpack.c.h.b16 %v965
    %v1069 = vunpack.c.l.b16 %v966
    %v1070 = vunpack.c.h.b16 %v966
    %v1071 = vunpack.c.l.b16 %v967
    %v1072 = vunpack.c.h.b16 %v967
    %v1073 = vunpack.c.l.b16 %v968
    %v1074 = vunpack.c.h.b16 %v968
    %v1075 = vunpack.c.l.b16 %v969
    %v1076 = vunpack.c.h.b16 %v969
    %v1077 = vunpack.c.l.b16 %v970
    %v1078 = vunpack.c.h.b16 %v970
    %v1079 = vpack.c.b16 %v1017, %v1015
    %v1080 = vpack.c.b16 %v1018, %v1016
    %v1081 = vpack.c.b16 %v1021, %v1019
    %v1082 = vpack.c.b16 %v1022, %v1020
    %v1083 = vpack.c.b16 %v1025, %v1023
    %v1084 = vpack.c.b16 %v1026, %v1024
    %v1085 = vpack.c.b16 %v1029, %v1027
    %v1086 = vpack.c.b16 %v1030, %v1028
    %v1087 = vpack.c.b16 %v1033, %v1031
    %v1088 = vpack.c.b16 %v1034, %v1032
    %v1089 = vpack.c.b16 %v1037, %v1035
    %v1090 = vpack.c.b16 %v1038, %v1036
    %v1091 = vpack.c.b16 %v1041, %v1039
    %v1092 = vpack.c.b16 %v1042, %v1040
    %v1093 = vpack.c.b16 %v1045, %v1043
    %v1094 = vpack.c.b16 %v1046, %v1044
    %v1095 = vpack.c.b16 %v1049, %v1047
    %v1096 = vpack.c.b16 %v1050, %v1048
    %v1097 = vpack.c.b16 %v1053, %v1051
    %v1098 = vpack.c.b16 %v1054, %v1052
    %v1099 = vpack.c.b16 %v1057, %v1055
    %v1100 = vpack.c.b16 %v1058, %v1056
    %v1101 = vpack.c.b16 %v1061, %v1059
    %v1102 = vpack.c.b16 %v1062, %v1060
    %v1103 = vpack.c.b16 %v1065, %v1063
    %v1104 = vpack.c.b16 %v1066, %v1064
    %v1105 = vpack.c.b16 %v1069, %v1067
    %v1106 = vpack.c.b16 %v1070, %v1068
    %v1107 = vpack.c.b16 %v1073, %v1071
    %v1108 = vpack.c.b16 %v1074, %v1072
    %v1109 = vpack.c.b16 %v1077, %v1075
    %v1110 = vpack.c.b16 %v1078, %v1076
    %1143 = vmatprep.subr.bf16.mxu0 %v1094
    %1144 = vmatpush1.bf16.msra.mxu0 %v1093
    %1145 = vmatprep.subr.bf16.mxu0 %v1092
    %1146 = vmatpush1.bf16.msra.mxu0 %v1091
    %1147 = vmatprep.subr.bf16.mxu0 %v1090
    %1148 = vmatpush1.bf16.msra.mxu0 %v1089
    %1149 = vmatprep.subr.bf16.mxu0 %v1088
    %1150 = vmatpush1.bf16.msra.mxu0 %v1087
    %1151 = vmatprep.subr.bf16.mxu0 %v1086
    %1152 = vmatpush1.bf16.msra.mxu0 %v1085
    %1153 = vmatprep.subr.bf16.mxu0 %v1084
    %1154 = vmatpush1.bf16.msra.mxu0 %v1083
    %1155 = vmatprep.subr.bf16.mxu0 %v1082
    %1156 = vmatpush1.bf16.msra.mxu0 %v1081
    %1157 = vmatprep.subr.bf16.mxu0 %v1080
    %1158 = vmatpush1.bf16.msra.mxu0 %v1079
    %1159 = vmatprep.subr.bf16.mxu0 %v1110
    %1160 = vmatpush2.bf16.msra.mxu0 %v1109
    %1161 = vmatprep.subr.bf16.mxu0 %v1108
    %1162 = vmatpush2.bf16.msra.mxu0 %v1107
    %1163 = vmatprep.subr.bf16.mxu0 %v1106
    %1164 = vmatpush2.bf16.msra.mxu0 %v1105
    %1165 = vmatprep.subr.bf16.mxu0 %v1104
    %1166 = vmatpush2.bf16.msra.mxu0 %v1103
    %1167 = vmatprep.subr.bf16.mxu0 %v1102
    %1168 = vmatpush2.bf16.msra.mxu0 %v1101
    %1169 = vmatprep.subr.bf16.mxu0 %v1100
    %1170 = vmatpush2.bf16.msra.mxu0 %v1099
    %1171 = vmatprep.subr.bf16.mxu0 %v1098
    %1172 = vmatpush2.bf16.msra.mxu0 %v1097
    %1173 = vmatprep.subr.bf16.mxu0 %v1096
    %1174 = vmatpush2.bf16.msra.mxu0 %v1095
    %1175 = vmatprep.mubr.bf16.mxu0 %v938
    %1176 = vmatmul.mubr.bf16.gmra.mxu0 %v937
    %v1177 = vpop.f32.mrf.mxu0
    %v1178 = vadd.f32 %v976, %v1177
    %v1179 = vpop.f32.mrf.mxu0
    %v1180 = vadd.f32 %v980, %v1179
    %v1181 = vpop.f32.mrf.mxu0
    %v1182 = vpop.f32.mrf.mxu0
    %1183 = vdwg.mxu0
    %v1184 = vmax.f32 %v1178, 0.0
    %v1185 = vmax.f32 %v1180, 0.0
    %v1186 = vpack.c.bf16 %v1184, %v1184
    %v1187 = vpack.c.bf16 %v1185, %v1185
    %v1188 = vld [vmem:[#allocation27] sm:$0xff]
    %v1189 = vld [vmem:[#allocation27 + $0x8] sm:$0xff]
    %v1190 = vld [vmem:[#allocation27 + $0x10] sm:$0xff]
    %v1191 = vld [vmem:[#allocation27 + $0x18] sm:$0xff]
    %v1192 = vld [vmem:[#allocation27 + $0x20] sm:$0xff]
    %v1193 = vld [vmem:[#allocation27 + $0x28] sm:$0xff]
    %v1194 = vld [vmem:[#allocation27 + $0x30] sm:$0xff]
    %v1195 = vld [vmem:[#allocation27 + $0x38] sm:$0xff]
    %v1196 = vld [vmem:[#allocation27 + $0x40] sm:$0xff]
    %v1197 = vld [vmem:[#allocation27 + $0x48] sm:$0xff]
    %v1198 = vld [vmem:[#allocation27 + $0x50] sm:$0xff]
    %v1199 = vld [vmem:[#allocation27 + $0x58] sm:$0xff]
    %v1200 = vld [vmem:[#allocation27 + $0x60] sm:$0xff]
    %v1201 = vld [vmem:[#allocation27 + $0x68] sm:$0xff]
    %v1202 = vld [vmem:[#allocation27 + $0x70] sm:$0xff]
    %v1203 = vld [vmem:[#allocation27 + $0x78] sm:$0xff]
    %v1204 = vld [vmem:[#allocation27 + $0x80] sm:$0xff]
    %v1205 = vld [vmem:[#allocation27 + $0x88] sm:$0xff]
    %v1206 = vld [vmem:[#allocation27 + $0x90] sm:$0xff]
    %v1207 = vld [vmem:[#allocation27 + $0x98] sm:$0xff]
    %v1208 = vld [vmem:[#allocation27 + $0xa0] sm:$0xff]
    %v1209 = vld [vmem:[#allocation27 + $0xa8] sm:$0xff]
    %v1210 = vld [vmem:[#allocation27 + $0xb0] sm:$0xff]
    %v1211 = vld [vmem:[#allocation27 + $0xb8] sm:$0xff]
    %v1212 = vld [vmem:[#allocation27 + $0xc0] sm:$0xff]
    %v1213 = vld [vmem:[#allocation27 + $0xc8] sm:$0xff]
    %v1214 = vld [vmem:[#allocation27 + $0xd0] sm:$0xff]
    %v1215 = vld [vmem:[#allocation27 + $0xd8] sm:$0xff]
    %v1216 = vld [vmem:[#allocation27 + $0xe0] sm:$0xff]
    %v1217 = vld [vmem:[#allocation27 + $0xe8] sm:$0xff]
    %v1218 = vld [vmem:[#allocation27 + $0xf0] sm:$0xff]
    %v1219 = vld [vmem:[#allocation27 + $0xf8] sm:$0xff]
    %v1220 = vld [vmem:[%s22] sm:$0x3]
    %v1222 = vlaneseq
    %v1223 = vshrl.u32 %v1222, 7
    %v1224 = vsub.s32 0, %v1223
    %v1225 = vrot.slane %v1220, %v1224
    %v1226 = vlaneseq
    %v1227 = vshrl.u32 %v1226, 7
    %v1228 = vsub.s32 1, %v1227
    %v1229 = vrot.slane %v1220, %v1228
    %v1264 = vunpack.c.l.b16 %v1188
    %v1265 = vunpack.c.h.b16 %v1188
    %v1266 = vunpack.c.l.b16 %v1189
    %v1267 = vunpack.c.h.b16 %v1189
    %v1268 = vunpack.c.l.b16 %v1190
    %v1269 = vunpack.c.h.b16 %v1190
    %v1270 = vunpack.c.l.b16 %v1191
    %v1271 = vunpack.c.h.b16 %v1191
    %v1272 = vunpack.c.l.b16 %v1192
    %v1273 = vunpack.c.h.b16 %v1192
    %v1274 = vunpack.c.l.b16 %v1193
    %v1275 = vunpack.c.h.b16 %v1193
    %v1276 = vunpack.c.l.b16 %v1194
    %v1277 = vunpack.c.h.b16 %v1194
    %v1278 = vunpack.c.l.b16 %v1195
    %v1279 = vunpack.c.h.b16 %v1195
    %v1280 = vunpack.c.l.b16 %v1196
    %v1281 = vunpack.c.h.b16 %v1196
    %v1282 = vunpack.c.l.b16 %v1197
    %v1283 = vunpack.c.h.b16 %v1197
    %v1284 = vunpack.c.l.b16 %v1198
    %v1285 = vunpack.c.h.b16 %v1198
    %v1286 = vunpack.c.l.b16 %v1199
    %v1287 = vunpack.c.h.b16 %v1199
    %v1288 = vunpack.c.l.b16 %v1200
    %v1289 = vunpack.c.h.b16 %v1200
    %v1290 = vunpack.c.l.b16 %v1201
    %v1291 = vunpack.c.h.b16 %v1201
    %v1292 = vunpack.c.l.b16 %v1202
    %v1293 = vunpack.c.h.b16 %v1202
    %v1294 = vunpack.c.l.b16 %v1203
    %v1295 = vunpack.c.h.b16 %v1203
    %v1296 = vunpack.c.l.b16 %v1204
    %v1297 = vunpack.c.h.b16 %v1204
    %v1298 = vunpack.c.l.b16 %v1205
    %v1299 = vunpack.c.h.b16 %v1205
    %v1300 = vunpack.c.l.b16 %v1206
    %v1301 = vunpack.c.h.b16 %v1206
    %v1302 = vunpack.c.l.b16 %v1207
    %v1303 = vunpack.c.h.b16 %v1207
    %v1304 = vunpack.c.l.b16 %v1208
    %v1305 = vunpack.c.h.b16 %v1208
    %v1306 = vunpack.c.l.b16 %v1209
    %v1307 = vunpack.c.h.b16 %v1209
    %v1308 = vunpack.c.l.b16 %v1210
    %v1309 = vunpack.c.h.b16 %v1210
    %v1310 = vunpack.c.l.b16 %v1211
    %v1311 = vunpack.c.h.b16 %v1211
    %v1312 = vunpack.c.l.b16 %v1212
    %v1313 = vunpack.c.h.b16 %v1212
    %v1314 = vunpack.c.l.b16 %v1213
    %v1315 = vunpack.c.h.b16 %v1213
    %v1316 = vunpack.c.l.b16 %v1214
    %v1317 = vunpack.c.h.b16 %v1214
    %v1318 = vunpack.c.l.b16 %v1215
    %v1319 = vunpack.c.h.b16 %v1215
    %v1320 = vunpack.c.l.b16 %v1216
    %v1321 = vunpack.c.h.b16 %v1216
    %v1322 = vunpack.c.l.b16 %v1217
    %v1323 = vunpack.c.h.b16 %v1217
    %v1324 = vunpack.c.l.b16 %v1218
    %v1325 = vunpack.c.h.b16 %v1218
    %v1326 = vunpack.c.l.b16 %v1219
    %v1327 = vunpack.c.h.b16 %v1219
    %v1328 = vpack.c.b16 %v1266, %v1264
    %v1329 = vpack.c.b16 %v1267, %v1265
    %v1330 = vpack.c.b16 %v1270, %v1268
    %v1331 = vpack.c.b16 %v1271, %v1269
    %v1332 = vpack.c.b16 %v1274, %v1272
    %v1333 = vpack.c.b16 %v1275, %v1273
    %v1334 = vpack.c.b16 %v1278, %v1276
    %v1335 = vpack.c.b16 %v1279, %v1277
    %v1336 = vpack.c.b16 %v1282, %v1280
    %v1337 = vpack.c.b16 %v1283, %v1281
    %v1338 = vpack.c.b16 %v1286, %v1284
    %v1339 = vpack.c.b16 %v1287, %v1285
    %v1340 = vpack.c.b16 %v1290, %v1288
    %v1341 = vpack.c.b16 %v1291, %v1289
    %v1342 = vpack.c.b16 %v1294, %v1292
    %v1343 = vpack.c.b16 %v1295, %v1293
    %v1344 = vpack.c.b16 %v1298, %v1296
    %v1345 = vpack.c.b16 %v1299, %v1297
    %v1346 = vpack.c.b16 %v1302, %v1300
    %v1347 = vpack.c.b16 %v1303, %v1301
    %v1348 = vpack.c.b16 %v1306, %v1304
    %v1349 = vpack.c.b16 %v1307, %v1305
    %v1350 = vpack.c.b16 %v1310, %v1308
    %v1351 = vpack.c.b16 %v1311, %v1309
    %v1352 = vpack.c.b16 %v1314, %v1312
    %v1353 = vpack.c.b16 %v1315, %v1313
    %v1354 = vpack.c.b16 %v1318, %v1316
    %v1355 = vpack.c.b16 %v1319, %v1317
    %v1356 = vpack.c.b16 %v1322, %v1320
    %v1357 = vpack.c.b16 %v1323, %v1321
    %v1358 = vpack.c.b16 %v1326, %v1324
    %v1359 = vpack.c.b16 %v1327, %v1325
    %1392 = vmatprep.subr.bf16.mxu0 %v1343
    %1393 = vmatpush1.bf16.msra.mxu0 %v1342
    %1394 = vmatprep.subr.bf16.mxu0 %v1341
    %1395 = vmatpush1.bf16.msra.mxu0 %v1340
    %1396 = vmatprep.subr.bf16.mxu0 %v1339
    %1397 = vmatpush1.bf16.msra.mxu0 %v1338
    %1398 = vmatprep.subr.bf16.mxu0 %v1337
    %1399 = vmatpush1.bf16.msra.mxu0 %v1336
    %1400 = vmatprep.subr.bf16.mxu0 %v1335
    %1401 = vmatpush1.bf16.msra.mxu0 %v1334
    %1402 = vmatprep.subr.bf16.mxu0 %v1333
    %1403 = vmatpush1.bf16.msra.mxu0 %v1332
    %1404 = vmatprep.subr.bf16.mxu0 %v1331
    %1405 = vmatpush1.bf16.msra.mxu0 %v1330
    %1406 = vmatprep.subr.bf16.mxu0 %v1329
    %1407 = vmatpush1.bf16.msra.mxu0 %v1328
    %1408 = vmatprep.subr.bf16.mxu0 %v1359
    %1409 = vmatpush2.bf16.msra.mxu0 %v1358
    %1410 = vmatprep.subr.bf16.mxu0 %v1357
    %1411 = vmatpush2.bf16.msra.mxu0 %v1356
    %1412 = vmatprep.subr.bf16.mxu0 %v1355
    %1413 = vmatpush2.bf16.msra.mxu0 %v1354
    %1414 = vmatprep.subr.bf16.mxu0 %v1353
    %1415 = vmatpush2.bf16.msra.mxu0 %v1352
    %1416 = vmatprep.subr.bf16.mxu0 %v1351
    %1417 = vmatpush2.bf16.msra.mxu0 %v1350
    %1418 = vmatprep.subr.bf16.mxu0 %v1349
    %1419 = vmatpush2.bf16.msra.mxu0 %v1348
    %1420 = vmatprep.subr.bf16.mxu0 %v1347
    %1421 = vmatpush2.bf16.msra.mxu0 %v1346
    %1422 = vmatprep.subr.bf16.mxu0 %v1345
    %1423 = vmatpush2.bf16.msra.mxu0 %v1344
    %1424 = vmatprep.mubr.bf16.mxu0 %v1187
    %1425 = vmatmul.mubr.bf16.gmra.mxu0 %v1186
    %v1426 = vpop.f32.mrf.mxu0
    %v1427 = vadd.f32 %v1225, %v1426
    %v1428 = vpop.f32.mrf.mxu0
    %v1429 = vadd.f32 %v1229, %v1428
    %v1430 = vpop.f32.mrf.mxu0
    %v1431 = vpop.f32.mrf.mxu0
    %1432 = vdwg.mxu0
    %v1433 = vmax.f32 %v1427, 0.0
    %v1434 = vmax.f32 %v1429, 0.0
    %v1435 = vpack.c.bf16 %v1433, %v1433
    %v1436 = vpack.c.bf16 %v1434, %v1434
    %v1437 = vld [vmem:[#allocation29] sm:$0xff]
    %v1438 = vld [vmem:[#allocation29 + $0x8] sm:$0xff]
    %v1439 = vld [vmem:[#allocation29 + $0x10] sm:$0xff]
    %v1440 = vld [vmem:[#allocation29 + $0x18] sm:$0xff]
    %v1441 = vld [vmem:[#allocation29 + $0x20] sm:$0xff]
    %v1442 = vld [vmem:[#allocation29 + $0x28] sm:$0xff]
    %v1443 = vld [vmem:[#allocation29 + $0x30] sm:$0xff]
    %v1444 = vld [vmem:[#allocation29 + $0x38] sm:$0xff]
    %v1445 = vld [vmem:[#allocation29 + $0x40] sm:$0xff]
    %v1446 = vld [vmem:[#allocation29 + $0x48] sm:$0xff]
    %v1447 = vld [vmem:[#allocation29 + $0x50] sm:$0xff]
    %v1448 = vld [vmem:[#allocation29 + $0x58] sm:$0xff]
    %v1449 = vld [vmem:[#allocation29 + $0x60] sm:$0xff]
    %v1450 = vld [vmem:[#allocation29 + $0x68] sm:$0xff]
    %v1451 = vld [vmem:[#allocation29 + $0x70] sm:$0xff]
    %v1452 = vld [vmem:[#allocation29 + $0x78] sm:$0xff]
    %v1453 = vld [vmem:[#allocation29 + $0x80] sm:$0xff]
    %v1454 = vld [vmem:[#allocation29 + $0x88] sm:$0xff]
    %v1455 = vld [vmem:[#allocation29 + $0x90] sm:$0xff]
    %v1456 = vld [vmem:[#allocation29 + $0x98] sm:$0xff]
    %v1457 = vld [vmem:[#allocation29 + $0xa0] sm:$0xff]
    %v1458 = vld [vmem:[#allocation29 + $0xa8] sm:$0xff]
    %v1459 = vld [vmem:[#allocation29 + $0xb0] sm:$0xff]
    %v1460 = vld [vmem:[#allocation29 + $0xb8] sm:$0xff]
    %v1461 = vld [vmem:[#allocation29 + $0xc0] sm:$0xff]
    %v1462 = vld [vmem:[#allocation29 + $0xc8] sm:$0xff]
    %v1463 = vld [vmem:[#allocation29 + $0xd0] sm:$0xff]
    %v1464 = vld [vmem:[#allocation29 + $0xd8] sm:$0xff]
    %v1465 = vld [vmem:[#allocation29 + $0xe0] sm:$0xff]
    %v1466 = vld [vmem:[#allocation29 + $0xe8] sm:$0xff]
    %v1467 = vld [vmem:[#allocation29 + $0xf0] sm:$0xff]
    %v1468 = vld [vmem:[#allocation29 + $0xf8] sm:$0xff]
    %v1469 = vld [vmem:[%s24] sm:$0x3]
    %v1471 = vlaneseq
    %v1472 = vshrl.u32 %v1471, 7
    %v1473 = vsub.s32 0, %v1472
    %v1474 = vrot.slane %v1469, %v1473
    %v1475 = vlaneseq
    %v1476 = vshrl.u32 %v1475, 7
    %v1477 = vsub.s32 1, %v1476
    %v1478 = vrot.slane %v1469, %v1477
    %v1513 = vunpack.c.l.b16 %v1437
    %v1514 = vunpack.c.h.b16 %v1437
    %v1515 = vunpack.c.l.b16 %v1438
    %v1516 = vunpack.c.h.b16 %v1438
    %v1517 = vunpack.c.l.b16 %v1439
    %v1518 = vunpack.c.h.b16 %v1439
    %v1519 = vunpack.c.l.b16 %v1440
    %v1520 = vunpack.c.h.b16 %v1440
    %v1521 = vunpack.c.l.b16 %v1441
    %v1522 = vunpack.c.h.b16 %v1441
    %v1523 = vunpack.c.l.b16 %v1442
    %v1524 = vunpack.c.h.b16 %v1442
    %v1525 = vunpack.c.l.b16 %v1443
    %v1526 = vunpack.c.h.b16 %v1443
    %v1527 = vunpack.c.l.b16 %v1444
    %v1528 = vunpack.c.h.b16 %v1444
    %v1529 = vunpack.c.l.b16 %v1445
    %v1530 = vunpack.c.h.b16 %v1445
    %v1531 = vunpack.c.l.b16 %v1446
    %v1532 = vunpack.c.h.b16 %v1446
    %v1533 = vunpack.c.l.b16 %v1447
    %v1534 = vunpack.c.h.b16 %v1447
    %v1535 = vunpack.c.l.b16 %v1448
    %v1536 = vunpack.c.h.b16 %v1448
    %v1537 = vunpack.c.l.b16 %v1449
    %v1538 = vunpack.c.h.b16 %v1449
    %v1539 = vunpack.c.l.b16 %v1450
    %v1540 = vunpack.c.h.b16 %v1450
    %v1541 = vunpack.c.l.b16 %v1451
    %v1542 = vunpack.c.h.b16 %v1451
    %v1543 = vunpack.c.l.b16 %v1452
    %v1544 = vunpack.c.h.b16 %v1452
    %v1545 = vunpack.c.l.b16 %v1453
    %v1546 = vunpack.c.h.b16 %v1453
    %v1547 = vunpack.c.l.b16 %v1454
    %v1548 = vunpack.c.h.b16 %v1454
    %v1549 = vunpack.c.l.b16 %v1455
    %v1550 = vunpack.c.h.b16 %v1455
    %v1551 = vunpack.c.l.b16 %v1456
    %v1552 = vunpack.c.h.b16 %v1456
    %v1553 = vunpack.c.l.b16 %v1457
    %v1554 = vunpack.c.h.b16 %v1457
    %v1555 = vunpack.c.l.b16 %v1458
    %v1556 = vunpack.c.h.b16 %v1458
    %v1557 = vunpack.c.l.b16 %v1459
    %v1558 = vunpack.c.h.b16 %v1459
    %v1559 = vunpack.c.l.b16 %v1460
    %v1560 = vunpack.c.h.b16 %v1460
    %v1561 = vunpack.c.l.b16 %v1461
    %v1562 = vunpack.c.h.b16 %v1461
    %v1563 = vunpack.c.l.b16 %v1462
    %v1564 = vunpack.c.h.b16 %v1462
    %v1565 = vunpack.c.l.b16 %v1463
    %v1566 = vunpack.c.h.b16 %v1463
    %v1567 = vunpack.c.l.b16 %v1464
    %v1568 = vunpack.c.h.b16 %v1464
    %v1569 = vunpack.c.l.b16 %v1465
    %v1570 = vunpack.c.h.b16 %v1465
    %v1571 = vunpack.c.l.b16 %v1466
    %v1572 = vunpack.c.h.b16 %v1466
    %v1573 = vunpack.c.l.b16 %v1467
    %v1574 = vunpack.c.h.b16 %v1467
    %v1575 = vunpack.c.l.b16 %v1468
    %v1576 = vunpack.c.h.b16 %v1468
    %v1577 = vpack.c.b16 %v1515, %v1513
    %v1578 = vpack.c.b16 %v1516, %v1514
    %v1579 = vpack.c.b16 %v1519, %v1517
    %v1580 = vpack.c.b16 %v1520, %v1518
    %v1581 = vpack.c.b16 %v1523, %v1521
    %v1582 = vpack.c.b16 %v1524, %v1522
    %v1583 = vpack.c.b16 %v1527, %v1525
    %v1584 = vpack.c.b16 %v1528, %v1526
    %v1585 = vpack.c.b16 %v1531, %v1529
    %v1586 = vpack.c.b16 %v1532, %v1530
    %v1587 = vpack.c.b16 %v1535, %v1533
    %v1588 = vpack.c.b16 %v1536, %v1534
    %v1589 = vpack.c.b16 %v1539, %v1537
    %v1590 = vpack.c.b16 %v1540, %v1538
    %v1591 = vpack.c.b16 %v1543, %v1541
    %v1592 = vpack.c.b16 %v1544, %v1542
    %v1593 = vpack.c.b16 %v1547, %v1545
    %v1594 = vpack.c.b16 %v1548, %v1546
    %v1595 = vpack.c.b16 %v1551, %v1549
    %v1596 = vpack.c.b16 %v1552, %v1550
    %v1597 = vpack.c.b16 %v1555, %v1553
    %v1598 = vpack.c.b16 %v1556, %v1554
    %v1599 = vpack.c.b16 %v1559, %v1557
    %v1600 = vpack.c.b16 %v1560, %v1558
    %v1601 = vpack.c.b16 %v1563, %v1561
    %v1602 = vpack.c.b16 %v1564, %v1562
    %v1603 = vpack.c.b16 %v1567, %v1565
    %v1604 = vpack.c.b16 %v1568, %v1566
    %v1605 = vpack.c.b16 %v1571, %v1569
    %v1606 = vpack.c.b16 %v1572, %v1570
    %v1607 = vpack.c.b16 %v1575, %v1573
    %v1608 = vpack.c.b16 %v1576, %v1574
    %1641 = vmatprep.subr.bf16.mxu0 %v1592
    %1642 = vmatpush1.bf16.msra.mxu0 %v1591
    %1643 = vmatprep.subr.bf16.mxu0 %v1590
    %1644 = vmatpush1.bf16.msra.mxu0 %v1589
    %1645 = vmatprep.subr.bf16.mxu0 %v1588
    %1646 = vmatpush1.bf16.msra.mxu0 %v1587
    %1647 = vmatprep.subr.bf16.mxu0 %v1586
    %1648 = vmatpush1.bf16.msra.mxu0 %v1585
    %1649 = vmatprep.subr.bf16.mxu0 %v1584
    %1650 = vmatpush1.bf16.msra.mxu0 %v1583
    %1651 = vmatprep.subr.bf16.mxu0 %v1582
    %1652 = vmatpush1.bf16.msra.mxu0 %v1581
    %1653 = vmatprep.subr.bf16.mxu0 %v1580
    %1654 = vmatpush1.bf16.msra.mxu0 %v1579
    %1655 = vmatprep.subr.bf16.mxu0 %v1578
    %1656 = vmatpush1.bf16.msra.mxu0 %v1577
    %1657 = vmatprep.subr.bf16.mxu0 %v1608
    %1658 = vmatpush2.bf16.msra.mxu0 %v1607
    %1659 = vmatprep.subr.bf16.mxu0 %v1606
    %1660 = vmatpush2.bf16.msra.mxu0 %v1605
    %1661 = vmatprep.subr.bf16.mxu0 %v1604
    %1662 = vmatpush2.bf16.msra.mxu0 %v1603
    %1663 = vmatprep.subr.bf16.mxu0 %v1602
    %1664 = vmatpush2.bf16.msra.mxu0 %v1601
    %1665 = vmatprep.subr.bf16.mxu0 %v1600
    %1666 = vmatpush2.bf16.msra.mxu0 %v1599
    %1667 = vmatprep.subr.bf16.mxu0 %v1598
    %1668 = vmatpush2.bf16.msra.mxu0 %v1597
    %1669 = vmatprep.subr.bf16.mxu0 %v1596
    %1670 = vmatpush2.bf16.msra.mxu0 %v1595
    %1671 = vmatprep.subr.bf16.mxu0 %v1594
    %1672 = vmatpush2.bf16.msra.mxu0 %v1593
    %1673 = vmatprep.mubr.bf16.mxu0 %v1436
    %1674 = vmatmul.mubr.bf16.gmra.mxu0 %v1435
    %v1675 = vpop.f32.mrf.mxu0
    %v1676 = vadd.f32 %v1474, %v1675
    %v1677 = vpop.f32.mrf.mxu0
    %v1678 = vadd.f32 %v1478, %v1677
    %v1679 = vpop.f32.mrf.mxu0
    %v1680 = vpop.f32.mrf.mxu0
    %1681 = vdwg.mxu0
    %v1682 = vmax.f32 %v1676, 0.0
    %v1683 = vmax.f32 %v1678, 0.0
    %v1684 = vld [vmem:[#allocation30] sm:$0xff]
    %v1685 = vld [vmem:[#allocation30 + $0x8] sm:$0xff]
    %v1686 = vld [vmem:[#allocation30 + $0x10] sm:$0xff]
    %v1687 = vld [vmem:[#allocation30 + $0x18] sm:$0xff]
    %v1688 = vld [vmem:[#allocation30 + $0x20] sm:$0xff]
    %v1689 = vld [vmem:[#allocation30 + $0x28] sm:$0xff]
    %v1690 = vld [vmem:[#allocation30 + $0x30] sm:$0xff]
    %v1691 = vld [vmem:[#allocation30 + $0x38] sm:$0xff]
    %v1692 = vld [vmem:[#allocation30 + $0x40] sm:$0xff]
    %v1693 = vld [vmem:[#allocation30 + $0x48] sm:$0xff]
    %v1694 = vld [vmem:[#allocation30 + $0x50] sm:$0xff]
    %v1695 = vld [vmem:[#allocation30 + $0x58] sm:$0xff]
    %v1696 = vld [vmem:[#allocation30 + $0x60] sm:$0xff]
    %v1697 = vld [vmem:[#allocation30 + $0x68] sm:$0xff]
    %v1698 = vld [vmem:[#allocation30 + $0x70] sm:$0xff]
    %v1699 = vld [vmem:[#allocation30 + $0x78] sm:$0xff]
    %v1700 = vld [vmem:[#allocation30 + $0x80] sm:$0xff]
    %v1701 = vld [vmem:[#allocation30 + $0x88] sm:$0xff]
    %v1702 = vld [vmem:[#allocation30 + $0x90] sm:$0xff]
    %v1703 = vld [vmem:[#allocation30 + $0x98] sm:$0xff]
    %v1704 = vld [vmem:[#allocation30 + $0xa0] sm:$0xff]
    %v1705 = vld [vmem:[#allocation30 + $0xa8] sm:$0xff]
    %v1706 = vld [vmem:[#allocation30 + $0xb0] sm:$0xff]
    %v1707 = vld [vmem:[#allocation30 + $0xb8] sm:$0xff]
    %v1708 = vld [vmem:[#allocation30 + $0xc0] sm:$0xff]
    %v1709 = vld [vmem:[#allocation30 + $0xc8] sm:$0xff]
    %v1710 = vld [vmem:[#allocation30 + $0xd0] sm:$0xff]
    %v1711 = vld [vmem:[#allocation30 + $0xd8] sm:$0xff]
    %v1712 = vld [vmem:[#allocation30 + $0xe0] sm:$0xff]
    %v1713 = vld [vmem:[#allocation30 + $0xe8] sm:$0xff]
    %v1714 = vld [vmem:[#allocation30 + $0xf0] sm:$0xff]
    %v1715 = vld [vmem:[#allocation30 + $0xf8] sm:$0xff]
    %v1716 = vld [vmem:[%s26] sm:$0x3]
    %v1718 = vlaneseq
    %v1719 = vshrl.u32 %v1718, 7
    %v1720 = vsub.s32 0, %v1719
    %v1721 = vrot.slane %v1716, %v1720
    %v1722 = vlaneseq
    %v1723 = vshrl.u32 %v1722, 7
    %v1724 = vsub.s32 1, %v1723
    %v1725 = vrot.slane %v1716, %v1724
    %v1760 = vunpack.c.l.b16 %v1684
    %v1761 = vunpack.c.h.b16 %v1684
    %v1762 = vunpack.c.l.b16 %v1685
    %v1763 = vunpack.c.h.b16 %v1685
    %v1764 = vunpack.c.l.b16 %v1686
    %v1765 = vunpack.c.h.b16 %v1686
    %v1766 = vunpack.c.l.b16 %v1687
    %v1767 = vunpack.c.h.b16 %v1687
    %v1768 = vunpack.c.l.b16 %v1688
    %v1769 = vunpack.c.h.b16 %v1688
    %v1770 = vunpack.c.l.b16 %v1689
    %v1771 = vunpack.c.h.b16 %v1689
    %v1772 = vunpack.c.l.b16 %v1690
    %v1773 = vunpack.c.h.b16 %v1690
    %v1774 = vunpack.c.l.b16 %v1691
    %v1775 = vunpack.c.h.b16 %v1691
    %v1776 = vunpack.c.l.b16 %v1692
    %v1777 = vunpack.c.h.b16 %v1692
    %v1778 = vunpack.c.l.b16 %v1693
    %v1779 = vunpack.c.h.b16 %v1693
    %v1780 = vunpack.c.l.b16 %v1694
    %v1781 = vunpack.c.h.b16 %v1694
    %v1782 = vunpack.c.l.b16 %v1695
    %v1783 = vunpack.c.h.b16 %v1695
    %v1784 = vunpack.c.l.b16 %v1696
    %v1785 = vunpack.c.h.b16 %v1696
    %v1786 = vunpack.c.l.b16 %v1697
    %v1787 = vunpack.c.h.b16 %v1697
    %v1788 = vunpack.c.l.b16 %v1698
    %v1789 = vunpack.c.h.b16 %v1698
    %v1790 = vunpack.c.l.b16 %v1699
    %v1791 = vunpack.c.h.b16 %v1699
    %v1792 = vunpack.c.l.b16 %v1700
    %v1793 = vunpack.c.h.b16 %v1700
    %v1794 = vunpack.c.l.b16 %v1701
    %v1795 = vunpack.c.h.b16 %v1701
    %v1796 = vunpack.c.l.b16 %v1702
    %v1797 = vunpack.c.h.b16 %v1702
    %v1798 = vunpack.c.l.b16 %v1703
    %v1799 = vunpack.c.h.b16 %v1703
    %v1800 = vunpack.c.l.b16 %v1704
    %v1801 = vunpack.c.h.b16 %v1704
    %v1802 = vunpack.c.l.b16 %v1705
    %v1803 = vunpack.c.h.b16 %v1705
    %v1804 = vunpack.c.l.b16 %v1706
    %v1805 = vunpack.c.h.b16 %v1706
    %v1806 = vunpack.c.l.b16 %v1707
    %v1807 = vunpack.c.h.b16 %v1707
    %v1808 = vunpack.c.l.b16 %v1708
    %v1809 = vunpack.c.h.b16 %v1708
    %v1810 = vunpack.c.l.b16 %v1709
    %v1811 = vunpack.c.h.b16 %v1709
    %v1812 = vunpack.c.l.b16 %v1710
    %v1813 = vunpack.c.h.b16 %v1710
    %v1814 = vunpack.c.l.b16 %v1711
    %v1815 = vunpack.c.h.b16 %v1711
    %v1816 = vunpack.c.l.b16 %v1712
    %v1817 = vunpack.c.h.b16 %v1712
    %v1818 = vunpack.c.l.b16 %v1713
    %v1819 = vunpack.c.h.b16 %v1713
    %v1820 = vunpack.c.l.b16 %v1714
    %v1821 = vunpack.c.h.b16 %v1714
    %v1822 = vunpack.c.l.b16 %v1715
    %v1823 = vunpack.c.h.b16 %v1715
    %v1824 = vpack.c.b16 %v1762, %v1760
    %v1825 = vpack.c.b16 %v1763, %v1761
    %v1826 = vpack.c.b16 %v1766, %v1764
    %v1827 = vpack.c.b16 %v1767, %v1765
    %v1828 = vpack.c.b16 %v1770, %v1768
    %v1829 = vpack.c.b16 %v1771, %v1769
    %v1830 = vpack.c.b16 %v1774, %v1772
    %v1831 = vpack.c.b16 %v1775, %v1773
    %v1832 = vpack.c.b16 %v1778, %v1776
    %v1833 = vpack.c.b16 %v1779, %v1777
    %v1834 = vpack.c.b16 %v1782, %v1780
    %v1835 = vpack.c.b16 %v1783, %v1781
    %v1836 = vpack.c.b16 %v1786, %v1784
    %v1837 = vpack.c.b16 %v1787, %v1785
    %v1838 = vpack.c.b16 %v1790, %v1788
    %v1839 = vpack.c.b16 %v1791, %v1789
    %v1840 = vpack.c.b16 %v1794, %v1792
    %v1841 = vpack.c.b16 %v1795, %v1793
    %v1842 = vpack.c.b16 %v1798, %v1796
    %v1843 = vpack.c.b16 %v1799, %v1797
    %v1844 = vpack.c.b16 %v1802, %v1800
    %v1845 = vpack.c.b16 %v1803, %v1801
    %v1846 = vpack.c.b16 %v1806, %v1804
    %v1847 = vpack.c.b16 %v1807, %v1805
    %v1848 = vpack.c.b16 %v1810, %v1808
    %v1849 = vpack.c.b16 %v1811, %v1809
    %v1850 = vpack.c.b16 %v1814, %v1812
    %v1851 = vpack.c.b16 %v1815, %v1813
    %v1852 = vpack.c.b16 %v1818, %v1816
    %v1853 = vpack.c.b16 %v1819, %v1817
    %v1854 = vpack.c.b16 %v1822, %v1820
    %v1855 = vpack.c.b16 %v1823, %v1821
    %1888 = vmatprep.subr.bf16.mxu0 %v1839
    %1889 = vmatpush1.bf16.msra.mxu0 %v1838
    %1890 = vmatprep.subr.bf16.mxu0 %v1837
    %1891 = vmatpush1.bf16.msra.mxu0 %v1836
    %1892 = vmatprep.subr.bf16.mxu0 %v1835
    %1893 = vmatpush1.bf16.msra.mxu0 %v1834
    %1894 = vmatprep.subr.bf16.mxu0 %v1833
    %1895 = vmatpush1.bf16.msra.mxu0 %v1832
    %1896 = vmatprep.subr.bf16.mxu0 %v1831
    %1897 = vmatpush1.bf16.msra.mxu0 %v1830
    %1898 = vmatprep.subr.bf16.mxu0 %v1829
    %1899 = vmatpush1.bf16.msra.mxu0 %v1828
    %1900 = vmatprep.subr.bf16.mxu0 %v1827
    %1901 = vmatpush1.bf16.msra.mxu0 %v1826
    %1902 = vmatprep.subr.bf16.mxu0 %v1825
    %1903 = vmatpush1.bf16.msra.mxu0 %v1824
    %1904 = vmatprep.subr.bf16.mxu0 %v1855
    %1905 = vmatpush2.bf16.msra.mxu0 %v1854
    %1906 = vmatprep.subr.bf16.mxu0 %v1853
    %1907 = vmatpush2.bf16.msra.mxu0 %v1852
    %1908 = vmatprep.subr.bf16.mxu0 %v1851
    %1909 = vmatpush2.bf16.msra.mxu0 %v1850
    %1910 = vmatprep.subr.bf16.mxu0 %v1849
    %1911 = vmatpush2.bf16.msra.mxu0 %v1848
    %1912 = vmatprep.subr.bf16.mxu0 %v1847
    %1913 = vmatpush2.bf16.msra.mxu0 %v1846
    %1914 = vmatprep.subr.bf16.mxu0 %v1845
    %1915 = vmatpush2.bf16.msra.mxu0 %v1844
    %1916 = vmatprep.subr.bf16.mxu0 %v1843
    %1917 = vmatpush2.bf16.msra.mxu0 %v1842
    %1918 = vmatprep.subr.bf16.mxu0 %v1841
    %1919 = vmatpush2.bf16.msra.mxu0 %v1840
    %1920 = vmatprep.mubr.bf16.mxu0 %v938
    %1921 = vmatmul.mubr.bf16.gmra.mxu0 %v937
    %v1922 = vpop.f32.mrf.mxu0
    %v1923 = vadd.f32 %v1721, %v1922
    %v1924 = vpop.f32.mrf.mxu0
    %v1925 = vadd.f32 %v1725, %v1924
    %v1926 = vpop.f32.mrf.mxu0
    %v1927 = vpop.f32.mrf.mxu0
    %1928 = vdwg.mxu0
    %v1929 = vadd.f32 %v1682, %v1923
    %v1930 = vadd.f32 %v1683, %v1925
    %v1931 = vld [vmem:[#allocation20] sm:$0xff]
    %v1932 = vld [vmem:[#allocation20 + $0x8] sm:$0xff]
    %v1933 = vld [vmem:[#allocation20 + $0x10] sm:$0xff]
    %v1934 = vld [vmem:[#allocation20 + $0x18] sm:$0xff]
    %v1935 = vld [vmem:[#allocation20 + $0x20] sm:$0xff]
    %v1936 = vld [vmem:[#allocation20 + $0x28] sm:$0xff]
    %v1937 = vld [vmem:[#allocation20 + $0x30] sm:$0xff]
    %v1938 = vld [vmem:[#allocation20 + $0x38] sm:$0xff]
    %v1939 = vld [vmem:[#allocation20 + $0x40] sm:$0xff]
    %v1940 = vld [vmem:[#allocation20 + $0x48] sm:$0xff]
    %v1941 = vld [vmem:[#allocation20 + $0x50] sm:$0xff]
    %v1942 = vld [vmem:[#allocation20 + $0x58] sm:$0xff]
    %v1943 = vld [vmem:[#allocation20 + $0x60] sm:$0xff]
    %v1944 = vld [vmem:[#allocation20 + $0x68] sm:$0xff]
    %v1945 = vld [vmem:[#allocation20 + $0x70] sm:$0xff]
    %v1946 = vld [vmem:[#allocation20 + $0x78] sm:$0xff]
    %v1947 = vld [vmem:[#allocation20 + $0x80] sm:$0xff]
    %v1948 = vld [vmem:[#allocation20 + $0x88] sm:$0xff]
    %v1949 = vld [vmem:[#allocation20 + $0x90] sm:$0xff]
    %v1950 = vld [vmem:[#allocation20 + $0x98] sm:$0xff]
    %v1951 = vld [vmem:[#allocation20 + $0xa0] sm:$0xff]
    %v1952 = vld [vmem:[#allocation20 + $0xa8] sm:$0xff]
    %v1953 = vld [vmem:[#allocation20 + $0xb0] sm:$0xff]
    %v1954 = vld [vmem:[#allocation20 + $0xb8] sm:$0xff]
    %v1955 = vld [vmem:[#allocation20 + $0xc0] sm:$0xff]
    %v1956 = vld [vmem:[#allocation20 + $0xc8] sm:$0xff]
    %v1957 = vld [vmem:[#allocation20 + $0xd0] sm:$0xff]
    %v1958 = vld [vmem:[#allocation20 + $0xd8] sm:$0xff]
    %v1959 = vld [vmem:[#allocation20 + $0xe0] sm:$0xff]
    %v1960 = vld [vmem:[#allocation20 + $0xe8] sm:$0xff]
    %v1961 = vld [vmem:[#allocation20 + $0xf0] sm:$0xff]
    %v1962 = vld [vmem:[#allocation20 + $0xf8] sm:$0xff]
    %v1963 = vld [vmem:[%s12] sm:$0x3]
    %v1965 = vlaneseq
    %v1966 = vshrl.u32 %v1965, 7
    %v1967 = vsub.s32 0, %v1966
    %v1968 = vrot.slane %v1963, %v1967
    %v1969 = vlaneseq
    %v1970 = vshrl.u32 %v1969, 7
    %v1971 = vsub.s32 1, %v1970
    %v1972 = vrot.slane %v1963, %v1971
    %v2007 = vunpack.c.l.b16 %v1931
    %v2008 = vunpack.c.h.b16 %v1931
    %v2009 = vunpack.c.l.b16 %v1932
    %v2010 = vunpack.c.h.b16 %v1932
    %v2011 = vunpack.c.l.b16 %v1933
    %v2012 = vunpack.c.h.b16 %v1933
    %v2013 = vunpack.c.l.b16 %v1934
    %v2014 = vunpack.c.h.b16 %v1934
    %v2015 = vunpack.c.l.b16 %v1935
    %v2016 = vunpack.c.h.b16 %v1935
    %v2017 = vunpack.c.l.b16 %v1936
    %v2018 = vunpack.c.h.b16 %v1936
    %v2019 = vunpack.c.l.b16 %v1937
    %v2020 = vunpack.c.h.b16 %v1937
    %v2021 = vunpack.c.l.b16 %v1938
    %v2022 = vunpack.c.h.b16 %v1938
    %v2023 = vunpack.c.l.b16 %v1939
    %v2024 = vunpack.c.h.b16 %v1939
    %v2025 = vunpack.c.l.b16 %v1940
    %v2026 = vunpack.c.h.b16 %v1940
    %v2027 = vunpack.c.l.b16 %v1941
    %v2028 = vunpack.c.h.b16 %v1941
    %v2029 = vunpack.c.l.b16 %v1942
    %v2030 = vunpack.c.h.b16 %v1942
    %v2031 = vunpack.c.l.b16 %v1943
    %v2032 = vunpack.c.h.b16 %v1943
    %v2033 = vunpack.c.l.b16 %v1944
    %v2034 = vunpack.c.h.b16 %v1944
    %v2035 = vunpack.c.l.b16 %v1945
    %v2036 = vunpack.c.h.b16 %v1945
    %v2037 = vunpack.c.l.b16 %v1946
    %v2038 = vunpack.c.h.b16 %v1946
    %v2039 = vunpack.c.l.b16 %v1947
    %v2040 = vunpack.c.h.b16 %v1947
    %v2041 = vunpack.c.l.b16 %v1948
    %v2042 = vunpack.c.h.b16 %v1948
    %v2043 = vunpack.c.l.b16 %v1949
    %v2044 = vunpack.c.h.b16 %v1949
    %v2045 = vunpack.c.l.b16 %v1950
    %v2046 = vunpack.c.h.b16 %v1950
    %v2047 = vunpack.c.l.b16 %v1951
    %v2048 = vunpack.c.h.b16 %v1951
    %v2049 = vunpack.c.l.b16 %v1952
    %v2050 = vunpack.c.h.b16 %v1952
    %v2051 = vunpack.c.l.b16 %v1953
    %v2052 = vunpack.c.h.b16 %v1953
    %v2053 = vunpack.c.l.b16 %v1954
    %v2054 = vunpack.c.h.b16 %v1954
    %v2055 = vunpack.c.l.b16 %v1955
    %v2056 = vunpack.c.h.b16 %v1955
    %v2057 = vunpack.c.l.b16 %v1956
    %v2058 = vunpack.c.h.b16 %v1956
    %v2059 = vunpack.c.l.b16 %v1957
    %v2060 = vunpack.c.h.b16 %v1957
    %v2061 = vunpack.c.l.b16 %v1958
    %v2062 = vunpack.c.h.b16 %v1958
    %v2063 = vunpack.c.l.b16 %v1959
    %v2064 = vunpack.c.h.b16 %v1959
    %v2065 = vunpack.c.l.b16 %v1960
    %v2066 = vunpack.c.h.b16 %v1960
    %v2067 = vunpack.c.l.b16 %v1961
    %v2068 = vunpack.c.h.b16 %v1961
    %v2069 = vunpack.c.l.b16 %v1962
    %v2070 = vunpack.c.h.b16 %v1962
    %v2071 = vpack.c.b16 %v2009, %v2007
    %v2072 = vpack.c.b16 %v2010, %v2008
    %v2073 = vpack.c.b16 %v2013, %v2011
    %v2074 = vpack.c.b16 %v2014, %v2012
    %v2075 = vpack.c.b16 %v2017, %v2015
    %v2076 = vpack.c.b16 %v2018, %v2016
    %v2077 = vpack.c.b16 %v2021, %v2019
    %v2078 = vpack.c.b16 %v2022, %v2020
    %v2079 = vpack.c.b16 %v2025, %v2023
    %v2080 = vpack.c.b16 %v2026, %v2024
    %v2081 = vpack.c.b16 %v2029, %v2027
    %v2082 = vpack.c.b16 %v2030, %v2028
    %v2083 = vpack.c.b16 %v2033, %v2031
    %v2084 = vpack.c.b16 %v2034, %v2032
    %v2085 = vpack.c.b16 %v2037, %v2035
    %v2086 = vpack.c.b16 %v2038, %v2036
    %v2087 = vpack.c.b16 %v2041, %v2039
    %v2088 = vpack.c.b16 %v2042, %v2040
    %v2089 = vpack.c.b16 %v2045, %v2043
    %v2090 = vpack.c.b16 %v2046, %v2044
    %v2091 = vpack.c.b16 %v2049, %v2047
    %v2092 = vpack.c.b16 %v2050, %v2048
    %v2093 = vpack.c.b16 %v2053, %v2051
    %v2094 = vpack.c.b16 %v2054, %v2052
    %v2095 = vpack.c.b16 %v2057, %v2055
    %v2096 = vpack.c.b16 %v2058, %v2056
    %v2097 = vpack.c.b16 %v2061, %v2059
    %v2098 = vpack.c.b16 %v2062, %v2060
    %v2099 = vpack.c.b16 %v2065, %v2063
    %v2100 = vpack.c.b16 %v2066, %v2064
    %v2101 = vpack.c.b16 %v2069, %v2067
    %v2102 = vpack.c.b16 %v2070, %v2068
    %2135 = vmatprep.subr.bf16.mxu0 %v2086
    %2136 = vmatpush1.bf16.msra.mxu0 %v2085
    %2137 = vmatprep.subr.bf16.mxu0 %v2084
    %2138 = vmatpush1.bf16.msra.mxu0 %v2083
    %2139 = vmatprep.subr.bf16.mxu0 %v2082
    %2140 = vmatpush1.bf16.msra.mxu0 %v2081
    %2141 = vmatprep.subr.bf16.mxu0 %v2080
    %2142 = vmatpush1.bf16.msra.mxu0 %v2079
    %2143 = vmatprep.subr.bf16.mxu0 %v2078
    %2144 = vmatpush1.bf16.msra.mxu0 %v2077
    %2145 = vmatprep.subr.bf16.mxu0 %v2076
    %2146 = vmatpush1.bf16.msra.mxu0 %v2075
    %2147 = vmatprep.subr.bf16.mxu0 %v2074
    %2148 = vmatpush1.bf16.msra.mxu0 %v2073
    %2149 = vmatprep.subr.bf16.mxu0 %v2072
    %2150 = vmatpush1.bf16.msra.mxu0 %v2071
    %2151 = vmatprep.subr.bf16.mxu0 %v2102
    %2152 = vmatpush2.bf16.msra.mxu0 %v2101
    %2153 = vmatprep.subr.bf16.mxu0 %v2100
    %2154 = vmatpush2.bf16.msra.mxu0 %v2099
    %2155 = vmatprep.subr.bf16.mxu0 %v2098
    %2156 = vmatpush2.bf16.msra.mxu0 %v2097
    %2157 = vmatprep.subr.bf16.mxu0 %v2096
    %2158 = vmatpush2.bf16.msra.mxu0 %v2095
    %2159 = vmatprep.subr.bf16.mxu0 %v2094
    %2160 = vmatpush2.bf16.msra.mxu0 %v2093
    %2161 = vmatprep.subr.bf16.mxu0 %v2092
    %2162 = vmatpush2.bf16.msra.mxu0 %v2091
    %2163 = vmatprep.subr.bf16.mxu0 %v2090
    %2164 = vmatpush2.bf16.msra.mxu0 %v2089
    %2165 = vmatprep.subr.bf16.mxu0 %v2088
    %2166 = vmatpush2.bf16.msra.mxu0 %v2087
    %2167 = vmatprep.mubr.bf16.mxu0 %v892
    %2168 = vmatmul.mubr.bf16.gmra.mxu0 %v891
    %v2169 = vpop.f32.mrf.mxu0
    %v2170 = vadd.f32 %v1968, %v2169
    %v2171 = vpop.f32.mrf.mxu0
    %v2172 = vadd.f32 %v1972, %v2171
    %v2173 = vpop.f32.mrf.mxu0
    %v2174 = vadd.f32 %v1968, %v2173
    %v2175 = vpop.f32.mrf.mxu0
    %v2176 = vadd.f32 %v1972, %v2175
    %2177 = vdwg.mxu0
    %v2178 = vmax.f32 %v2170, 0.0
    %v2179 = vmax.f32 %v2172, 0.0
    %v2180 = vmax.f32 %v2174, 0.0
    %v2181 = vmax.f32 %v2176, 0.0
    %v2182 = vpack.c.bf16 %v2180, %v2178
    %v2183 = vpack.c.bf16 %v2181, %v2179
    %v2184 = vld [vmem:[#allocation21] sm:$0xff]
    %v2185 = vld [vmem:[#allocation21 + $0x8] sm:$0xff]
    %v2186 = vld [vmem:[#allocation21 + $0x10] sm:$0xff]
    %v2187 = vld [vmem:[#allocation21 + $0x18] sm:$0xff]
    %v2188 = vld [vmem:[#allocation21 + $0x20] sm:$0xff]
    %v2189 = vld [vmem:[#allocation21 + $0x28] sm:$0xff]
    %v2190 = vld [vmem:[#allocation21 + $0x30] sm:$0xff]
    %v2191 = vld [vmem:[#allocation21 + $0x38] sm:$0xff]
    %v2192 = vld [vmem:[#allocation21 + $0x40] sm:$0xff]
    %v2193 = vld [vmem:[#allocation21 + $0x48] sm:$0xff]
    %v2194 = vld [vmem:[#allocation21 + $0x50] sm:$0xff]
    %v2195 = vld [vmem:[#allocation21 + $0x58] sm:$0xff]
    %v2196 = vld [vmem:[#allocation21 + $0x60] sm:$0xff]
    %v2197 = vld [vmem:[#allocation21 + $0x68] sm:$0xff]
    %v2198 = vld [vmem:[#allocation21 + $0x70] sm:$0xff]
    %v2199 = vld [vmem:[#allocation21 + $0x78] sm:$0xff]
    %v2200 = vld [vmem:[#allocation21 + $0x80] sm:$0xff]
    %v2201 = vld [vmem:[#allocation21 + $0x88] sm:$0xff]
    %v2202 = vld [vmem:[#allocation21 + $0x90] sm:$0xff]
    %v2203 = vld [vmem:[#allocation21 + $0x98] sm:$0xff]
    %v2204 = vld [vmem:[#allocation21 + $0xa0] sm:$0xff]
    %v2205 = vld [vmem:[#allocation21 + $0xa8] sm:$0xff]
    %v2206 = vld [vmem:[#allocation21 + $0xb0] sm:$0xff]
    %v2207 = vld [vmem:[#allocation21 + $0xb8] sm:$0xff]
    %v2208 = vld [vmem:[#allocation21 + $0xc0] sm:$0xff]
    %v2209 = vld [vmem:[#allocation21 + $0xc8] sm:$0xff]
    %v2210 = vld [vmem:[#allocation21 + $0xd0] sm:$0xff]
    %v2211 = vld [vmem:[#allocation21 + $0xd8] sm:$0xff]
    %v2212 = vld [vmem:[#allocation21 + $0xe0] sm:$0xff]
    %v2213 = vld [vmem:[#allocation21 + $0xe8] sm:$0xff]
    %v2214 = vld [vmem:[#allocation21 + $0xf0] sm:$0xff]
    %v2215 = vld [vmem:[#allocation21 + $0xf8] sm:$0xff]
    %v2216 = vld [vmem:[%s14] sm:$0x3]
    %v2218 = vlaneseq
    %v2219 = vshrl.u32 %v2218, 7
    %v2220 = vsub.s32 0, %v2219
    %v2221 = vrot.slane %v2216, %v2220
    %v2222 = vlaneseq
    %v2223 = vshrl.u32 %v2222, 7
    %v2224 = vsub.s32 1, %v2223
    %v2225 = vrot.slane %v2216, %v2224
    %v2260 = vunpack.c.l.b16 %v2184
    %v2261 = vunpack.c.h.b16 %v2184
    %v2262 = vunpack.c.l.b16 %v2185
    %v2263 = vunpack.c.h.b16 %v2185
    %v2264 = vunpack.c.l.b16 %v2186
    %v2265 = vunpack.c.h.b16 %v2186
    %v2266 = vunpack.c.l.b16 %v2187
    %v2267 = vunpack.c.h.b16 %v2187
    %v2268 = vunpack.c.l.b16 %v2188
    %v2269 = vunpack.c.h.b16 %v2188
    %v2270 = vunpack.c.l.b16 %v2189
    %v2271 = vunpack.c.h.b16 %v2189
    %v2272 = vunpack.c.l.b16 %v2190
    %v2273 = vunpack.c.h.b16 %v2190
    %v2274 = vunpack.c.l.b16 %v2191
    %v2275 = vunpack.c.h.b16 %v2191
    %v2276 = vunpack.c.l.b16 %v2192
    %v2277 = vunpack.c.h.b16 %v2192
    %v2278 = vunpack.c.l.b16 %v2193
    %v2279 = vunpack.c.h.b16 %v2193
    %v2280 = vunpack.c.l.b16 %v2194
    %v2281 = vunpack.c.h.b16 %v2194
    %v2282 = vunpack.c.l.b16 %v2195
    %v2283 = vunpack.c.h.b16 %v2195
    %v2284 = vunpack.c.l.b16 %v2196
    %v2285 = vunpack.c.h.b16 %v2196
    %v2286 = vunpack.c.l.b16 %v2197
    %v2287 = vunpack.c.h.b16 %v2197
    %v2288 = vunpack.c.l.b16 %v2198
    %v2289 = vunpack.c.h.b16 %v2198
    %v2290 = vunpack.c.l.b16 %v2199
    %v2291 = vunpack.c.h.b16 %v2199
    %v2292 = vunpack.c.l.b16 %v2200
    %v2293 = vunpack.c.h.b16 %v2200
    %v2294 = vunpack.c.l.b16 %v2201
    %v2295 = vunpack.c.h.b16 %v2201
    %v2296 = vunpack.c.l.b16 %v2202
    %v2297 = vunpack.c.h.b16 %v2202
    %v2298 = vunpack.c.l.b16 %v2203
    %v2299 = vunpack.c.h.b16 %v2203
    %v2300 = vunpack.c.l.b16 %v2204
    %v2301 = vunpack.c.h.b16 %v2204
    %v2302 = vunpack.c.l.b16 %v2205
    %v2303 = vunpack.c.h.b16 %v2205
    %v2304 = vunpack.c.l.b16 %v2206
    %v2305 = vunpack.c.h.b16 %v2206
    %v2306 = vunpack.c.l.b16 %v2207
    %v2307 = vunpack.c.h.b16 %v2207
    %v2308 = vunpack.c.l.b16 %v2208
    %v2309 = vunpack.c.h.b16 %v2208
    %v2310 = vunpack.c.l.b16 %v2209
    %v2311 = vunpack.c.h.b16 %v2209
    %v2312 = vunpack.c.l.b16 %v2210
    %v2313 = vunpack.c.h.b16 %v2210
    %v2314 = vunpack.c.l.b16 %v2211
    %v2315 = vunpack.c.h.b16 %v2211
    %v2316 = vunpack.c.l.b16 %v2212
    %v2317 = vunpack.c.h.b16 %v2212
    %v2318 = vunpack.c.l.b16 %v2213
    %v2319 = vunpack.c.h.b16 %v2213
    %v2320 = vunpack.c.l.b16 %v2214
    %v2321 = vunpack.c.h.b16 %v2214
    %v2322 = vunpack.c.l.b16 %v2215
    %v2323 = vunpack.c.h.b16 %v2215
    %v2324 = vpack.c.b16 %v2262, %v2260
    %v2325 = vpack.c.b16 %v2263, %v2261
    %v2326 = vpack.c.b16 %v2266, %v2264
    %v2327 = vpack.c.b16 %v2267, %v2265
    %v2328 = vpack.c.b16 %v2270, %v2268
    %v2329 = vpack.c.b16 %v2271, %v2269
    %v2330 = vpack.c.b16 %v2274, %v2272
    %v2331 = vpack.c.b16 %v2275, %v2273
    %v2332 = vpack.c.b16 %v2278, %v2276
    %v2333 = vpack.c.b16 %v2279, %v2277
    %v2334 = vpack.c.b16 %v2282, %v2280
    %v2335 = vpack.c.b16 %v2283, %v2281
    %v2336 = vpack.c.b16 %v2286, %v2284
    %v2337 = vpack.c.b16 %v2287, %v2285
    %v2338 = vpack.c.b16 %v2290, %v2288
    %v2339 = vpack.c.b16 %v2291, %v2289
    %v2340 = vpack.c.b16 %v2294, %v2292
    %v2341 = vpack.c.b16 %v2295, %v2293
    %v2342 = vpack.c.b16 %v2298, %v2296
    %v2343 = vpack.c.b16 %v2299, %v2297
    %v2344 = vpack.c.b16 %v2302, %v2300
    %v2345 = vpack.c.b16 %v2303, %v2301
    %v2346 = vpack.c.b16 %v2306, %v2304
    %v2347 = vpack.c.b16 %v2307, %v2305
    %v2348 = vpack.c.b16 %v2310, %v2308
    %v2349 = vpack.c.b16 %v2311, %v2309
    %v2350 = vpack.c.b16 %v2314, %v2312
    %v2351 = vpack.c.b16 %v2315, %v2313
    %v2352 = vpack.c.b16 %v2318, %v2316
    %v2353 = vpack.c.b16 %v2319, %v2317
    %v2354 = vpack.c.b16 %v2322, %v2320
    %v2355 = vpack.c.b16 %v2323, %v2321
    %2388 = vmatprep.subr.bf16.mxu0 %v2339
    %2389 = vmatpush1.bf16.msra.mxu0 %v2338
    %2390 = vmatprep.subr.bf16.mxu0 %v2337
    %2391 = vmatpush1.bf16.msra.mxu0 %v2336
    %2392 = vmatprep.subr.bf16.mxu0 %v2335
    %2393 = vmatpush1.bf16.msra.mxu0 %v2334
    %2394 = vmatprep.subr.bf16.mxu0 %v2333
    %2395 = vmatpush1.bf16.msra.mxu0 %v2332
    %2396 = vmatprep.subr.bf16.mxu0 %v2331
    %2397 = vmatpush1.bf16.msra.mxu0 %v2330
    %2398 = vmatprep.subr.bf16.mxu0 %v2329
    %2399 = vmatpush1.bf16.msra.mxu0 %v2328
    %2400 = vmatprep.subr.bf16.mxu0 %v2327
    %2401 = vmatpush1.bf16.msra.mxu0 %v2326
    %2402 = vmatprep.subr.bf16.mxu0 %v2325
    %2403 = vmatpush1.bf16.msra.mxu0 %v2324
    %2404 = vmatprep.subr.bf16.mxu0 %v2355
    %2405 = vmatpush2.bf16.msra.mxu0 %v2354
    %2406 = vmatprep.subr.bf16.mxu0 %v2353
    %2407 = vmatpush2.bf16.msra.mxu0 %v2352
    %2408 = vmatprep.subr.bf16.mxu0 %v2351
    %2409 = vmatpush2.bf16.msra.mxu0 %v2350
    %2410 = vmatprep.subr.bf16.mxu0 %v2349
    %2411 = vmatpush2.bf16.msra.mxu0 %v2348
    %2412 = vmatprep.subr.bf16.mxu0 %v2347
    %2413 = vmatpush2.bf16.msra.mxu0 %v2346
    %2414 = vmatprep.subr.bf16.mxu0 %v2345
    %2415 = vmatpush2.bf16.msra.mxu0 %v2344
    %2416 = vmatprep.subr.bf16.mxu0 %v2343
    %2417 = vmatpush2.bf16.msra.mxu0 %v2342
    %2418 = vmatprep.subr.bf16.mxu0 %v2341
    %2419 = vmatpush2.bf16.msra.mxu0 %v2340
    %2420 = vmatprep.mubr.bf16.mxu0 %v2183
    %2421 = vmatmul.mubr.bf16.gmra.mxu0 %v2182
    %v2422 = vpop.f32.mrf.mxu0
    %v2423 = vadd.f32 %v2221, %v2422
    %v2424 = vpop.f32.mrf.mxu0
    %v2425 = vadd.f32 %v2225, %v2424
    %v2426 = vpop.f32.mrf.mxu0
    %v2427 = vadd.f32 %v2221, %v2426
    %v2428 = vpop.f32.mrf.mxu0
    %v2429 = vadd.f32 %v2225, %v2428
    %2430 = vdwg.mxu0
    %v2431 = vmax.f32 %v2423, 0.0
    %v2432 = vmax.f32 %v2425, 0.0
    %v2433 = vmax.f32 %v2427, 0.0
    %v2434 = vmax.f32 %v2429, 0.0
    %v2435 = vpack.c.bf16 %v2433, %v2431
    %v2436 = vpack.c.bf16 %v2434, %v2432
    %v2437 = vld [vmem:[#allocation23] sm:$0xff]
    %v2438 = vld [vmem:[#allocation23 + $0x8] sm:$0xff]
    %v2439 = vld [vmem:[#allocation23 + $0x10] sm:$0xff]
    %v2440 = vld [vmem:[#allocation23 + $0x18] sm:$0xff]
    %v2441 = vld [vmem:[#allocation23 + $0x20] sm:$0xff]
    %v2442 = vld [vmem:[#allocation23 + $0x28] sm:$0xff]
    %v2443 = vld [vmem:[#allocation23 + $0x30] sm:$0xff]
    %v2444 = vld [vmem:[#allocation23 + $0x38] sm:$0xff]
    %v2445 = vld [vmem:[#allocation23 + $0x40] sm:$0xff]
    %v2446 = vld [vmem:[#allocation23 + $0x48] sm:$0xff]
    %v2447 = vld [vmem:[#allocation23 + $0x50] sm:$0xff]
    %v2448 = vld [vmem:[#allocation23 + $0x58] sm:$0xff]
    %v2449 = vld [vmem:[#allocation23 + $0x60] sm:$0xff]
    %v2450 = vld [vmem:[#allocation23 + $0x68] sm:$0xff]
    %v2451 = vld [vmem:[#allocation23 + $0x70] sm:$0xff]
    %v2452 = vld [vmem:[#allocation23 + $0x78] sm:$0xff]
    %v2453 = vld [vmem:[#allocation23 + $0x80] sm:$0xff]
    %v2454 = vld [vmem:[#allocation23 + $0x88] sm:$0xff]
    %v2455 = vld [vmem:[#allocation23 + $0x90] sm:$0xff]
    %v2456 = vld [vmem:[#allocation23 + $0x98] sm:$0xff]
    %v2457 = vld [vmem:[#allocation23 + $0xa0] sm:$0xff]
    %v2458 = vld [vmem:[#allocation23 + $0xa8] sm:$0xff]
    %v2459 = vld [vmem:[#allocation23 + $0xb0] sm:$0xff]
    %v2460 = vld [vmem:[#allocation23 + $0xb8] sm:$0xff]
    %v2461 = vld [vmem:[#allocation23 + $0xc0] sm:$0xff]
    %v2462 = vld [vmem:[#allocation23 + $0xc8] sm:$0xff]
    %v2463 = vld [vmem:[#allocation23 + $0xd0] sm:$0xff]
    %v2464 = vld [vmem:[#allocation23 + $0xd8] sm:$0xff]
    %v2465 = vld [vmem:[#allocation23 + $0xe0] sm:$0xff]
    %v2466 = vld [vmem:[#allocation23 + $0xe8] sm:$0xff]
    %v2467 = vld [vmem:[#allocation23 + $0xf0] sm:$0xff]
    %v2468 = vld [vmem:[#allocation23 + $0xf8] sm:$0xff]
    %v2469 = vld [vmem:[%s16] sm:$0x3]
    %v2471 = vlaneseq
    %v2472 = vshrl.u32 %v2471, 7
    %v2473 = vsub.s32 0, %v2472
    %v2474 = vrot.slane %v2469, %v2473
    %v2475 = vlaneseq
    %v2476 = vshrl.u32 %v2475, 7
    %v2477 = vsub.s32 1, %v2476
    %v2478 = vrot.slane %v2469, %v2477
    %v2513 = vunpack.c.l.b16 %v2437
    %v2514 = vunpack.c.h.b16 %v2437
    %v2515 = vunpack.c.l.b16 %v2438
    %v2516 = vunpack.c.h.b16 %v2438
    %v2517 = vunpack.c.l.b16 %v2439
    %v2518 = vunpack.c.h.b16 %v2439
    %v2519 = vunpack.c.l.b16 %v2440
    %v2520 = vunpack.c.h.b16 %v2440
    %v2521 = vunpack.c.l.b16 %v2441
    %v2522 = vunpack.c.h.b16 %v2441
    %v2523 = vunpack.c.l.b16 %v2442
    %v2524 = vunpack.c.h.b16 %v2442
    %v2525 = vunpack.c.l.b16 %v2443
    %v2526 = vunpack.c.h.b16 %v2443
    %v2527 = vunpack.c.l.b16 %v2444
    %v2528 = vunpack.c.h.b16 %v2444
    %v2529 = vunpack.c.l.b16 %v2445
    %v2530 = vunpack.c.h.b16 %v2445
    %v2531 = vunpack.c.l.b16 %v2446
    %v2532 = vunpack.c.h.b16 %v2446
    %v2533 = vunpack.c.l.b16 %v2447
    %v2534 = vunpack.c.h.b16 %v2447
    %v2535 = vunpack.c.l.b16 %v2448
    %v2536 = vunpack.c.h.b16 %v2448
    %v2537 = vunpack.c.l.b16 %v2449
    %v2538 = vunpack.c.h.b16 %v2449
    %v2539 = vunpack.c.l.b16 %v2450
    %v2540 = vunpack.c.h.b16 %v2450
    %v2541 = vunpack.c.l.b16 %v2451
    %v2542 = vunpack.c.h.b16 %v2451
    %v2543 = vunpack.c.l.b16 %v2452
    %v2544 = vunpack.c.h.b16 %v2452
    %v2545 = vunpack.c.l.b16 %v2453
    %v2546 = vunpack.c.h.b16 %v2453
    %v2547 = vunpack.c.l.b16 %v2454
    %v2548 = vunpack.c.h.b16 %v2454
    %v2549 = vunpack.c.l.b16 %v2455
    %v2550 = vunpack.c.h.b16 %v2455
    %v2551 = vunpack.c.l.b16 %v2456
    %v2552 = vunpack.c.h.b16 %v2456
    %v2553 = vunpack.c.l.b16 %v2457
    %v2554 = vunpack.c.h.b16 %v2457
    %v2555 = vunpack.c.l.b16 %v2458
    %v2556 = vunpack.c.h.b16 %v2458
    %v2557 = vunpack.c.l.b16 %v2459
    %v2558 = vunpack.c.h.b16 %v2459
    %v2559 = vunpack.c.l.b16 %v2460
    %v2560 = vunpack.c.h.b16 %v2460
    %v2561 = vunpack.c.l.b16 %v2461
    %v2562 = vunpack.c.h.b16 %v2461
    %v2563 = vunpack.c.l.b16 %v2462
    %v2564 = vunpack.c.h.b16 %v2462
    %v2565 = vunpack.c.l.b16 %v2463
    %v2566 = vunpack.c.h.b16 %v2463
    %v2567 = vunpack.c.l.b16 %v2464
    %v2568 = vunpack.c.h.b16 %v2464
    %v2569 = vunpack.c.l.b16 %v2465
    %v2570 = vunpack.c.h.b16 %v2465
    %v2571 = vunpack.c.l.b16 %v2466
    %v2572 = vunpack.c.h.b16 %v2466
    %v2573 = vunpack.c.l.b16 %v2467
    %v2574 = vunpack.c.h.b16 %v2467
    %v2575 = vunpack.c.l.b16 %v2468
    %v2576 = vunpack.c.h.b16 %v2468
    %v2577 = vpack.c.b16 %v2515, %v2513
    %v2578 = vpack.c.b16 %v2516, %v2514
    %v2579 = vpack.c.b16 %v2519, %v2517
    %v2580 = vpack.c.b16 %v2520, %v2518
    %v2581 = vpack.c.b16 %v2523, %v2521
    %v2582 = vpack.c.b16 %v2524, %v2522
    %v2583 = vpack.c.b16 %v2527, %v2525
    %v2584 = vpack.c.b16 %v2528, %v2526
    %v2585 = vpack.c.b16 %v2531, %v2529
    %v2586 = vpack.c.b16 %v2532, %v2530
    %v2587 = vpack.c.b16 %v2535, %v2533
    %v2588 = vpack.c.b16 %v2536, %v2534
    %v2589 = vpack.c.b16 %v2539, %v2537
    %v2590 = vpack.c.b16 %v2540, %v2538
    %v2591 = vpack.c.b16 %v2543, %v2541
    %v2592 = vpack.c.b16 %v2544, %v2542
    %v2593 = vpack.c.b16 %v2547, %v2545
    %v2594 = vpack.c.b16 %v2548, %v2546
    %v2595 = vpack.c.b16 %v2551, %v2549
    %v2596 = vpack.c.b16 %v2552, %v2550
    %v2597 = vpack.c.b16 %v2555, %v2553
    %v2598 = vpack.c.b16 %v2556, %v2554
    %v2599 = vpack.c.b16 %v2559, %v2557
    %v2600 = vpack.c.b16 %v2560, %v2558
    %v2601 = vpack.c.b16 %v2563, %v2561
    %v2602 = vpack.c.b16 %v2564, %v2562
    %v2603 = vpack.c.b16 %v2567, %v2565
    %v2604 = vpack.c.b16 %v2568, %v2566
    %v2605 = vpack.c.b16 %v2571, %v2569
    %v2606 = vpack.c.b16 %v2572, %v2570
    %v2607 = vpack.c.b16 %v2575, %v2573
    %v2608 = vpack.c.b16 %v2576, %v2574
    %2641 = vmatprep.subr.bf16.mxu0 %v2592
    %2642 = vmatpush1.bf16.msra.mxu0 %v2591
    %2643 = vmatprep.subr.bf16.mxu0 %v2590
    %2644 = vmatpush1.bf16.msra.mxu0 %v2589
    %2645 = vmatprep.subr.bf16.mxu0 %v2588
    %2646 = vmatpush1.bf16.msra.mxu0 %v2587
    %2647 = vmatprep.subr.bf16.mxu0 %v2586
    %2648 = vmatpush1.bf16.msra.mxu0 %v2585
    %2649 = vmatprep.subr.bf16.mxu0 %v2584
    %2650 = vmatpush1.bf16.msra.mxu0 %v2583
    %2651 = vmatprep.subr.bf16.mxu0 %v2582
    %2652 = vmatpush1.bf16.msra.mxu0 %v2581
    %2653 = vmatprep.subr.bf16.mxu0 %v2580
    %2654 = vmatpush1.bf16.msra.mxu0 %v2579
    %2655 = vmatprep.subr.bf16.mxu0 %v2578
    %2656 = vmatpush1.bf16.msra.mxu0 %v2577
    %2657 = vmatprep.subr.bf16.mxu0 %v2608
    %2658 = vmatpush2.bf16.msra.mxu0 %v2607
    %2659 = vmatprep.subr.bf16.mxu0 %v2606
    %2660 = vmatpush2.bf16.msra.mxu0 %v2605
    %2661 = vmatprep.subr.bf16.mxu0 %v2604
    %2662 = vmatpush2.bf16.msra.mxu0 %v2603
    %2663 = vmatprep.subr.bf16.mxu0 %v2602
    %2664 = vmatpush2.bf16.msra.mxu0 %v2601
    %2665 = vmatprep.subr.bf16.mxu0 %v2600
    %2666 = vmatpush2.bf16.msra.mxu0 %v2599
    %2667 = vmatprep.subr.bf16.mxu0 %v2598
    %2668 = vmatpush2.bf16.msra.mxu0 %v2597
    %2669 = vmatprep.subr.bf16.mxu0 %v2596
    %2670 = vmatpush2.bf16.msra.mxu0 %v2595
    %2671 = vmatprep.subr.bf16.mxu0 %v2594
    %2672 = vmatpush2.bf16.msra.mxu0 %v2593
    %2673 = vmatprep.mubr.bf16.mxu0 %v2436
    %2674 = vmatmul.mubr.bf16.gmra.mxu0 %v2435
    %v2675 = vpop.f32.mrf.mxu0
    %v2676 = vadd.f32 %v2474, %v2675
    %v2677 = vpop.f32.mrf.mxu0
    %v2678 = vadd.f32 %v2478, %v2677
    %v2679 = vpop.f32.mrf.mxu0
    %v2680 = vadd.f32 %v2474, %v2679
    %v2681 = vpop.f32.mrf.mxu0
    %v2682 = vadd.f32 %v2478, %v2681
    %2683 = vdwg.mxu0
    %v2684 = vmax.f32 %v2676, 0.0
    %v2685 = vmax.f32 %v2678, 0.0
    %v2686 = vmax.f32 %v2680, 0.0
    %v2687 = vmax.f32 %v2682, 0.0
    %v2688 = vld [vmem:[#allocation24] sm:$0xff]
    %v2689 = vld [vmem:[#allocation24 + $0x8] sm:$0xff]
    %v2690 = vld [vmem:[#allocation24 + $0x10] sm:$0xff]
    %v2691 = vld [vmem:[#allocation24 + $0x18] sm:$0xff]
    %v2692 = vld [vmem:[#allocation24 + $0x20] sm:$0xff]
    %v2693 = vld [vmem:[#allocation24 + $0x28] sm:$0xff]
    %v2694 = vld [vmem:[#allocation24 + $0x30] sm:$0xff]
    %v2695 = vld [vmem:[#allocation24 + $0x38] sm:$0xff]
    %v2696 = vld [vmem:[#allocation24 + $0x40] sm:$0xff]
    %v2697 = vld [vmem:[#allocation24 + $0x48] sm:$0xff]
    %v2698 = vld [vmem:[#allocation24 + $0x50] sm:$0xff]
    %v2699 = vld [vmem:[#allocation24 + $0x58] sm:$0xff]
    %v2700 = vld [vmem:[#allocation24 + $0x60] sm:$0xff]
    %v2701 = vld [vmem:[#allocation24 + $0x68] sm:$0xff]
    %v2702 = vld [vmem:[#allocation24 + $0x70] sm:$0xff]
    %v2703 = vld [vmem:[#allocation24 + $0x78] sm:$0xff]
    %v2704 = vld [vmem:[#allocation24 + $0x80] sm:$0xff]
    %v2705 = vld [vmem:[#allocation24 + $0x88] sm:$0xff]
    %v2706 = vld [vmem:[#allocation24 + $0x90] sm:$0xff]
    %v2707 = vld [vmem:[#allocation24 + $0x98] sm:$0xff]
    %v2708 = vld [vmem:[#allocation24 + $0xa0] sm:$0xff]
    %v2709 = vld [vmem:[#allocation24 + $0xa8] sm:$0xff]
    %v2710 = vld [vmem:[#allocation24 + $0xb0] sm:$0xff]
    %v2711 = vld [vmem:[#allocation24 + $0xb8] sm:$0xff]
    %v2712 = vld [vmem:[#allocation24 + $0xc0] sm:$0xff]
    %v2713 = vld [vmem:[#allocation24 + $0xc8] sm:$0xff]
    %v2714 = vld [vmem:[#allocation24 + $0xd0] sm:$0xff]
    %v2715 = vld [vmem:[#allocation24 + $0xd8] sm:$0xff]
    %v2716 = vld [vmem:[#allocation24 + $0xe0] sm:$0xff]
    %v2717 = vld [vmem:[#allocation24 + $0xe8] sm:$0xff]
    %v2718 = vld [vmem:[#allocation24 + $0xf0] sm:$0xff]
    %v2719 = vld [vmem:[#allocation24 + $0xf8] sm:$0xff]
    %v2720 = vld [vmem:[%s18] sm:$0x3]
    %v2722 = vlaneseq
    %v2723 = vshrl.u32 %v2722, 7
    %v2724 = vsub.s32 0, %v2723
    %v2725 = vrot.slane %v2720, %v2724
    %v2726 = vlaneseq
    %v2727 = vshrl.u32 %v2726, 7
    %v2728 = vsub.s32 1, %v2727
    %v2729 = vrot.slane %v2720, %v2728
    %v2764 = vunpack.c.l.b16 %v2688
    %v2765 = vunpack.c.h.b16 %v2688
    %v2766 = vunpack.c.l.b16 %v2689
    %v2767 = vunpack.c.h.b16 %v2689
    %v2768 = vunpack.c.l.b16 %v2690
    %v2769 = vunpack.c.h.b16 %v2690
    %v2770 = vunpack.c.l.b16 %v2691
    %v2771 = vunpack.c.h.b16 %v2691
    %v2772 = vunpack.c.l.b16 %v2692
    %v2773 = vunpack.c.h.b16 %v2692
    %v2774 = vunpack.c.l.b16 %v2693
    %v2775 = vunpack.c.h.b16 %v2693
    %v2776 = vunpack.c.l.b16 %v2694
    %v2777 = vunpack.c.h.b16 %v2694
    %v2778 = vunpack.c.l.b16 %v2695
    %v2779 = vunpack.c.h.b16 %v2695
    %v2780 = vunpack.c.l.b16 %v2696
    %v2781 = vunpack.c.h.b16 %v2696
    %v2782 = vunpack.c.l.b16 %v2697
    %v2783 = vunpack.c.h.b16 %v2697
    %v2784 = vunpack.c.l.b16 %v2698
    %v2785 = vunpack.c.h.b16 %v2698
    %v2786 = vunpack.c.l.b16 %v2699
    %v2787 = vunpack.c.h.b16 %v2699
    %v2788 = vunpack.c.l.b16 %v2700
    %v2789 = vunpack.c.h.b16 %v2700
    %v2790 = vunpack.c.l.b16 %v2701
    %v2791 = vunpack.c.h.b16 %v2701
    %v2792 = vunpack.c.l.b16 %v2702
    %v2793 = vunpack.c.h.b16 %v2702
    %v2794 = vunpack.c.l.b16 %v2703
    %v2795 = vunpack.c.h.b16 %v2703
    %v2796 = vunpack.c.l.b16 %v2704
    %v2797 = vunpack.c.h.b16 %v2704
    %v2798 = vunpack.c.l.b16 %v2705
    %v2799 = vunpack.c.h.b16 %v2705
    %v2800 = vunpack.c.l.b16 %v2706
    %v2801 = vunpack.c.h.b16 %v2706
    %v2802 = vunpack.c.l.b16 %v2707
    %v2803 = vunpack.c.h.b16 %v2707
    %v2804 = vunpack.c.l.b16 %v2708
    %v2805 = vunpack.c.h.b16 %v2708
    %v2806 = vunpack.c.l.b16 %v2709
    %v2807 = vunpack.c.h.b16 %v2709
    %v2808 = vunpack.c.l.b16 %v2710
    %v2809 = vunpack.c.h.b16 %v2710
    %v2810 = vunpack.c.l.b16 %v2711
    %v2811 = vunpack.c.h.b16 %v2711
    %v2812 = vunpack.c.l.b16 %v2712
    %v2813 = vunpack.c.h.b16 %v2712
    %v2814 = vunpack.c.l.b16 %v2713
    %v2815 = vunpack.c.h.b16 %v2713
    %v2816 = vunpack.c.l.b16 %v2714
    %v2817 = vunpack.c.h.b16 %v2714
    %v2818 = vunpack.c.l.b16 %v2715
    %v2819 = vunpack.c.h.b16 %v2715
    %v2820 = vunpack.c.l.b16 %v2716
    %v2821 = vunpack.c.h.b16 %v2716
    %v2822 = vunpack.c.l.b16 %v2717
    %v2823 = vunpack.c.h.b16 %v2717
    %v2824 = vunpack.c.l.b16 %v2718
    %v2825 = vunpack.c.h.b16 %v2718
    %v2826 = vunpack.c.l.b16 %v2719
    %v2827 = vunpack.c.h.b16 %v2719
    %v2828 = vpack.c.b16 %v2766, %v2764
    %v2829 = vpack.c.b16 %v2767, %v2765
    %v2830 = vpack.c.b16 %v2770, %v2768
    %v2831 = vpack.c.b16 %v2771, %v2769
    %v2832 = vpack.c.b16 %v2774, %v2772
    %v2833 = vpack.c.b16 %v2775, %v2773
    %v2834 = vpack.c.b16 %v2778, %v2776
    %v2835 = vpack.c.b16 %v2779, %v2777
    %v2836 = vpack.c.b16 %v2782, %v2780
    %v2837 = vpack.c.b16 %v2783, %v2781
    %v2838 = vpack.c.b16 %v2786, %v2784
    %v2839 = vpack.c.b16 %v2787, %v2785
    %v2840 = vpack.c.b16 %v2790, %v2788
    %v2841 = vpack.c.b16 %v2791, %v2789
    %v2842 = vpack.c.b16 %v2794, %v2792
    %v2843 = vpack.c.b16 %v2795, %v2793
    %v2844 = vpack.c.b16 %v2798, %v2796
    %v2845 = vpack.c.b16 %v2799, %v2797
    %v2846 = vpack.c.b16 %v2802, %v2800
    %v2847 = vpack.c.b16 %v2803, %v2801
    %v2848 = vpack.c.b16 %v2806, %v2804
    %v2849 = vpack.c.b16 %v2807, %v2805
    %v2850 = vpack.c.b16 %v2810, %v2808
    %v2851 = vpack.c.b16 %v2811, %v2809
    %v2852 = vpack.c.b16 %v2814, %v2812
    %v2853 = vpack.c.b16 %v2815, %v2813
    %v2854 = vpack.c.b16 %v2818, %v2816
    %v2855 = vpack.c.b16 %v2819, %v2817
    %v2856 = vpack.c.b16 %v2822, %v2820
    %v2857 = vpack.c.b16 %v2823, %v2821
    %v2858 = vpack.c.b16 %v2826, %v2824
    %v2859 = vpack.c.b16 %v2827, %v2825
    %2892 = vmatprep.subr.bf16.mxu0 %v2843
    %2893 = vmatpush1.bf16.msra.mxu0 %v2842
    %2894 = vmatprep.subr.bf16.mxu0 %v2841
    %2895 = vmatpush1.bf16.msra.mxu0 %v2840
    %2896 = vmatprep.subr.bf16.mxu0 %v2839
    %2897 = vmatpush1.bf16.msra.mxu0 %v2838
    %2898 = vmatprep.subr.bf16.mxu0 %v2837
    %2899 = vmatpush1.bf16.msra.mxu0 %v2836
    %2900 = vmatprep.subr.bf16.mxu0 %v2835
    %2901 = vmatpush1.bf16.msra.mxu0 %v2834
    %2902 = vmatprep.subr.bf16.mxu0 %v2833
    %2903 = vmatpush1.bf16.msra.mxu0 %v2832
    %2904 = vmatprep.subr.bf16.mxu0 %v2831
    %2905 = vmatpush1.bf16.msra.mxu0 %v2830
    %2906 = vmatprep.subr.bf16.mxu0 %v2829
    %2907 = vmatpush1.bf16.msra.mxu0 %v2828
    %2908 = vmatprep.subr.bf16.mxu0 %v2859
    %2909 = vmatpush2.bf16.msra.mxu0 %v2858
    %2910 = vmatprep.subr.bf16.mxu0 %v2857
    %2911 = vmatpush2.bf16.msra.mxu0 %v2856
    %2912 = vmatprep.subr.bf16.mxu0 %v2855
    %2913 = vmatpush2.bf16.msra.mxu0 %v2854
    %2914 = vmatprep.subr.bf16.mxu0 %v2853
    %2915 = vmatpush2.bf16.msra.mxu0 %v2852
    %2916 = vmatprep.subr.bf16.mxu0 %v2851
    %2917 = vmatpush2.bf16.msra.mxu0 %v2850
    %2918 = vmatprep.subr.bf16.mxu0 %v2849
    %2919 = vmatpush2.bf16.msra.mxu0 %v2848
    %2920 = vmatprep.subr.bf16.mxu0 %v2847
    %2921 = vmatpush2.bf16.msra.mxu0 %v2846
    %2922 = vmatprep.subr.bf16.mxu0 %v2845
    %2923 = vmatpush2.bf16.msra.mxu0 %v2844
    %2924 = vmatprep.mubr.bf16.mxu0 %v892
    %2925 = vmatmul.mubr.bf16.gmra.mxu0 %v891
    %v2926 = vpop.f32.mrf.mxu0
    %v2927 = vadd.f32 %v2725, %v2926
    %v2928 = vpop.f32.mrf.mxu0
    %v2929 = vadd.f32 %v2729, %v2928
    %v2930 = vpop.f32.mrf.mxu0
    %v2931 = vadd.f32 %v2725, %v2930
    %v2932 = vpop.f32.mrf.mxu0
    %v2933 = vadd.f32 %v2729, %v2932
    %2934 = vdwg.mxu0
    %v2935 = vadd.f32 %v2684, %v2927
    %v2936 = vadd.f32 %v2685, %v2929
    %v2937 = vadd.f32 %v2686, %v2931
    %v2938 = vadd.f32 %v2687, %v2933
    %2939 = vmatprep.subr.mxu0 0.0
    %2940 = vmatpush1.xpose.msra.mxu0 0.0
    %2941 = vmatprep.subr.mxu0 0.0
    %2942 = vmatpush1.xpose.msra.mxu0 0.0
    %2943 = vmatprep.subr.mxu0 0.0
    %2944 = vmatpush1.xpose.msra.mxu0 0.0
    %2945 = vmatprep.subr.mxu0 0.0
    %2946 = vmatpush1.xpose.msra.mxu0 0.0
    %2947 = vmatprep.subr.mxu0 0.0
    %2948 = vmatpush1.xpose.msra.mxu0 0.0
    %2949 = vmatprep.subr.mxu0 0.0
    %2950 = vmatpush1.xpose.msra.mxu0 0.0
    %2951 = vmatprep.subr.mxu0 0.0
    %2952 = vmatpush1.xpose.msra.mxu0 0.0
    %2953 = vmatprep.subr.mxu0 0.0
    %2954 = vmatpush1.xpose.msra.mxu0 0.0
    %2955 = vmatprep.subr.mxu0 0.0
    %2956 = vmatpush1.xpose.msra.mxu0 0.0
    %2957 = vmatprep.subr.mxu0 0.0
    %2958 = vmatpush1.xpose.msra.mxu0 0.0
    %2959 = vmatprep.subr.mxu0 0.0
    %2960 = vmatpush1.xpose.msra.mxu0 0.0
    %2961 = vmatprep.subr.mxu0 0.0
    %2962 = vmatpush1.xpose.msra.mxu0 0.0
    %2963 = vmatprep.subr.mxu0 0.0
    %2964 = vmatpush1.xpose.msra.mxu0 0.0
    %2965 = vmatprep.subr.mxu0 0.0
    %2966 = vmatpush1.xpose.msra.mxu0 0.0
    %2967 = vmatprep.subr.mxu0 %v2938
    %2968 = vmatpush1.xpose.msra.mxu0 %v2937
    %2969 = vmatprep.subr.mxu0 %v2936
    %2970 = vmatpush1.xpose.msra.mxu0 %v2935
    %2971 = vmatprep.subr.mxu0 0.0
    %2972 = vmatpush2.xpose.msra.mxu0 0.0
    %2973 = vmatprep.subr.mxu0 0.0
    %2974 = vmatpush2.xpose.msra.mxu0 0.0
    %2975 = vmatprep.subr.mxu0 0.0
    %2976 = vmatpush2.xpose.msra.mxu0 0.0
    %2977 = vmatprep.subr.mxu0 0.0
    %2978 = vmatpush2.xpose.msra.mxu0 0.0
    %2979 = vmatprep.subr.mxu0 0.0
    %2980 = vmatpush2.xpose.msra.mxu0 0.0
    %2981 = vmatprep.subr.mxu0 0.0
    %2982 = vmatpush2.xpose.msra.mxu0 0.0
    %2983 = vmatprep.subr.mxu0 0.0
    %2984 = vmatpush2.xpose.msra.mxu0 0.0
    %2985 = vmatprep.subr.mxu0 0.0
    %2986 = vmatpush2.xpose.msra.mxu0 0.0
    %2987 = vmatprep.subr.mxu0 0.0
    %2988 = vmatpush2.xpose.msra.mxu0 0.0
    %2989 = vmatprep.subr.mxu0 0.0
    %2990 = vmatpush2.xpose.msra.mxu0 0.0
    %2991 = vmatprep.subr.mxu0 0.0
    %2992 = vmatpush2.xpose.msra.mxu0 0.0
    %2993 = vmatprep.subr.mxu0 0.0
    %2994 = vmatpush2.xpose.msra.mxu0 0.0
    %2995 = vmatprep.subr.mxu0 0.0
    %2996 = vmatpush2.xpose.msra.mxu0 0.0
    %2997 = vmatprep.subr.mxu0 0.0
    %2998 = vmatpush2.xpose.msra.mxu0 0.0
    %2999 = vmatprep.subr.mxu0 0.0
    %3000 = vmatpush2.xpose.msra.mxu0 0.0
    %3001 = vmatprep.subr.mxu0 0.0
    %3002 = vmatpush2.xpose.msra.mxu0 0.0
    %3003 = vmatprep.mubr.f32.mxu0 %v1930
    %3004 = vmatmul.mubr.f32.gmra.mxu0 %v1929
    %v3005 = vpop.f32.mrf.mxu0
    %v3006 = vadd.f32 0.0, %v3005
    %v3007 = vpop.f32.mrf.mxu0
    %3008 = vdwg.mxu0
    %v3009 = vunpack.c.l.bf16 %v890
    %v3010 = vsub.f32 1.0, %v3009
    %v3011 = vsub.f32 0.0, %v3006
    %v3012 = vmax.f32 %v3011, 0.0
    %v3013 = vand.u32 2147483647, %v3011
    %v3014 = vsub.f32 0.0, %v3013
    %v3015 = vmul.f32 %v3014, 1.442695
    %v3016 = vpow.pop %v3015
    %v3017 = vadd.f32 %v3016, 1.0
    %v3018 = vlog2.pop %v3017
    %v3019 = vmul.f32 %v3018, 0.6931472
    %v3020 = vadd.f32 %v3012, %v3019
    %v3021 = vsub.f32 0.6931472, %v3020
    %v3022 = vmul.f32 %v3009, %v3021
    %vm3023 = vcmask 123904
    %v3024 = vsel %vm3023, %v3022, 0.0
    %3025 = vadd.xlane.f32.xlu0 %v3024
    %v3026 = vpop.xlane.xlu0 %3025
    %v3027 = vrot.slane %v3026, 4
    %v3028 = vadd.f32 %v3026, %v3027
    %v3029 = vrot.slane %v3028, 2
    %v3030 = vadd.f32 %v3028, %v3029
    %v3031 = vrot.slane %v3030, 1
    %v3032 = vadd.f32 %v3030, %v3031
    %s3033 = vtos %v3032
    %v3034 = vstv %s3033
    %v3035 = vmul.f32 %v3034, %v568
    %v3036 = vadd.f32 %v3020, %v3006
    %v3037 = vsub.f32 %v3036, 0.6931472
    %v3038 = vmul.f32 %v3010, %v3037
    %v3039 = vsel %vm3023, %v3038, 0.0
    %3040 = vadd.xlane.f32.xlu0 %v3039
    %v3041 = vpop.xlane.xlu0 %3040
    %v3042 = vrot.slane %v3041, 4
    %v3043 = vadd.f32 %v3041, %v3042
    %v3044 = vrot.slane %v3043, 2
    %v3045 = vadd.f32 %v3043, %v3044
    %v3046 = vrot.slane %v3045, 1
    %v3047 = vadd.f32 %v3045, %v3046
    %s3048 = vtos %v3047
    %v3049 = vstv %s3048
    %v3050 = vmul.f32 %v3049, %v568
    %v3051 = vsub.f32 %v3050, %v3035
    %vm3052 = vcmask 0
    %3053 = vst.msk [vmem:[#allocation32] sm:$0x1] %vm3052, %v3051
    // Predicated region
    $region182: #{tpu_custom_call.1} parent=1 // pred_check
      _
    $region183: #{tpu_custom_call.1} parent=1 // pred_check_branch
      %3055 = sbr.rel (0) target = $region185
    $region184: #{tpu_custom_call.1} parent=1 // pred_region
      %s3057 = ssub.s32 16, 16
      %3058 = vsyncadd [#allocation5], %s3057
      %s3060 = sshll.u32 [#allocation32], 4
      %s3061 = int_to_ptr.vmem [resolvable:$true] %s3060
      %3063 = dma.vmem_to_hbm [thread:$0]  %s3061, 16, %s27, [#allocation5]
    $region185: #{tpu_custom_call.1} parent=1 // pred_fallthru
      _
    // Predicated region
    $region186: #{tpu_custom_call.1} parent=1 // pred_check
      _
    $region187: #{tpu_custom_call.1} parent=1 // pred_check_branch
      %3065 = sbr.rel (0) target = $region189
    $region188: #{tpu_custom_call.1} parent=1 // pred_region
      %3066 = dma.done [#allocation5], 16
    $region189: #{tpu_custom_call.1} parent=1 // pred_fallthru
      _
    %3067 = vsyncpa [#allocation4], 1
    %3068 = vsyncpa [#allocation7], 1
    %3069 = vsyncpa [#allocation10], 1
    %3070 = vsyncpa [#allocation13], 1
    %3071 = vsyncpa [#allocation16], 1
    %3072 = vsyncpa [#allocation19], 1
    %3073 = vsyncpa [#allocation22], 1
    %3074 = vsyncpa [#allocation25], 1
    %3075 = vsyncpa [#allocation28], 1
    %3076 = vsyncpa [#allocation31], 1
    %3077 = vsyncpa [#allocation5], 1

</llo_original>
